<compile_context>
chip_gen: v5e
topology: v5e:2x2
jax: 0.10.0
libtpu: 0.0.40
codegen_flags: <defaults>
</compile_context>

<pallas_src>
import functools

import jax
import jax.numpy as jnp
from jax.experimental import pallas as pl
from jax.experimental.pallas import tpu as pltpu


_MAX_RESIDENT_WEIGHT_BYTES = 4 * 1024 * 1024   # above this, tile Cout by 128
_ROW_CAP = 512                                 # max flattened rows per grid step


def _pick_bb(B, T, row_cap=_ROW_CAP):
    """Largest divisor of B with bb*T <= row_cap (>=1): batch-packing factor."""
    bb = 1
    for cand in range(1, B + 1):
        if B % cand == 0 and cand * T <= row_cap:
            bb = cand
    return bb


# -----------------------------------------------------------------------------
# Generic stride-1 Conv1d (channels-last), batch-packed, in-kernel zero padding.
# -----------------------------------------------------------------------------
def conv1d_pallas(x, w, b, *, pad=0, post_relu=False, out_dtype=None,
                  cout_tile=None):
    """x: (B, T, Cin), w: (K, Cin, Cout) tap-major, b: (1, Cout) f32."""
    B, T, Cin = x.shape
    K, _, Cout = w.shape
    Tp = T + 2 * pad
    T_out = Tp - (K - 1)
    assert T_out >= 1
    out_dtype = out_dtype or x.dtype
    scratch_dtype = x.dtype

    bb = _pick_bb(B, T)
    n_bb = B // bb
    M = bb * Tp - (K - 1)          # flattened MXU M-dim (K-1 junk rows per batch row)

    if cout_tile is not None and Cout % cout_tile == 0:
        ct = cout_tile
    elif (Cout % 128 == 0 and
          K * Cin * Cout * w.dtype.itemsize > _MAX_RESIDENT_WEIGHT_BYTES):
        ct = 128
    else:
        ct = Cout
    n_ct = Cout // ct

    def kernel(x_ref, w_ref, b_ref, o_ref, xpad_ref):
        # Zero-haloed, per-row-flattened copy of the activation block.  This both
        # implements the conv zero padding and builds the big-M matmul operand.
        # Refill every grid step (the batch block changes every inner step).
        for r in range(bb):
            base = r * Tp
            if pad > 0:
                zeros = jnp.zeros((pad, Cin), scratch_dtype)
                xpad_ref[pl.ds(base, pad), :] = zeros
                xpad_ref[pl.ds(base + pad + T, pad), :] = zeros
            xpad_ref[pl.ds(base + pad, T), :] = x_ref[r]

        acc = jnp.dot(xpad_ref[pl.ds(0, M), :], w_ref[0],
                      preferred_element_type=jnp.float32)
        for k in range(1, K):                       # static, K in {2, 3}
            acc = acc + jnp.dot(xpad_ref[pl.ds(k, M), :], w_ref[k],
                                preferred_element_type=jnp.float32)
        acc = acc + b_ref[...]
        if post_relu:
            acc = jnp.maximum(acc, 0.0)
        for r in range(bb):                         # write back only valid rows
            o_ref[r] = acc[r * Tp:r * Tp + T_out, :].astype(o_ref.dtype)

    # Grid (cout_tiles, batch_tiles): batch innermost -> weight block index is
    # constant over the inner sweep, so each weight tile is fetched once per
    # Cout tile instead of once per (batch, cout) step.
    return pl.pallas_call(
        kernel,
        out_shape=jax.ShapeDtypeStruct((B, T_out, Cout), out_dtype),
        grid=(n_ct, n_bb),
        in_specs=[
            pl.BlockSpec((bb, T, Cin), lambda c, i: (i, 0, 0)),
            pl.BlockSpec((K, Cin, ct), lambda c, i: (0, 0, c)),
            pl.BlockSpec((1, ct), lambda c, i: (0, c)),
        ],
        out_specs=pl.BlockSpec((bb, T_out, ct), lambda c, i: (i, 0, c)),
        scratch_shapes=[pltpu.VMEM((bb * Tp, Cin), scratch_dtype)],
        compiler_params=pltpu.CompilerParams(
            dimension_semantics=("parallel", "parallel")),
    )(x, w, b)


# -----------------------------------------------------------------------------
# Fused Resnet1D block: ReLU -> dilated conv3 -> ReLU -> conv1x1 -> + residual.
# One pallas_call; the intermediate never touches HBM.
# -----------------------------------------------------------------------------
def resblock_pallas(x, w1, b1, w2, b2, *, dilation):
    """x: (B, T, C), w1: (3, C, C), b1: (1, C) f32, w2: (C, C), b2: (1, C) f32."""
    B, T, C = x.shape
    d = dilation
    Tp = T + 2 * d
    bb = _pick_bb(B, T)
    n_bb = B // bb
    M = bb * Tp - 2 * d
    scratch_dtype = x.dtype

    def kernel(x_ref, w1_ref, b1_ref, w2_ref, b2_ref, o_ref, xpad_ref, h_ref):
        # Pre-ReLU written once into a zero-haloed flat scratch; the halo doubles
        # as the dilated conv's zero padding (relu(0) == 0).
        for r in range(bb):
            base = r * Tp
            zeros = jnp.zeros((d, C), scratch_dtype)
            xpad_ref[pl.ds(base, d), :] = zeros
            xpad_ref[pl.ds(base + d + T, d), :] = zeros
            xpad_ref[pl.ds(base + d, T), :] = jnp.maximum(
                x_ref[r].astype(jnp.float32), 0.0).astype(scratch_dtype)

        acc = jnp.dot(xpad_ref[pl.ds(0, M), :], w1_ref[0],
                      preferred_element_type=jnp.float32)
        for k in (1, 2):                            # static dilated taps
            acc = acc + jnp.dot(xpad_ref[pl.ds(k * d, M), :], w1_ref[k],
                                preferred_element_type=jnp.float32)
        acc = acc + b1_ref[...]

        # Second ReLU + compaction of the valid rows (drop inter-row halo junk)
        # so the 1x1 conv runs at the real M = bb*T.
        for r in range(bb):
            h_ref[pl.ds(r * T, T), :] = jnp.maximum(acc[r * Tp:r * Tp + T, :], 0.0)

        out = jnp.dot(h_ref[...], w2_ref[...],
                      preferred_element_type=jnp.float32) + b2_ref[...]
        # Residual: re-read x_ref at write time (short live range, no f32 copy
        # of the whole block held across the body).
        for r in range(bb):
            o_ref[r] = (out[r * T:(r + 1) * T, :]
                        + x_ref[r].astype(jnp.float32)).astype(o_ref.dtype)

    return pl.pallas_call(
        kernel,
        out_shape=jax.ShapeDtypeStruct((B, T, C), x.dtype),
        grid=(n_bb,),
        in_specs=[
            pl.BlockSpec((bb, T, C), lambda i: (i, 0, 0)),
            pl.BlockSpec((3, C, C), lambda i: (0, 0, 0)),
            pl.BlockSpec((1, C), lambda i: (0, 0)),
            pl.BlockSpec((C, C), lambda i: (0, 0)),
            pl.BlockSpec((1, C), lambda i: (0, 0)),
        ],
        out_specs=pl.BlockSpec((bb, T, C), lambda i: (i, 0, 0)),
        scratch_shapes=[pltpu.VMEM((bb * Tp, C), scratch_dtype),
                        pltpu.VMEM((bb * T, C), jnp.float32)],
        compiler_params=pltpu.CompilerParams(dimension_semantics=("parallel",)),
    )(x, w1, b1, w2, b2)


# -----------------------------------------------------------------------------
# One-time parameter layout preparation (PyTorch (Cout,Cin,K) -> kernel layouts).
# -----------------------------------------------------------------------------
def _to_kio(w_oik):
    return jnp.transpose(w_oik, (2, 1, 0))         # -> (K, Cin, Cout)


def prepare_params(raw, *, weight_dtype=jnp.bfloat16):
    """Tap-major + bf16 weights, f32 (1, Cout) biases, restacked downsample taps."""
    def conv(wb):
        w, b = wb
        return (_to_kio(jnp.asarray(w)).astype(weight_dtype),
                jnp.asarray(b, jnp.float32).reshape(1, -1))

    prep = {"conv_in": conv(raw["conv_in"]),
            "conv_out": conv(raw["conv_out"]),
            "stages": []}
    for stage in raw["stages"]:
        wk, bd = conv(stage["down"])                # wk: (4, C, C) tap-major
        C = wk.shape[1]
        zero = jnp.zeros((C, C), wk.dtype)
        # stride-2 k=4 pad=1 conv == stride-1 k=3 pad=1 conv over the even/odd
        # channel-interleaved input x.reshape(B, T//2, 2C):
        #   y[t] = x[2t-1]@w0 + x[2t]@w1 + x[2t+1]@w2 + x[2t+2]@w3
        w_down = jnp.stack([
            jnp.concatenate([zero, wk[0]], axis=0),     # tap t-1: [0 ; w0]
            jnp.concatenate([wk[1], wk[2]], axis=0),    # tap t  : [w1; w2]
            jnp.concatenate([wk[3], zero], axis=0),     # tap t+1: [w3; 0 ]
        ])                                              # (3, 2C, C)
        blocks = []
        for blk in stage["res"]:
            w1, b1 = conv(blk["conv1"])                 # (3, C, C)
            w2, b2 = conv(blk["conv2"])                 # (1, C, C)
            blocks.append({"w1": w1, "b1": b1, "w2": w2[0], "b2": b2})
        prep["stages"].append({"down": (w_down, bd), "res": blocks})
    return prep


# -----------------------------------------------------------------------------
# Encoder forward (jit this; all per-call work is pallas_calls + cheap glue).
# -----------------------------------------------------------------------------
def encoder_pallas(x_nct, params, *, depth, dilation_growth_rate,
                   act_dtype=jnp.bfloat16, cout_tile=None, need_transpose=False):
    if need_transpose:                               # 'b n d -> b d n'
        x_nct = jnp.transpose(x_nct, (0, 2, 1))
    in_dtype = x_nct.dtype
    x = jnp.transpose(x_nct, (0, 2, 1))              # channels-last (B, T, C)

    w, b = params["conv_in"]
    x = conv1d_pallas(x, w, b, pad=1, post_relu=True,
                      out_dtype=act_dtype, cout_tile=cout_tile)

    for stage in params["stages"]:
        wd, bd = stage["down"]
        B, T, C = x.shape
        assert T % 2 == 0, "time length must stay even at every downsample stage"
        # Free row-major reshape -> even/odd channel interleave; the strided
        # downsample conv is then a stride-1, k=3 conv (zero-padded in-kernel).
        xr = x.reshape(B, T // 2, 2 * C)
        x = conv1d_pallas(xr, wd, bd, pad=1, out_dtype=act_dtype,
                          cout_tile=cout_tile)

        for j, blk in enumerate(stage["res"]):
            dil = dilation_growth_rate ** (depth - 1 - j)   # reverse dilation
            x = resblock_pallas(x, blk["w1"], blk["b1"], blk["w2"], blk["b2"],
                                dilation=dil)

    wo, bo = params["conv_out"]
    x = conv1d_pallas(x, wo, bo, pad=1, out_dtype=in_dtype, cout_tile=cout_tile)

    out = jnp.transpose(x, (0, 2, 1))                # back to (B, Cout, T/ratio)
    if need_transpose:                               # 'b d n -> b n d'
        out = jnp.transpose(out, (0, 2, 1))
    return out


# -----------------------------------------------------------------------------
# Deterministic init (PyTorch Conv1d default uniform init, PyTorch layout).
# -----------------------------------------------------------------------------
def _init_conv(key, cout, cin, k):
    kw, kb = jax.random.split(key)
    bound = (cin * k) ** -0.5
    w = jax.random.uniform(kw, (cout, cin, k), jnp.float32, -bound, bound)
    b = jax.random.uniform(kb, (cout,), jnp.float32, -bound, bound)
    return w, b


def build_raw_params(key, cin, cout, width, n_stages, depth):
    params = {}
    key, k0 = jax.random.split(key)
    params["conv_in"] = _init_conv(k0, width, cin, 3)
    stages = []
    for _ in range(n_stages):
        key, kd = jax.random.split(key)
        stage = {"down": _init_conv(kd, width, width, 4), "res": []}
        for _j in range(depth):
            key, k1 = jax.random.split(key)
            key, k2 = jax.random.split(key)
            stage["res"].append({"conv1": _init_conv(k1, width, width, 3),
                                 "conv2": _init_conv(k2, width, width, 1)})
        stages.append(stage)
    params["stages"] = stages
    key, ko = jax.random.split(key)
    params["conv_out"] = _init_conv(ko, cout, width, 3)
    return params


# -----------------------------------------------------------------------------
# Pure-JAX f32 reference (NCT layout, same semantics as the PyTorch module).
# -----------------------------------------------------------------------------
def encoder_ref(x, raw, *, depth, dilation_growth_rate):
    def conv(h, wb, stride=1, padding=0, dilation=1):
        w, b = wb
        y = jax.lax.conv_general_dilated(
            h, w, (stride,), [(padding, padding)], rhs_dilation=(dilation,),
            dimension_numbers=("NCH", "OIH", "NCH"))
        return y + b[None, :, None]

    h = jnp.maximum(conv(x, raw["conv_in"], padding=1), 0.0)
    for stage in raw["stages"]:
        h = conv(h, stage["down"], stride=2, padding=1)
        for j, blk in enumerate(stage["res"]):
            d = dilation_growth_rate ** (depth - 1 - j)
            t = conv(jnp.maximum(h, 0.0), blk["conv1"], padding=d, dilation=d)
            t = conv(jnp.maximum(t, 0.0), blk["conv2"])
            h = t + h
    return conv(h, raw["conv_out"], padding=1)


def _run_case(name, *, B, Cin, T, width, Cout, n_stages, depth, growth,
              cout_tile=None, tol_scale=5e-2):
    key = jax.random.PRNGKey(0)
    kx, kp = jax.random.split(key)
    x = jax.random.normal(kx, (B, Cin, T), jnp.float32)
    raw = build_raw_params(kp, Cin, Cout, width, n_stages, depth)
    params = prepare_params(raw)          # one-time relayout + bf16 cast

    fwd = jax.jit(functools.partial(encoder_pallas, depth=depth,
                                    dilation_growth_rate=growth,
                                    cout_tile=cout_tile))
    out = jax.block_until_ready(fwd(x, params))
    assert out.shape == (B, Cout, T // (2 ** n_stages)), (name, out.shape)

    ref = encoder_ref(x, raw, depth=depth, dilation_growth_rate=growth)
    err = float(jnp.max(jnp.abs(out.astype(jnp.float32) - ref)))
    tol = tol_scale * (1.0 + float(jnp.max(jnp.abs(ref))))   # bf16-level parity
    if err > tol:
        raise AssertionError(f"{name}: Pallas/ref mismatch, max abs err {err} > {tol}")


if __name__ == "__main__":
    # Toy widths consistent with the module (scaled down); input (B, Cin, T) NCT.
    _run_case("toy", B=2, Cin=8, T=16, width=16, Cout=16,
              n_stages=2, depth=3, growth=3)
    # width >= 128: exercises the Cout-tiled (ct=128) weight-resident grid and
    # the in-kernel zero-halo fill at a realistic lane width.
    _run_case("width256_couttile", B=2, Cin=16, T=16, width=256, Cout=256,
              n_stages=2, depth=2, growth=3, cout_tile=128)
    # Longer sequence: batch axis tiled (n_bb > 1), weight block revisited
    # across inner batch steps without re-DMA.
    _run_case("batch_tiled", B=4, Cin=8, T=256, width=32, Cout=32,
              n_stages=2, depth=2, growth=3)
    print("KERNEL_OK")
</pallas_src>

<mosaic_0001>
module attributes {stable_mosaic.version = 11 : i64} {
  func.func @kernel(%arg0: i32, %arg1: memref<2x8x16xbf16, #tpu.memory_space<vmem>>, %arg2: memref<3x16x16xbf16, #tpu.memory_space<vmem>>, %arg3: memref<1x16xf32, #tpu.memory_space<vmem>>, %arg4: memref<16x16xbf16, #tpu.memory_space<vmem>>, %arg5: memref<1x16xf32, #tpu.memory_space<vmem>>, %arg6: memref<2x8x16xbf16, #tpu.memory_space<vmem>>, %arg7: memref<52x16xbf16, #tpu.memory_space<vmem>>, %arg8: memref<16x16xf32, #tpu.memory_space<vmem>>) attributes {dimension_semantics = [#tpu.dimension_semantics<parallel>], iteration_bounds = array<i64: 1>, scalar_prefetch = 0 : i64, scratch_operands = 2 : i64, tpu.core_type = #tpu.core_type<tc>, window_params = [{transform_indices = @transform_0, window_bounds = array<i64: 2, 8, 16>}, {pipeline_mode = #tpu.pipeline_mode<synchronous>, transform_indices = @transform_1, window_bounds = array<i64: 3, 16, 16>}, {pipeline_mode = #tpu.pipeline_mode<synchronous>, transform_indices = @transform_2, window_bounds = array<i64: 1, 16>}, {pipeline_mode = #tpu.pipeline_mode<synchronous>, transform_indices = @transform_3, window_bounds = array<i64: 16, 16>}, {pipeline_mode = #tpu.pipeline_mode<synchronous>, transform_indices = @transform_4, window_bounds = array<i64: 1, 16>}, {transform_indices = @transform_5, window_bounds = array<i64: 2, 8, 16>}]} {
    %cst = arith.constant 0.000000e+00 : bf16
    %0 = vector.broadcast %cst : bf16 to vector<9x16xbf16>
    %c0 = arith.constant 0 : index
    %c0_0 = arith.constant 0 : index
    %1 = vector.load %arg7[%c0, %c0_0] : memref<52x16xbf16, #tpu.memory_space<vmem>>, vector<9x16xbf16>
    tpu.vector_store %arg7[%c0, %c0_0], %0 {strides = array<i32>} : memref<52x16xbf16, #tpu.memory_space<vmem>>, vector<9x16xbf16>,
    %c17 = arith.constant 17 : index
    %c0_1 = arith.constant 0 : index
    %2 = vector.load %arg7[%c17, %c0_1] : memref<52x16xbf16, #tpu.memory_space<vmem>>, vector<9x16xbf16>
    tpu.vector_store %arg7[%c17, %c0_1], %0 {strides = array<i32>} : memref<52x16xbf16, #tpu.memory_space<vmem>>, vector<9x16xbf16>,
    %c0_2 = arith.constant 0 : index
    %c0_3 = arith.constant 0 : index
    %c0_4 = arith.constant 0 : index
    %3 = vector.load %arg1[%c0_2, %c0_3, %c0_4] : memref<2x8x16xbf16, #tpu.memory_space<vmem>>, vector<1x8x16xbf16>
    %4 = vector.shape_cast %3 : vector<1x8x16xbf16> to vector<8x16xbf16>
    %5 = arith.extf %4 : vector<8x16xbf16> to vector<8x16xf32>
    %cst_5 = arith.constant 0.000000e+00 : f32
    %6 = vector.broadcast %cst_5 : f32 to vector<8x16xf32>
    %7 = arith.maximumf %5, %6 : vector<8x16xf32>
    %8 = arith.truncf %7 : vector<8x16xf32> to vector<8x16xbf16>
    %c9 = arith.constant 9 : index
    %c0_6 = arith.constant 0 : index
    %9 = vector.load %arg7[%c9, %c0_6] : memref<52x16xbf16, #tpu.memory_space<vmem>>, vector<8x16xbf16>
    tpu.vector_store %arg7[%c9, %c0_6], %8 {strides = array<i32>} : memref<52x16xbf16, #tpu.memory_space<vmem>>, vector<8x16xbf16>,
    %cst_7 = arith.constant 0.000000e+00 : bf16
    %10 = vector.broadcast %cst_7 : bf16 to vector<9x16xbf16>
    %c26 = arith.constant 26 : index
    %c0_8 = arith.constant 0 : index
    %11 = vector.load %arg7[%c26, %c0_8] : memref<52x16xbf16, #tpu.memory_space<vmem>>, vector<9x16xbf16>
    tpu.vector_store %arg7[%c26, %c0_8], %10 {strides = array<i32>} : memref<52x16xbf16, #tpu.memory_space<vmem>>, vector<9x16xbf16>,
    %c43 = arith.constant 43 : index
    %c0_9 = arith.constant 0 : index
    %12 = vector.load %arg7[%c43, %c0_9] : memref<52x16xbf16, #tpu.memory_space<vmem>>, vector<9x16xbf16>
    tpu.vector_store %arg7[%c43, %c0_9], %10 {strides = array<i32>} : memref<52x16xbf16, #tpu.memory_space<vmem>>, vector<9x16xbf16>,
    %c1 = arith.constant 1 : index
    %c0_10 = arith.constant 0 : index
    %c0_11 = arith.constant 0 : index
    %13 = vector.load %arg1[%c1, %c0_10, %c0_11] : memref<2x8x16xbf16, #tpu.memory_space<vmem>>, vector<1x8x16xbf16>
    %14 = vector.shape_cast %13 : vector<1x8x16xbf16> to vector<8x16xbf16>
    %15 = arith.extf %14 : vector<8x16xbf16> to vector<8x16xf32>
    %cst_12 = arith.constant 0.000000e+00 : f32
    %16 = vector.broadcast %cst_12 : f32 to vector<8x16xf32>
    %17 = arith.maximumf %15, %16 : vector<8x16xf32>
    %18 = arith.truncf %17 : vector<8x16xf32> to vector<8x16xbf16>
    %c35 = arith.constant 35 : index
    %c0_13 = arith.constant 0 : index
    %19 = vector.load %arg7[%c35, %c0_13] : memref<52x16xbf16, #tpu.memory_space<vmem>>, vector<8x16xbf16>
    tpu.vector_store %arg7[%c35, %c0_13], %18 {strides = array<i32>} : memref<52x16xbf16, #tpu.memory_space<vmem>>, vector<8x16xbf16>,
    %c0_14 = arith.constant 0 : index
    %c0_15 = arith.constant 0 : index
    %20 = vector.load %arg7[%c0_14, %c0_15] : memref<52x16xbf16, #tpu.memory_space<vmem>>, vector<34x16xbf16>
    %c0_16 = arith.constant 0 : index
    %c0_17 = arith.constant 0 : index
    %c0_18 = arith.constant 0 : index
    %21 = vector.load %arg2[%c0_16, %c0_17, %c0_18] : memref<3x16x16xbf16, #tpu.memory_space<vmem>>, vector<1x16x16xbf16>
    %22 = vector.shape_cast %21 : vector<1x16x16xbf16> to vector<16x16xbf16>
    %cst_19 = arith.constant dense<0.000000e+00> : vector<34x16xf32>
    %23 = tpu.matmul %20, %22, %cst_19 {dimension_numbers = #tpu.dot_dimension_numbers<[1], [0], [0], [1], [0, 0, 1, 1], [], []>} : vector<34x16xbf16>, vector<16x16xbf16>, vector<34x16xf32> -> vector<34x16xf32>
    %c9_20 = arith.constant 9 : index
    %c0_21 = arith.constant 0 : index
    %24 = vector.load %arg7[%c9_20, %c0_21] : memref<52x16xbf16, #tpu.memory_space<vmem>>, vector<34x16xbf16>
    %c1_22 = arith.constant 1 : index
    %c0_23 = arith.constant 0 : index
    %c0_24 = arith.constant 0 : index
    %25 = vector.load %arg2[%c1_22, %c0_23, %c0_24] : memref<3x16x16xbf16, #tpu.memory_space<vmem>>, vector<1x16x16xbf16>
    %26 = vector.shape_cast %25 : vector<1x16x16xbf16> to vector<16x16xbf16>
    %cst_25 = arith.constant dense<0.000000e+00> : vector<34x16xf32>
    %27 = tpu.matmul %24, %26, %cst_25 {dimension_numbers = #tpu.dot_dimension_numbers<[1], [0], [0], [1], [0, 0, 1, 1], [], []>} : vector<34x16xbf16>, vector<16x16xbf16>, vector<34x16xf32> -> vector<34x16xf32>
    %28 = arith.addf %23, %27 : vector<34x16xf32>
    %c18 = arith.constant 18 : index
    %c0_26 = arith.constant 0 : index
    %29 = vector.load %arg7[%c18, %c0_26] : memref<52x16xbf16, #tpu.memory_space<vmem>>, vector<34x16xbf16>
    %c2 = arith.constant 2 : index
    %c0_27 = arith.constant 0 : index
    %c0_28 = arith.constant 0 : index
    %30 = vector.load %arg2[%c2, %c0_27, %c0_28] : memref<3x16x16xbf16, #tpu.memory_space<vmem>>, vector<1x16x16xbf16>
    %31 = vector.shape_cast %30 : vector<1x16x16xbf16> to vector<16x16xbf16>
    %cst_29 = arith.constant dense<0.000000e+00> : vector<34x16xf32>
    %32 = tpu.matmul %29, %31, %cst_29 {dimension_numbers = #tpu.dot_dimension_numbers<[1], [0], [0], [1], [0, 0, 1, 1], [], []>} : vector<34x16xbf16>, vector<16x16xbf16>, vector<34x16xf32> -> vector<34x16xf32>
    %33 = arith.addf %28, %32 : vector<34x16xf32>
    %c0_30 = arith.constant 0 : index
    %c0_31 = arith.constant 0 : index
    %34 = vector.load %arg3[%c0_30, %c0_31] : memref<1x16xf32, #tpu.memory_space<vmem>>, vector<1x16xf32>
    %35 = vector.broadcast %34 : vector<1x16xf32> to vector<34x16xf32>
    %36 = arith.addf %33, %35 : vector<34x16xf32>
    %37 = vector.extract_strided_slice %36 {offsets = [0, 0], sizes = [8, 16], strides = [1, 1]} : vector<34x16xf32> to vector<8x16xf32>
    %cst_32 = arith.constant 0.000000e+00 : f32
    %38 = vector.broadcast %cst_32 : f32 to vector<8x16xf32>
    %39 = arith.maximumf %37, %38 : vector<8x16xf32>
    %c0_33 = arith.constant 0 : index
    %c0_34 = arith.constant 0 : index
    %40 = vector.load %arg8[%c0_33, %c0_34] : memref<16x16xf32, #tpu.memory_space<vmem>>, vector<8x16xf32>
    tpu.vector_store %arg8[%c0_33, %c0_34], %39 {strides = array<i32>} : memref<16x16xf32, #tpu.memory_space<vmem>>, vector<8x16xf32>,
    %41 = vector.extract_strided_slice %36 {offsets = [26, 0], sizes = [8, 16], strides = [1, 1]} : vector<34x16xf32> to vector<8x16xf32>
    %cst_35 = arith.constant 0.000000e+00 : f32
    %42 = vector.broadcast %cst_35 : f32 to vector<8x16xf32>
    %43 = arith.maximumf %41, %42 : vector<8x16xf32>
    %c8 = arith.constant 8 : index
    %c0_36 = arith.constant 0 : index
    %44 = vector.load %arg8[%c8, %c0_36] : memref<16x16xf32, #tpu.memory_space<vmem>>, vector<8x16xf32>
    tpu.vector_store %arg8[%c8, %c0_36], %43 {strides = array<i32>} : memref<16x16xf32, #tpu.memory_space<vmem>>, vector<8x16xf32>,
    %c0_37 = arith.constant 0 : index
    %c0_38 = arith.constant 0 : index
    %45 = vector.load %arg8[%c0_37, %c0_38] : memref<16x16xf32, #tpu.memory_space<vmem>>, vector<16x16xf32>
    %c0_39 = arith.constant 0 : index
    %c0_40 = arith.constant 0 : index
    %46 = vector.load %arg4[%c0_39, %c0_40] : memref<16x16xbf16, #tpu.memory_space<vmem>>, vector<16x16xbf16>
    %cst_41 = arith.constant dense<0.000000e+00> : vector<16x16xf32>
    %47 = tpu.matmul %45, %46, %cst_41 {dimension_numbers = #tpu.dot_dimension_numbers<[1], [0], [0], [1], [0, 0, 1, 1], [], []>} : vector<16x16xf32>, vector<16x16xbf16>, vector<16x16xf32> -> vector<16x16xf32>
    %c0_42 = arith.constant 0 : index
    %c0_43 = arith.constant 0 : index
    %48 = vector.load %arg5[%c0_42, %c0_43] : memref<1x16xf32, #tpu.memory_space<vmem>>, vector<1x16xf32>
    %49 = vector.broadcast %48 : vector<1x16xf32> to vector<16x16xf32>
    %50 = arith.addf %47, %49 : vector<16x16xf32>
    %51 = vector.extract_strided_slice %50 {offsets = [0, 0], sizes = [8, 16], strides = [1, 1]} : vector<16x16xf32> to vector<8x16xf32>
    %c0_44 = arith.constant 0 : index
    %c0_45 = arith.constant 0 : index
    %c0_46 = arith.constant 0 : index
    %52 = vector.load %arg1[%c0_44, %c0_45, %c0_46] : memref<2x8x16xbf16, #tpu.memory_space<vmem>>, vector<1x8x16xbf16>
    %53 = vector.shape_cast %52 : vector<1x8x16xbf16> to vector<8x16xbf16>
    %54 = arith.extf %53 : vector<8x16xbf16> to vector<8x16xf32>
    %55 = arith.addf %51, %54 : vector<8x16xf32>
    %56 = arith.truncf %55 : vector<8x16xf32> to vector<8x16xbf16>
    %c0_47 = arith.constant 0 : index
    %c0_48 = arith.constant 0 : index
    %c0_49 = arith.constant 0 : index
    %57 = vector.load %arg6[%c0_47, %c0_48, %c0_49] : memref<2x8x16xbf16, #tpu.memory_space<vmem>>, vector<1x8x16xbf16>
    %58 = vector.shape_cast %57 : vector<1x8x16xbf16> to vector<8x16xbf16>
    %59 = vector.shape_cast %56 : vector<8x16xbf16> to vector<1x8x16xbf16>
    tpu.vector_store %arg6[%c0_47, %c0_48, %c0_49], %59 {strides = array<i32>} : memref<2x8x16xbf16, #tpu.memory_space<vmem>>, vector<1x8x16xbf16>,
    %60 = vector.extract_strided_slice %50 {offsets = [8, 0], sizes = [8, 16], strides = [1, 1]} : vector<16x16xf32> to vector<8x16xf32>
    %c1_50 = arith.constant 1 : index
    %c0_51 = arith.constant 0 : index
    %c0_52 = arith.constant 0 : index
    %61 = vector.load %arg1[%c1_50, %c0_51, %c0_52] : memref<2x8x16xbf16, #tpu.memory_space<vmem>>, vector<1x8x16xbf16>
    %62 = vector.shape_cast %61 : vector<1x8x16xbf16> to vector<8x16xbf16>
    %63 = arith.extf %62 : vector<8x16xbf16> to vector<8x16xf32>
    %64 = arith.addf %60, %63 : vector<8x16xf32>
    %65 = arith.truncf %64 : vector<8x16xf32> to vector<8x16xbf16>
    %c1_53 = arith.constant 1 : index
    %c0_54 = arith.constant 0 : index
    %c0_55 = arith.constant 0 : index
    %66 = vector.load %arg6[%c1_53, %c0_54, %c0_55] : memref<2x8x16xbf16, #tpu.memory_space<vmem>>, vector<1x8x16xbf16>
    %67 = vector.shape_cast %66 : vector<1x8x16xbf16> to vector<8x16xbf16>
    %68 = vector.shape_cast %65 : vector<8x16xbf16> to vector<1x8x16xbf16>
    tpu.vector_store %arg6[%c1_53, %c0_54, %c0_55], %68 {strides = array<i32>} : memref<2x8x16xbf16, #tpu.memory_space<vmem>>, vector<1x8x16xbf16>,
    return
  }
  func.func @transform_0(%arg0: i32) -> (i32, i32, i32) {
    %c0_i32 = arith.constant 0 : i32
    %c0_i32_0 = arith.constant 0 : i32
    %c0_i32_1 = arith.constant 0 : i32
    return %arg0, %c0_i32, %c0_i32_0 : i32, i32, i32
  }
  func.func @transform_1(%arg0: i32) -> (i32, i32, i32) {
    %c0_i32 = arith.constant 0 : i32
    %c0_i32_0 = arith.constant 0 : i32
    %c0_i32_1 = arith.constant 0 : i32
    %c0_i32_2 = arith.constant 0 : i32
    return %c0_i32, %c0_i32_0, %c0_i32_1 : i32, i32, i32
  }
  func.func @transform_2(%arg0: i32) -> (i32, i32) {
    %c0_i32 = arith.constant 0 : i32
    %c0_i32_0 = arith.constant 0 : i32
    %c0_i32_1 = arith.constant 0 : i32
    return %c0_i32, %c0_i32_0 : i32, i32
  }
  func.func @transform_3(%arg0: i32) -> (i32, i32) {
    %c0_i32 = arith.constant 0 : i32
    %c0_i32_0 = arith.constant 0 : i32
    %c0_i32_1 = arith.constant 0 : i32
    return %c0_i32, %c0_i32_0 : i32, i32
  }
  func.func @transform_4(%arg0: i32) -> (i32, i32) {
    %c0_i32 = arith.constant 0 : i32
    %c0_i32_0 = arith.constant 0 : i32
    %c0_i32_1 = arith.constant 0 : i32
    return %c0_i32, %c0_i32_0 : i32, i32
  }
  func.func @transform_5(%arg0: i32) -> (i32, i32, i32) {
    %c0_i32 = arith.constant 0 : i32
    %c0_i32_0 = arith.constant 0 : i32
    %c0_i32_1 = arith.constant 0 : i32
    return %arg0, %c0_i32, %c0_i32_0 : i32, i32, i32
  }
}

module attributes {stable_mosaic.version = 11 : i64} {
  func.func @kernel(%arg0: i32, %arg1: i32, %arg2: memref<2x16x8xf32, #tpu.memory_space<vmem>>, %arg3: memref<3x8x16xbf16, #tpu.memory_space<vmem>>, %arg4: memref<1x16xf32, #tpu.memory_space<vmem>>, %arg5: memref<2x16x16xbf16, #tpu.memory_space<vmem>>, %arg6: memref<36x8xf32, #tpu.memory_space<vmem>>) attributes {dimension_semantics = [#tpu.dimension_semantics<parallel>, #tpu.dimension_semantics<parallel>], iteration_bounds = array<i64: 1, 1>, scalar_prefetch = 0 : i64, scratch_operands = 1 : i64, tpu.core_type = #tpu.core_type<tc>, window_params = [{transform_indices = @transform_0, window_bounds = array<i64: 2, 16, 8>}, {transform_indices = @transform_1, window_bounds = array<i64: 3, 8, 16>}, {transform_indices = @transform_2, window_bounds = array<i64: 1, 16>}, {transform_indices = @transform_3, window_bounds = array<i64: 2, 16, 16>}]} {
    %cst = arith.constant 0.000000e+00 : f32
    %0 = vector.broadcast %cst : f32 to vector<1x8xf32>
    %c0 = arith.constant 0 : index
    %c0_0 = arith.constant 0 : index
    %1 = vector.load %arg6[%c0, %c0_0] : memref<36x8xf32, #tpu.memory_space<vmem>>, vector<1x8xf32>
    tpu.vector_store %arg6[%c0, %c0_0], %0 {strides = array<i32>} : memref<36x8xf32, #tpu.memory_space<vmem>>, vector<1x8xf32>,
    %c17 = arith.constant 17 : index
    %c0_1 = arith.constant 0 : index
    %2 = vector.load %arg6[%c17, %c0_1] : memref<36x8xf32, #tpu.memory_space<vmem>>, vector<1x8xf32>
    tpu.vector_store %arg6[%c17, %c0_1], %0 {strides = array<i32>} : memref<36x8xf32, #tpu.memory_space<vmem>>, vector<1x8xf32>,
    %c0_2 = arith.constant 0 : index
    %c0_3 = arith.constant 0 : index
    %c0_4 = arith.constant 0 : index
    %3 = vector.load %arg2[%c0_2, %c0_3, %c0_4] : memref<2x16x8xf32, #tpu.memory_space<vmem>>, vector<1x16x8xf32>
    %4 = vector.shape_cast %3 : vector<1x16x8xf32> to vector<16x8xf32>
    %c1 = arith.constant 1 : index
    %c0_5 = arith.constant 0 : index
    %5 = vector.load %arg6[%c1, %c0_5] : memref<36x8xf32, #tpu.memory_space<vmem>>, vector<16x8xf32>
    tpu.vector_store %arg6[%c1, %c0_5], %4 {strides = array<i32>} : memref<36x8xf32, #tpu.memory_space<vmem>>, vector<16x8xf32>,
    %cst_6 = arith.constant 0.000000e+00 : f32
    %6 = vector.broadcast %cst_6 : f32 to vector<1x8xf32>
    %c18 = arith.constant 18 : index
    %c0_7 = arith.constant 0 : index
    %7 = vector.load %arg6[%c18, %c0_7] : memref<36x8xf32, #tpu.memory_space<vmem>>, vector<1x8xf32>
    tpu.vector_store %arg6[%c18, %c0_7], %6 {strides = array<i32>} : memref<36x8xf32, #tpu.memory_space<vmem>>, vector<1x8xf32>,
    %c35 = arith.constant 35 : index
    %c0_8 = arith.constant 0 : index
    %8 = vector.load %arg6[%c35, %c0_8] : memref<36x8xf32, #tpu.memory_space<vmem>>, vector<1x8xf32>
    tpu.vector_store %arg6[%c35, %c0_8], %6 {strides = array<i32>} : memref<36x8xf32, #tpu.memory_space<vmem>>, vector<1x8xf32>,
    %c1_9 = arith.constant 1 : index
    %c0_10 = arith.constant 0 : index
    %c0_11 = arith.constant 0 : index
    %9 = vector.load %arg2[%c1_9, %c0_10, %c0_11] : memref<2x16x8xf32, #tpu.memory_space<vmem>>, vector<1x16x8xf32>
    %10 = vector.shape_cast %9 : vector<1x16x8xf32> to vector<16x8xf32>
    %c19 = arith.constant 19 : index
    %c0_12 = arith.constant 0 : index
    %11 = vector.load %arg6[%c19, %c0_12] : memref<36x8xf32, #tpu.memory_space<vmem>>, vector<16x8xf32>
    tpu.vector_store %arg6[%c19, %c0_12], %10 {strides = array<i32>} : memref<36x8xf32, #tpu.memory_space<vmem>>, vector<16x8xf32>,
    %c0_13 = arith.constant 0 : index
    %c0_14 = arith.constant 0 : index
    %12 = vector.load %arg6[%c0_13, %c0_14] : memref<36x8xf32, #tpu.memory_space<vmem>>, vector<34x8xf32>
    %c0_15 = arith.constant 0 : index
    %c0_16 = arith.constant 0 : index
    %c0_17 = arith.constant 0 : index
    %13 = vector.load %arg3[%c0_15, %c0_16, %c0_17] : memref<3x8x16xbf16, #tpu.memory_space<vmem>>, vector<1x8x16xbf16>
    %14 = vector.shape_cast %13 : vector<1x8x16xbf16> to vector<8x16xbf16>
    %cst_18 = arith.constant dense<0.000000e+00> : vector<34x16xf32>
    %15 = tpu.matmul %12, %14, %cst_18 {dimension_numbers = #tpu.dot_dimension_numbers<[1], [0], [0], [1], [0, 0, 1, 1], [], []>} : vector<34x8xf32>, vector<8x16xbf16>, vector<34x16xf32> -> vector<34x16xf32>
    %c1_19 = arith.constant 1 : index
    %c0_20 = arith.constant 0 : index
    %16 = vector.load %arg6[%c1_19, %c0_20] : memref<36x8xf32, #tpu.memory_space<vmem>>, vector<34x8xf32>
    %c1_21 = arith.constant 1 : index
    %c0_22 = arith.constant 0 : index
    %c0_23 = arith.constant 0 : index
    %17 = vector.load %arg3[%c1_21, %c0_22, %c0_23] : memref<3x8x16xbf16, #tpu.memory_space<vmem>>, vector<1x8x16xbf16>
    %18 = vector.shape_cast %17 : vector<1x8x16xbf16> to vector<8x16xbf16>
    %cst_24 = arith.constant dense<0.000000e+00> : vector<34x16xf32>
    %19 = tpu.matmul %16, %18, %cst_24 {dimension_numbers = #tpu.dot_dimension_numbers<[1], [0], [0], [1], [0, 0, 1, 1], [], []>} : vector<34x8xf32>, vector<8x16xbf16>, vector<34x16xf32> -> vector<34x16xf32>
    %20 = arith.addf %15, %19 : vector<34x16xf32>
    %c2 = arith.constant 2 : index
    %c0_25 = arith.constant 0 : index
    %21 = vector.load %arg6[%c2, %c0_25] : memref<36x8xf32, #tpu.memory_space<vmem>>, vector<34x8xf32>
    %c2_26 = arith.constant 2 : index
    %c0_27 = arith.constant 0 : index
    %c0_28 = arith.constant 0 : index
    %22 = vector.load %arg3[%c2_26, %c0_27, %c0_28] : memref<3x8x16xbf16, #tpu.memory_space<vmem>>, vector<1x8x16xbf16>
    %23 = vector.shape_cast %22 : vector<1x8x16xbf16> to vector<8x16xbf16>
    %cst_29 = arith.constant dense<0.000000e+00> : vector<34x16xf32>
    %24 = tpu.matmul %21, %23, %cst_29 {dimension_numbers = #tpu.dot_dimension_numbers<[1], [0], [0], [1], [0, 0, 1, 1], [], []>} : vector<34x8xf32>, vector<8x16xbf16>, vector<34x16xf32> -> vector<34x16xf32>
    %25 = arith.addf %20, %24 : vector<34x16xf32>
    %c0_30 = arith.constant 0 : index
    %c0_31 = arith.constant 0 : index
    %26 = vector.load %arg4[%c0_30, %c0_31] : memref<1x16xf32, #tpu.memory_space<vmem>>, vector<1x16xf32>
    %27 = vector.broadcast %26 : vector<1x16xf32> to vector<34x16xf32>
    %28 = arith.addf %25, %27 : vector<34x16xf32>
    %cst_32 = arith.constant 0.000000e+00 : f32
    %29 = vector.broadcast %cst_32 : f32 to vector<34x16xf32>
    %30 = arith.maximumf %28, %29 : vector<34x16xf32>
    %31 = vector.extract_strided_slice %30 {offsets = [0, 0], sizes = [16, 16], strides = [1, 1]} : vector<34x16xf32> to vector<16x16xf32>
    %32 = arith.truncf %31 : vector<16x16xf32> to vector<16x16xbf16>
    %c0_33 = arith.constant 0 : index
    %c0_34 = arith.constant 0 : index
    %c0_35 = arith.constant 0 : index
    %33 = vector.load %arg5[%c0_33, %c0_34, %c0_35] : memref<2x16x16xbf16, #tpu.memory_space<vmem>>, vector<1x16x16xbf16>
    %34 = vector.shape_cast %33 : vector<1x16x16xbf16> to vector<16x16xbf16>
    %35 = vector.shape_cast %32 : vector<16x16xbf16> to vector<1x16x16xbf16>
    tpu.vector_store %arg5[%c0_33, %c0_34, %c0_35], %35 {strides = array<i32>} : memref<2x16x16xbf16, #tpu.memory_space<vmem>>, vector<1x16x16xbf16>,
    %36 = vector.extract_strided_slice %30 {offsets = [18, 0], sizes = [16, 16], strides = [1, 1]} : vector<34x16xf32> to vector<16x16xf32>
    %37 = arith.truncf %36 : vector<16x16xf32> to vector<16x16xbf16>
    %c1_36 = arith.constant 1 : index
    %c0_37 = arith.constant 0 : index
    %c0_38 = arith.constant 0 : index
    %38 = vector.load %arg5[%c1_36, %c0_37, %c0_38] : memref<2x16x16xbf16, #tpu.memory_space<vmem>>, vector<1x16x16xbf16>
    %39 = vector.shape_cast %38 : vector<1x16x16xbf16> to vector<16x16xbf16>
    %40 = vector.shape_cast %37 : vector<16x16xbf16> to vector<1x16x16xbf16>
    tpu.vector_store %arg5[%c1_36, %c0_37, %c0_38], %40 {strides = array<i32>} : memref<2x16x16xbf16, #tpu.memory_space<vmem>>, vector<1x16x16xbf16>,
    return
  }
  func.func @transform_0(%arg0: i32, %arg1: i32) -> (i32, i32, i32) {
    %c0_i32 = arith.constant 0 : i32
    %c0_i32_0 = arith.constant 0 : i32
    %c0_i32_1 = arith.constant 0 : i32
    return %arg1, %c0_i32, %c0_i32_0 : i32, i32, i32
  }
  func.func @transform_1(%arg0: i32, %arg1: i32) -> (i32, i32, i32) {
    %c0_i32 = arith.constant 0 : i32
    %c0_i32_0 = arith.constant 0 : i32
    %c0_i32_1 = arith.constant 0 : i32
    return %c0_i32, %c0_i32_0, %arg0 : i32, i32, i32
  }
  func.func @transform_2(%arg0: i32, %arg1: i32) -> (i32, i32) {
    %c0_i32 = arith.constant 0 : i32
    %c0_i32_0 = arith.constant 0 : i32
    return %c0_i32, %arg0 : i32, i32
  }
  func.func @transform_3(%arg0: i32, %arg1: i32) -> (i32, i32, i32) {
    %c0_i32 = arith.constant 0 : i32
    %c0_i32_0 = arith.constant 0 : i32
    return %arg1, %c0_i32, %arg0 : i32, i32, i32
  }
}

module attributes {stable_mosaic.version = 11 : i64} {
  func.func @kernel(%arg0: i32, %arg1: memref<2x8x16xbf16, #tpu.memory_space<vmem>>, %arg2: memref<3x16x16xbf16, #tpu.memory_space<vmem>>, %arg3: memref<1x16xf32, #tpu.memory_space<vmem>>, %arg4: memref<16x16xbf16, #tpu.memory_space<vmem>>, %arg5: memref<1x16xf32, #tpu.memory_space<vmem>>, %arg6: memref<2x8x16xbf16, #tpu.memory_space<vmem>>, %arg7: memref<28x16xbf16, #tpu.memory_space<vmem>>, %arg8: memref<16x16xf32, #tpu.memory_space<vmem>>) attributes {dimension_semantics = [#tpu.dimension_semantics<parallel>], iteration_bounds = array<i64: 1>, scalar_prefetch = 0 : i64, scratch_operands = 2 : i64, tpu.core_type = #tpu.core_type<tc>, window_params = [{transform_indices = @transform_0, window_bounds = array<i64: 2, 8, 16>}, {pipeline_mode = #tpu.pipeline_mode<synchronous>, transform_indices = @transform_1, window_bounds = array<i64: 3, 16, 16>}, {pipeline_mode = #tpu.pipeline_mode<synchronous>, transform_indices = @transform_2, window_bounds = array<i64: 1, 16>}, {pipeline_mode = #tpu.pipeline_mode<synchronous>, transform_indices = @transform_3, window_bounds = array<i64: 16, 16>}, {pipeline_mode = #tpu.pipeline_mode<synchronous>, transform_indices = @transform_4, window_bounds = array<i64: 1, 16>}, {transform_indices = @transform_5, window_bounds = array<i64: 2, 8, 16>}]} {
    %cst = arith.constant 0.000000e+00 : bf16
    %0 = vector.broadcast %cst : bf16 to vector<3x16xbf16>
    %c0 = arith.constant 0 : index
    %c0_0 = arith.constant 0 : index
    %1 = vector.load %arg7[%c0, %c0_0] : memref<28x16xbf16, #tpu.memory_space<vmem>>, vector<3x16xbf16>
    tpu.vector_store %arg7[%c0, %c0_0], %0 {strides = array<i32>} : memref<28x16xbf16, #tpu.memory_space<vmem>>, vector<3x16xbf16>,
    %c11 = arith.constant 11 : index
    %c0_1 = arith.constant 0 : index
    %2 = vector.load %arg7[%c11, %c0_1] : memref<28x16xbf16, #tpu.memory_space<vmem>>, vector<3x16xbf16>
    tpu.vector_store %arg7[%c11, %c0_1], %0 {strides = array<i32>} : memref<28x16xbf16, #tpu.memory_space<vmem>>, vector<3x16xbf16>,
    %c0_2 = arith.constant 0 : index
    %c0_3 = arith.constant 0 : index
    %c0_4 = arith.constant 0 : index
    %3 = vector.load %arg1[%c0_2, %c0_3, %c0_4] : memref<2x8x16xbf16, #tpu.memory_space<vmem>>, vector<1x8x16xbf16>
    %4 = vector.shape_cast %3 : vector<1x8x16xbf16> to vector<8x16xbf16>
    %5 = arith.extf %4 : vector<8x16xbf16> to vector<8x16xf32>
    %cst_5 = arith.constant 0.000000e+00 : f32
    %6 = vector.broadcast %cst_5 : f32 to vector<8x16xf32>
    %7 = arith.maximumf %5, %6 : vector<8x16xf32>
    %8 = arith.truncf %7 : vector<8x16xf32> to vector<8x16xbf16>
    %c3 = arith.constant 3 : index
    %c0_6 = arith.constant 0 : index
    %9 = vector.load %arg7[%c3, %c0_6] : memref<28x16xbf16, #tpu.memory_space<vmem>>, vector<8x16xbf16>
    tpu.vector_store %arg7[%c3, %c0_6], %8 {strides = array<i32>} : memref<28x16xbf16, #tpu.memory_space<vmem>>, vector<8x16xbf16>,
    %cst_7 = arith.constant 0.000000e+00 : bf16
    %10 = vector.broadcast %cst_7 : bf16 to vector<3x16xbf16>
    %c14 = arith.constant 14 : index
    %c0_8 = arith.constant 0 : index
    %11 = vector.load %arg7[%c14, %c0_8] : memref<28x16xbf16, #tpu.memory_space<vmem>>, vector<3x16xbf16>
    tpu.vector_store %arg7[%c14, %c0_8], %10 {strides = array<i32>} : memref<28x16xbf16, #tpu.memory_space<vmem>>, vector<3x16xbf16>,
    %c25 = arith.constant 25 : index
    %c0_9 = arith.constant 0 : index
    %12 = vector.load %arg7[%c25, %c0_9] : memref<28x16xbf16, #tpu.memory_space<vmem>>, vector<3x16xbf16>
    tpu.vector_store %arg7[%c25, %c0_9], %10 {strides = array<i32>} : memref<28x16xbf16, #tpu.memory_space<vmem>>, vector<3x16xbf16>,
    %c1 = arith.constant 1 : index
    %c0_10 = arith.constant 0 : index
    %c0_11 = arith.constant 0 : index
    %13 = vector.load %arg1[%c1, %c0_10, %c0_11] : memref<2x8x16xbf16, #tpu.memory_space<vmem>>, vector<1x8x16xbf16>
    %14 = vector.shape_cast %13 : vector<1x8x16xbf16> to vector<8x16xbf16>
    %15 = arith.extf %14 : vector<8x16xbf16> to vector<8x16xf32>
    %cst_12 = arith.constant 0.000000e+00 : f32
    %16 = vector.broadcast %cst_12 : f32 to vector<8x16xf32>
    %17 = arith.maximumf %15, %16 : vector<8x16xf32>
    %18 = arith.truncf %17 : vector<8x16xf32> to vector<8x16xbf16>
    %c17 = arith.constant 17 : index
    %c0_13 = arith.constant 0 : index
    %19 = vector.load %arg7[%c17, %c0_13] : memref<28x16xbf16, #tpu.memory_space<vmem>>, vector<8x16xbf16>
    tpu.vector_store %arg7[%c17, %c0_13], %18 {strides = array<i32>} : memref<28x16xbf16, #tpu.memory_space<vmem>>, vector<8x16xbf16>,
    %c0_14 = arith.constant 0 : index
    %c0_15 = arith.constant 0 : index
    %20 = vector.load %arg7[%c0_14, %c0_15] : memref<28x16xbf16, #tpu.memory_space<vmem>>, vector<22x16xbf16>
    %c0_16 = arith.constant 0 : index
    %c0_17 = arith.constant 0 : index
    %c0_18 = arith.constant 0 : index
    %21 = vector.load %arg2[%c0_16, %c0_17, %c0_18] : memref<3x16x16xbf16, #tpu.memory_space<vmem>>, vector<1x16x16xbf16>
    %22 = vector.shape_cast %21 : vector<1x16x16xbf16> to vector<16x16xbf16>
    %cst_19 = arith.constant dense<0.000000e+00> : vector<22x16xf32>
    %23 = tpu.matmul %20, %22, %cst_19 {dimension_numbers = #tpu.dot_dimension_numbers<[1], [0], [0], [1], [0, 0, 1, 1], [], []>} : vector<22x16xbf16>, vector<16x16xbf16>, vector<22x16xf32> -> vector<22x16xf32>
    %c3_20 = arith.constant 3 : index
    %c0_21 = arith.constant 0 : index
    %24 = vector.load %arg7[%c3_20, %c0_21] : memref<28x16xbf16, #tpu.memory_space<vmem>>, vector<22x16xbf16>
    %c1_22 = arith.constant 1 : index
    %c0_23 = arith.constant 0 : index
    %c0_24 = arith.constant 0 : index
    %25 = vector.load %arg2[%c1_22, %c0_23, %c0_24] : memref<3x16x16xbf16, #tpu.memory_space<vmem>>, vector<1x16x16xbf16>
    %26 = vector.shape_cast %25 : vector<1x16x16xbf16> to vector<16x16xbf16>
    %cst_25 = arith.constant dense<0.000000e+00> : vector<22x16xf32>
    %27 = tpu.matmul %24, %26, %cst_25 {dimension_numbers = #tpu.dot_dimension_numbers<[1], [0], [0], [1], [0, 0, 1, 1], [], []>} : vector<22x16xbf16>, vector<16x16xbf16>, vector<22x16xf32> -> vector<22x16xf32>
    %28 = arith.addf %23, %27 : vector<22x16xf32>
    %c6 = arith.constant 6 : index
    %c0_26 = arith.constant 0 : index
    %29 = vector.load %arg7[%c6, %c0_26] : memref<28x16xbf16, #tpu.memory_space<vmem>>, vector<22x16xbf16>
    %c2 = arith.constant 2 : index
    %c0_27 = arith.constant 0 : index
    %c0_28 = arith.constant 0 : index
    %30 = vector.load %arg2[%c2, %c0_27, %c0_28] : memref<3x16x16xbf16, #tpu.memory_space<vmem>>, vector<1x16x16xbf16>
    %31 = vector.shape_cast %30 : vector<1x16x16xbf16> to vector<16x16xbf16>
    %cst_29 = arith.constant dense<0.000000e+00> : vector<22x16xf32>
    %32 = tpu.matmul %29, %31, %cst_29 {dimension_numbers = #tpu.dot_dimension_numbers<[1], [0], [0], [1], [0, 0, 1, 1], [], []>} : vector<22x16xbf16>, vector<16x16xbf16>, vector<22x16xf32> -> vector<22x16xf32>
    %33 = arith.addf %28, %32 : vector<22x16xf32>
    %c0_30 = arith.constant 0 : index
    %c0_31 = arith.constant 0 : index
    %34 = vector.load %arg3[%c0_30, %c0_31] : memref<1x16xf32, #tpu.memory_space<vmem>>, vector<1x16xf32>
    %35 = vector.broadcast %34 : vector<1x16xf32> to vector<22x16xf32>
    %36 = arith.addf %33, %35 : vector<22x16xf32>
    %37 = vector.extract_strided_slice %36 {offsets = [0, 0], sizes = [8, 16], strides = [1, 1]} : vector<22x16xf32> to vector<8x16xf32>
    %cst_32 = arith.constant 0.000000e+00 : f32
    %38 = vector.broadcast %cst_32 : f32 to vector<8x16xf32>
    %39 = arith.maximumf %37, %38 : vector<8x16xf32>
    %c0_33 = arith.constant 0 : index
    %c0_34 = arith.constant 0 : index
    %40 = vector.load %arg8[%c0_33, %c0_34] : memref<16x16xf32, #tpu.memory_space<vmem>>, vector<8x16xf32>
    tpu.vector_store %arg8[%c0_33, %c0_34], %39 {strides = array<i32>} : memref<16x16xf32, #tpu.memory_space<vmem>>, vector<8x16xf32>,
    %41 = vector.extract_strided_slice %36 {offsets = [14, 0], sizes = [8, 16], strides = [1, 1]} : vector<22x16xf32> to vector<8x16xf32>
    %cst_35 = arith.constant 0.000000e+00 : f32
    %42 = vector.broadcast %cst_35 : f32 to vector<8x16xf32>
    %43 = arith.maximumf %41, %42 : vector<8x16xf32>
    %c8 = arith.constant 8 : index
    %c0_36 = arith.constant 0 : index
    %44 = vector.load %arg8[%c8, %c0_36] : memref<16x16xf32, #tpu.memory_space<vmem>>, vector<8x16xf32>
    tpu.vector_store %arg8[%c8, %c0_36], %43 {strides = array<i32>} : memref<16x16xf32, #tpu.memory_space<vmem>>, vector<8x16xf32>,
    %c0_37 = arith.constant 0 : index
    %c0_38 = arith.constant 0 : index
    %45 = vector.load %arg8[%c0_37, %c0_38] : memref<16x16xf32, #tpu.memory_space<vmem>>, vector<16x16xf32>
    %c0_39 = arith.constant 0 : index
    %c0_40 = arith.constant 0 : index
    %46 = vector.load %arg4[%c0_39, %c0_40] : memref<16x16xbf16, #tpu.memory_space<vmem>>, vector<16x16xbf16>
    %cst_41 = arith.constant dense<0.000000e+00> : vector<16x16xf32>
    %47 = tpu.matmul %45, %46, %cst_41 {dimension_numbers = #tpu.dot_dimension_numbers<[1], [0], [0], [1], [0, 0, 1, 1], [], []>} : vector<16x16xf32>, vector<16x16xbf16>, vector<16x16xf32> -> vector<16x16xf32>
    %c0_42 = arith.constant 0 : index
    %c0_43 = arith.constant 0 : index
    %48 = vector.load %arg5[%c0_42, %c0_43] : memref<1x16xf32, #tpu.memory_space<vmem>>, vector<1x16xf32>
    %49 = vector.broadcast %48 : vector<1x16xf32> to vector<16x16xf32>
    %50 = arith.addf %47, %49 : vector<16x16xf32>
    %51 = vector.extract_strided_slice %50 {offsets = [0, 0], sizes = [8, 16], strides = [1, 1]} : vector<16x16xf32> to vector<8x16xf32>
    %c0_44 = arith.constant 0 : index
    %c0_45 = arith.constant 0 : index
    %c0_46 = arith.constant 0 : index
    %52 = vector.load %arg1[%c0_44, %c0_45, %c0_46] : memref<2x8x16xbf16, #tpu.memory_space<vmem>>, vector<1x8x16xbf16>
    %53 = vector.shape_cast %52 : vector<1x8x16xbf16> to vector<8x16xbf16>
    %54 = arith.extf %53 : vector<8x16xbf16> to vector<8x16xf32>
    %55 = arith.addf %51, %54 : vector<8x16xf32>
    %56 = arith.truncf %55 : vector<8x16xf32> to vector<8x16xbf16>
    %c0_47 = arith.constant 0 : index
    %c0_48 = arith.constant 0 : index
    %c0_49 = arith.constant 0 : index
    %57 = vector.load %arg6[%c0_47, %c0_48, %c0_49] : memref<2x8x16xbf16, #tpu.memory_space<vmem>>, vector<1x8x16xbf16>
    %58 = vector.shape_cast %57 : vector<1x8x16xbf16> to vector<8x16xbf16>
    %59 = vector.shape_cast %56 : vector<8x16xbf16> to vector<1x8x16xbf16>
    tpu.vector_store %arg6[%c0_47, %c0_48, %c0_49], %59 {strides = array<i32>} : memref<2x8x16xbf16, #tpu.memory_space<vmem>>, vector<1x8x16xbf16>,
    %60 = vector.extract_strided_slice %50 {offsets = [8, 0], sizes = [8, 16], strides = [1, 1]} : vector<16x16xf32> to vector<8x16xf32>
    %c1_50 = arith.constant 1 : index
    %c0_51 = arith.constant 0 : index
    %c0_52 = arith.constant 0 : index
    %61 = vector.load %arg1[%c1_50, %c0_51, %c0_52] : memref<2x8x16xbf16, #tpu.memory_space<vmem>>, vector<1x8x16xbf16>
    %62 = vector.shape_cast %61 : vector<1x8x16xbf16> to vector<8x16xbf16>
    %63 = arith.extf %62 : vector<8x16xbf16> to vector<8x16xf32>
    %64 = arith.addf %60, %63 : vector<8x16xf32>
    %65 = arith.truncf %64 : vector<8x16xf32> to vector<8x16xbf16>
    %c1_53 = arith.constant 1 : index
    %c0_54 = arith.constant 0 : index
    %c0_55 = arith.constant 0 : index
    %66 = vector.load %arg6[%c1_53, %c0_54, %c0_55] : memref<2x8x16xbf16, #tpu.memory_space<vmem>>, vector<1x8x16xbf16>
    %67 = vector.shape_cast %66 : vector<1x8x16xbf16> to vector<8x16xbf16>
    %68 = vector.shape_cast %65 : vector<8x16xbf16> to vector<1x8x16xbf16>
    tpu.vector_store %arg6[%c1_53, %c0_54, %c0_55], %68 {strides = array<i32>} : memref<2x8x16xbf16, #tpu.memory_space<vmem>>, vector<1x8x16xbf16>,
    return
  }
  func.func @transform_0(%arg0: i32) -> (i32, i32, i32) {
    %c0_i32 = arith.constant 0 : i32
    %c0_i32_0 = arith.constant 0 : i32
    %c0_i32_1 = arith.constant 0 : i32
    return %arg0, %c0_i32, %c0_i32_0 : i32, i32, i32
  }
  func.func @transform_1(%arg0: i32) -> (i32, i32, i32) {
    %c0_i32 = arith.constant 0 : i32
    %c0_i32_0 = arith.constant 0 : i32
    %c0_i32_1 = arith.constant 0 : i32
    %c0_i32_2 = arith.constant 0 : i32
    return %c0_i32, %c0_i32_0, %c0_i32_1 : i32, i32, i32
  }
  func.func @transform_2(%arg0: i32) -> (i32, i32) {
    %c0_i32 = arith.constant 0 : i32
    %c0_i32_0 = arith.constant 0 : i32
    %c0_i32_1 = arith.constant 0 : i32
    return %c0_i32, %c0_i32_0 : i32, i32
  }
  func.func @transform_3(%arg0: i32) -> (i32, i32) {
    %c0_i32 = arith.constant 0 : i32
    %c0_i32_0 = arith.constant 0 : i32
    %c0_i32_1 = arith.constant 0 : i32
    return %c0_i32, %c0_i32_0 : i32, i32
  }
  func.func @transform_4(%arg0: i32) -> (i32, i32) {
    %c0_i32 = arith.constant 0 : i32
    %c0_i32_0 = arith.constant 0 : i32
    %c0_i32_1 = arith.constant 0 : i32
    return %c0_i32, %c0_i32_0 : i32, i32
  }
  func.func @transform_5(%arg0: i32) -> (i32, i32, i32) {
    %c0_i32 = arith.constant 0 : i32
    %c0_i32_0 = arith.constant 0 : i32
    %c0_i32_1 = arith.constant 0 : i32
    return %arg0, %c0_i32, %c0_i32_0 : i32, i32, i32
  }
}

module attributes {stable_mosaic.version = 11 : i64} {
  func.func @kernel(%arg0: i32, %arg1: i32, %arg2: memref<2x8x32xbf16, #tpu.memory_space<vmem>>, %arg3: memref<3x32x16xbf16, #tpu.memory_space<vmem>>, %arg4: memref<1x16xf32, #tpu.memory_space<vmem>>, %arg5: memref<2x8x16xbf16, #tpu.memory_space<vmem>>, %arg6: memref<20x32xbf16, #tpu.memory_space<vmem>>) attributes {dimension_semantics = [#tpu.dimension_semantics<parallel>, #tpu.dimension_semantics<parallel>], iteration_bounds = array<i64: 1, 1>, scalar_prefetch = 0 : i64, scratch_operands = 1 : i64, tpu.core_type = #tpu.core_type<tc>, window_params = [{transform_indices = @transform_0, window_bounds = array<i64: 2, 8, 32>}, {transform_indices = @transform_1, window_bounds = array<i64: 3, 32, 16>}, {transform_indices = @transform_2, window_bounds = array<i64: 1, 16>}, {transform_indices = @transform_3, window_bounds = array<i64: 2, 8, 16>}]} {
    %cst = arith.constant 0.000000e+00 : bf16
    %0 = vector.broadcast %cst : bf16 to vector<1x32xbf16>
    %c0 = arith.constant 0 : index
    %c0_0 = arith.constant 0 : index
    %1 = vector.load %arg6[%c0, %c0_0] : memref<20x32xbf16, #tpu.memory_space<vmem>>, vector<1x32xbf16>
    tpu.vector_store %arg6[%c0, %c0_0], %0 {strides = array<i32>} : memref<20x32xbf16, #tpu.memory_space<vmem>>, vector<1x32xbf16>,
    %c9 = arith.constant 9 : index
    %c0_1 = arith.constant 0 : index
    %2 = vector.load %arg6[%c9, %c0_1] : memref<20x32xbf16, #tpu.memory_space<vmem>>, vector<1x32xbf16>
    tpu.vector_store %arg6[%c9, %c0_1], %0 {strides = array<i32>} : memref<20x32xbf16, #tpu.memory_space<vmem>>, vector<1x32xbf16>,
    %c0_2 = arith.constant 0 : index
    %c0_3 = arith.constant 0 : index
    %c0_4 = arith.constant 0 : index
    %3 = vector.load %arg2[%c0_2, %c0_3, %c0_4] : memref<2x8x32xbf16, #tpu.memory_space<vmem>>, vector<1x8x32xbf16>
    %4 = vector.shape_cast %3 : vector<1x8x32xbf16> to vector<8x32xbf16>
    %c1 = arith.constant 1 : index
    %c0_5 = arith.constant 0 : index
    %5 = vector.load %arg6[%c1, %c0_5] : memref<20x32xbf16, #tpu.memory_space<vmem>>, vector<8x32xbf16>
    tpu.vector_store %arg6[%c1, %c0_5], %4 {strides = array<i32>} : memref<20x32xbf16, #tpu.memory_space<vmem>>, vector<8x32xbf16>,
    %cst_6 = arith.constant 0.000000e+00 : bf16
    %6 = vector.broadcast %cst_6 : bf16 to vector<1x32xbf16>
    %c10 = arith.constant 10 : index
    %c0_7 = arith.constant 0 : index
    %7 = vector.load %arg6[%c10, %c0_7] : memref<20x32xbf16, #tpu.memory_space<vmem>>, vector<1x32xbf16>
    tpu.vector_store %arg6[%c10, %c0_7], %6 {strides = array<i32>} : memref<20x32xbf16, #tpu.memory_space<vmem>>, vector<1x32xbf16>,
    %c19 = arith.constant 19 : index
    %c0_8 = arith.constant 0 : index
    %8 = vector.load %arg6[%c19, %c0_8] : memref<20x32xbf16, #tpu.memory_space<vmem>>, vector<1x32xbf16>
    tpu.vector_store %arg6[%c19, %c0_8], %6 {strides = array<i32>} : memref<20x32xbf16, #tpu.memory_space<vmem>>, vector<1x32xbf16>,
    %c1_9 = arith.constant 1 : index
    %c0_10 = arith.constant 0 : index
    %c0_11 = arith.constant 0 : index
    %9 = vector.load %arg2[%c1_9, %c0_10, %c0_11] : memref<2x8x32xbf16, #tpu.memory_space<vmem>>, vector<1x8x32xbf16>
    %10 = vector.shape_cast %9 : vector<1x8x32xbf16> to vector<8x32xbf16>
    %c11 = arith.constant 11 : index
    %c0_12 = arith.constant 0 : index
    %11 = vector.load %arg6[%c11, %c0_12] : memref<20x32xbf16, #tpu.memory_space<vmem>>, vector<8x32xbf16>
    tpu.vector_store %arg6[%c11, %c0_12], %10 {strides = array<i32>} : memref<20x32xbf16, #tpu.memory_space<vmem>>, vector<8x32xbf16>,
    %c0_13 = arith.constant 0 : index
    %c0_14 = arith.constant 0 : index
    %12 = vector.load %arg6[%c0_13, %c0_14] : memref<20x32xbf16, #tpu.memory_space<vmem>>, vector<18x32xbf16>
    %c0_15 = arith.constant 0 : index
    %c0_16 = arith.constant 0 : index
    %c0_17 = arith.constant 0 : index
    %13 = vector.load %arg3[%c0_15, %c0_16, %c0_17] : memref<3x32x16xbf16, #tpu.memory_space<vmem>>, vector<1x32x16xbf16>
    %14 = vector.shape_cast %13 : vector<1x32x16xbf16> to vector<32x16xbf16>
    %cst_18 = arith.constant dense<0.000000e+00> : vector<18x16xf32>
    %15 = tpu.matmul %12, %14, %cst_18 {dimension_numbers = #tpu.dot_dimension_numbers<[1], [0], [0], [1], [0, 0, 1, 1], [], []>} : vector<18x32xbf16>, vector<32x16xbf16>, vector<18x16xf32> -> vector<18x16xf32>
    %c1_19 = arith.constant 1 : index
    %c0_20 = arith.constant 0 : index
    %16 = vector.load %arg6[%c1_19, %c0_20] : memref<20x32xbf16, #tpu.memory_space<vmem>>, vector<18x32xbf16>
    %c1_21 = arith.constant 1 : index
    %c0_22 = arith.constant 0 : index
    %c0_23 = arith.constant 0 : index
    %17 = vector.load %arg3[%c1_21, %c0_22, %c0_23] : memref<3x32x16xbf16, #tpu.memory_space<vmem>>, vector<1x32x16xbf16>
    %18 = vector.shape_cast %17 : vector<1x32x16xbf16> to vector<32x16xbf16>
    %cst_24 = arith.constant dense<0.000000e+00> : vector<18x16xf32>
    %19 = tpu.matmul %16, %18, %cst_24 {dimension_numbers = #tpu.dot_dimension_numbers<[1], [0], [0], [1], [0, 0, 1, 1], [], []>} : vector<18x32xbf16>, vector<32x16xbf16>, vector<18x16xf32> -> vector<18x16xf32>
    %20 = arith.addf %15, %19 : vector<18x16xf32>
    %c2 = arith.constant 2 : index
    %c0_25 = arith.constant 0 : index
    %21 = vector.load %arg6[%c2, %c0_25] : memref<20x32xbf16, #tpu.memory_space<vmem>>, vector<18x32xbf16>
    %c2_26 = arith.constant 2 : index
    %c0_27 = arith.constant 0 : index
    %c0_28 = arith.constant 0 : index
    %22 = vector.load %arg3[%c2_26, %c0_27, %c0_28] : memref<3x32x16xbf16, #tpu.memory_space<vmem>>, vector<1x32x16xbf16>
    %23 = vector.shape_cast %22 : vector<1x32x16xbf16> to vector<32x16xbf16>
    %cst_29 = arith.constant dense<0.000000e+00> : vector<18x16xf32>
    %24 = tpu.matmul %21, %23, %cst_29 {dimension_numbers = #tpu.dot_dimension_numbers<[1], [0], [0], [1], [0, 0, 1, 1], [], []>} : vector<18x32xbf16>, vector<32x16xbf16>, vector<18x16xf32> -> vector<18x16xf32>
    %25 = arith.addf %20, %24 : vector<18x16xf32>
    %c0_30 = arith.constant 0 : index
    %c0_31 = arith.constant 0 : index
    %26 = vector.load %arg4[%c0_30, %c0_31] : memref<1x16xf32, #tpu.memory_space<vmem>>, vector<1x16xf32>
    %27 = vector.broadcast %26 : vector<1x16xf32> to vector<18x16xf32>
    %28 = arith.addf %25, %27 : vector<18x16xf32>
    %29 = vector.extract_strided_slice %28 {offsets = [0, 0], sizes = [8, 16], strides = [1, 1]} : vector<18x16xf32> to vector<8x16xf32>
    %30 = arith.truncf %29 : vector<8x16xf32> to vector<8x16xbf16>
    %c0_32 = arith.constant 0 : index
    %c0_33 = arith.constant 0 : index
    %c0_34 = arith.constant 0 : index
    %31 = vector.load %arg5[%c0_32, %c0_33, %c0_34] : memref<2x8x16xbf16, #tpu.memory_space<vmem>>, vector<1x8x16xbf16>
    %32 = vector.shape_cast %31 : vector<1x8x16xbf16> to vector<8x16xbf16>
    %33 = vector.shape_cast %30 : vector<8x16xbf16> to vector<1x8x16xbf16>
    tpu.vector_store %arg5[%c0_32, %c0_33, %c0_34], %33 {strides = array<i32>} : memref<2x8x16xbf16, #tpu.memory_space<vmem>>, vector<1x8x16xbf16>,
    %34 = vector.extract_strided_slice %28 {offsets = [10, 0], sizes = [8, 16], strides = [1, 1]} : vector<18x16xf32> to vector<8x16xf32>
    %35 = arith.truncf %34 : vector<8x16xf32> to vector<8x16xbf16>
    %c1_35 = arith.constant 1 : index
    %c0_36 = arith.constant 0 : index
    %c0_37 = arith.constant 0 : index
    %36 = vector.load %arg5[%c1_35, %c0_36, %c0_37] : memref<2x8x16xbf16, #tpu.memory_space<vmem>>, vector<1x8x16xbf16>
    %37 = vector.shape_cast %36 : vector<1x8x16xbf16> to vector<8x16xbf16>
    %38 = vector.shape_cast %35 : vector<8x16xbf16> to vector<1x8x16xbf16>
    tpu.vector_store %arg5[%c1_35, %c0_36, %c0_37], %38 {strides = array<i32>} : memref<2x8x16xbf16, #tpu.memory_space<vmem>>, vector<1x8x16xbf16>,
    return
  }
  func.func @transform_0(%arg0: i32, %arg1: i32) -> (i32, i32, i32) {
    %c0_i32 = arith.constant 0 : i32
    %c0_i32_0 = arith.constant 0 : i32
    %c0_i32_1 = arith.constant 0 : i32
    return %arg1, %c0_i32, %c0_i32_0 : i32, i32, i32
  }
  func.func @transform_1(%arg0: i32, %arg1: i32) -> (i32, i32, i32) {
    %c0_i32 = arith.constant 0 : i32
    %c0_i32_0 = arith.constant 0 : i32
    %c0_i32_1 = arith.constant 0 : i32
    return %c0_i32, %c0_i32_0, %arg0 : i32, i32, i32
  }
  func.func @transform_2(%arg0: i32, %arg1: i32) -> (i32, i32) {
    %c0_i32 = arith.constant 0 : i32
    %c0_i32_0 = arith.constant 0 : i32
    return %c0_i32, %arg0 : i32, i32
  }
  func.func @transform_3(%arg0: i32, %arg1: i32) -> (i32, i32, i32) {
    %c0_i32 = arith.constant 0 : i32
    %c0_i32_0 = arith.constant 0 : i32
    return %arg1, %c0_i32, %arg0 : i32, i32, i32
  }
}

module attributes {stable_mosaic.version = 11 : i64} {
  func.func @kernel(%arg0: i32, %arg1: memref<2x8x16xbf16, #tpu.memory_space<vmem>>, %arg2: memref<3x16x16xbf16, #tpu.memory_space<vmem>>, %arg3: memref<1x16xf32, #tpu.memory_space<vmem>>, %arg4: memref<16x16xbf16, #tpu.memory_space<vmem>>, %arg5: memref<1x16xf32, #tpu.memory_space<vmem>>, %arg6: memref<2x8x16xbf16, #tpu.memory_space<vmem>>, %arg7: memref<20x16xbf16, #tpu.memory_space<vmem>>, %arg8: memref<16x16xf32, #tpu.memory_space<vmem>>) attributes {dimension_semantics = [#tpu.dimension_semantics<parallel>], iteration_bounds = array<i64: 1>, scalar_prefetch = 0 : i64, scratch_operands = 2 : i64, tpu.core_type = #tpu.core_type<tc>, window_params = [{transform_indices = @transform_0, window_bounds = array<i64: 2, 8, 16>}, {pipeline_mode = #tpu.pipeline_mode<synchronous>, transform_indices = @transform_1, window_bounds = array<i64: 3, 16, 16>}, {pipeline_mode = #tpu.pipeline_mode<synchronous>, transform_indices = @transform_2, window_bounds = array<i64: 1, 16>}, {pipeline_mode = #tpu.pipeline_mode<synchronous>, transform_indices = @transform_3, window_bounds = array<i64: 16, 16>}, {pipeline_mode = #tpu.pipeline_mode<synchronous>, transform_indices = @transform_4, window_bounds = array<i64: 1, 16>}, {transform_indices = @transform_5, window_bounds = array<i64: 2, 8, 16>}]} {
    %cst = arith.constant 0.000000e+00 : bf16
    %0 = vector.broadcast %cst : bf16 to vector<1x16xbf16>
    %c0 = arith.constant 0 : index
    %c0_0 = arith.constant 0 : index
    %1 = vector.load %arg7[%c0, %c0_0] : memref<20x16xbf16, #tpu.memory_space<vmem>>, vector<1x16xbf16>
    tpu.vector_store %arg7[%c0, %c0_0], %0 {strides = array<i32>} : memref<20x16xbf16, #tpu.memory_space<vmem>>, vector<1x16xbf16>,
    %c9 = arith.constant 9 : index
    %c0_1 = arith.constant 0 : index
    %2 = vector.load %arg7[%c9, %c0_1] : memref<20x16xbf16, #tpu.memory_space<vmem>>, vector<1x16xbf16>
    tpu.vector_store %arg7[%c9, %c0_1], %0 {strides = array<i32>} : memref<20x16xbf16, #tpu.memory_space<vmem>>, vector<1x16xbf16>,
    %c0_2 = arith.constant 0 : index
    %c0_3 = arith.constant 0 : index
    %c0_4 = arith.constant 0 : index
    %3 = vector.load %arg1[%c0_2, %c0_3, %c0_4] : memref<2x8x16xbf16, #tpu.memory_space<vmem>>, vector<1x8x16xbf16>
    %4 = vector.shape_cast %3 : vector<1x8x16xbf16> to vector<8x16xbf16>
    %5 = arith.extf %4 : vector<8x16xbf16> to vector<8x16xf32>
    %cst_5 = arith.constant 0.000000e+00 : f32
    %6 = vector.broadcast %cst_5 : f32 to vector<8x16xf32>
    %7 = arith.maximumf %5, %6 : vector<8x16xf32>
    %8 = arith.truncf %7 : vector<8x16xf32> to vector<8x16xbf16>
    %c1 = arith.constant 1 : index
    %c0_6 = arith.constant 0 : index
    %9 = vector.load %arg7[%c1, %c0_6] : memref<20x16xbf16, #tpu.memory_space<vmem>>, vector<8x16xbf16>
    tpu.vector_store %arg7[%c1, %c0_6], %8 {strides = array<i32>} : memref<20x16xbf16, #tpu.memory_space<vmem>>, vector<8x16xbf16>,
    %cst_7 = arith.constant 0.000000e+00 : bf16
    %10 = vector.broadcast %cst_7 : bf16 to vector<1x16xbf16>
    %c10 = arith.constant 10 : index
    %c0_8 = arith.constant 0 : index
    %11 = vector.load %arg7[%c10, %c0_8] : memref<20x16xbf16, #tpu.memory_space<vmem>>, vector<1x16xbf16>
    tpu.vector_store %arg7[%c10, %c0_8], %10 {strides = array<i32>} : memref<20x16xbf16, #tpu.memory_space<vmem>>, vector<1x16xbf16>,
    %c19 = arith.constant 19 : index
    %c0_9 = arith.constant 0 : index
    %12 = vector.load %arg7[%c19, %c0_9] : memref<20x16xbf16, #tpu.memory_space<vmem>>, vector<1x16xbf16>
    tpu.vector_store %arg7[%c19, %c0_9], %10 {strides = array<i32>} : memref<20x16xbf16, #tpu.memory_space<vmem>>, vector<1x16xbf16>,
    %c1_10 = arith.constant 1 : index
    %c0_11 = arith.constant 0 : index
    %c0_12 = arith.constant 0 : index
    %13 = vector.load %arg1[%c1_10, %c0_11, %c0_12] : memref<2x8x16xbf16, #tpu.memory_space<vmem>>, vector<1x8x16xbf16>
    %14 = vector.shape_cast %13 : vector<1x8x16xbf16> to vector<8x16xbf16>
    %15 = arith.extf %14 : vector<8x16xbf16> to vector<8x16xf32>
    %cst_13 = arith.constant 0.000000e+00 : f32
    %16 = vector.broadcast %cst_13 : f32 to vector<8x16xf32>
    %17 = arith.maximumf %15, %16 : vector<8x16xf32>
    %18 = arith.truncf %17 : vector<8x16xf32> to vector<8x16xbf16>
    %c11 = arith.constant 11 : index
    %c0_14 = arith.constant 0 : index
    %19 = vector.load %arg7[%c11, %c0_14] : memref<20x16xbf16, #tpu.memory_space<vmem>>, vector<8x16xbf16>
    tpu.vector_store %arg7[%c11, %c0_14], %18 {strides = array<i32>} : memref<20x16xbf16, #tpu.memory_space<vmem>>, vector<8x16xbf16>,
    %c0_15 = arith.constant 0 : index
    %c0_16 = arith.constant 0 : index
    %20 = vector.load %arg7[%c0_15, %c0_16] : memref<20x16xbf16, #tpu.memory_space<vmem>>, vector<18x16xbf16>
    %c0_17 = arith.constant 0 : index
    %c0_18 = arith.constant 0 : index
    %c0_19 = arith.constant 0 : index
    %21 = vector.load %arg2[%c0_17, %c0_18, %c0_19] : memref<3x16x16xbf16, #tpu.memory_space<vmem>>, vector<1x16x16xbf16>
    %22 = vector.shape_cast %21 : vector<1x16x16xbf16> to vector<16x16xbf16>
    %cst_20 = arith.constant dense<0.000000e+00> : vector<18x16xf32>
    %23 = tpu.matmul %20, %22, %cst_20 {dimension_numbers = #tpu.dot_dimension_numbers<[1], [0], [0], [1], [0, 0, 1, 1], [], []>} : vector<18x16xbf16>, vector<16x16xbf16>, vector<18x16xf32> -> vector<18x16xf32>
    %c1_21 = arith.constant 1 : index
    %c0_22 = arith.constant 0 : index
    %24 = vector.load %arg7[%c1_21, %c0_22] : memref<20x16xbf16, #tpu.memory_space<vmem>>, vector<18x16xbf16>
    %c1_23 = arith.constant 1 : index
    %c0_24 = arith.constant 0 : index
    %c0_25 = arith.constant 0 : index
    %25 = vector.load %arg2[%c1_23, %c0_24, %c0_25] : memref<3x16x16xbf16, #tpu.memory_space<vmem>>, vector<1x16x16xbf16>
    %26 = vector.shape_cast %25 : vector<1x16x16xbf16> to vector<16x16xbf16>
    %cst_26 = arith.constant dense<0.000000e+00> : vector<18x16xf32>
    %27 = tpu.matmul %24, %26, %cst_26 {dimension_numbers = #tpu.dot_dimension_numbers<[1], [0], [0], [1], [0, 0, 1, 1], [], []>} : vector<18x16xbf16>, vector<16x16xbf16>, vector<18x16xf32> -> vector<18x16xf32>
    %28 = arith.addf %23, %27 : vector<18x16xf32>
    %c2 = arith.constant 2 : index
    %c0_27 = arith.constant 0 : index
    %29 = vector.load %arg7[%c2, %c0_27] : memref<20x16xbf16, #tpu.memory_space<vmem>>, vector<18x16xbf16>
    %c2_28 = arith.constant 2 : index
    %c0_29 = arith.constant 0 : index
    %c0_30 = arith.constant 0 : index
    %30 = vector.load %arg2[%c2_28, %c0_29, %c0_30] : memref<3x16x16xbf16, #tpu.memory_space<vmem>>, vector<1x16x16xbf16>
    %31 = vector.shape_cast %30 : vector<1x16x16xbf16> to vector<16x16xbf16>
    %cst_31 = arith.constant dense<0.000000e+00> : vector<18x16xf32>
    %32 = tpu.matmul %29, %31, %cst_31 {dimension_numbers = #tpu.dot_dimension_numbers<[1], [0], [0], [1], [0, 0, 1, 1], [], []>} : vector<18x16xbf16>, vector<16x16xbf16>, vector<18x16xf32> -> vector<18x16xf32>
    %33 = arith.addf %28, %32 : vector<18x16xf32>
    %c0_32 = arith.constant 0 : index
    %c0_33 = arith.constant 0 : index
    %34 = vector.load %arg3[%c0_32, %c0_33] : memref<1x16xf32, #tpu.memory_space<vmem>>, vector<1x16xf32>
    %35 = vector.broadcast %34 : vector<1x16xf32> to vector<18x16xf32>
    %36 = arith.addf %33, %35 : vector<18x16xf32>
    %37 = vector.extract_strided_slice %36 {offsets = [0, 0], sizes = [8, 16], strides = [1, 1]} : vector<18x16xf32> to vector<8x16xf32>
    %cst_34 = arith.constant 0.000000e+00 : f32
    %38 = vector.broadcast %cst_34 : f32 to vector<8x16xf32>
    %39 = arith.maximumf %37, %38 : vector<8x16xf32>
    %c0_35 = arith.constant 0 : index
    %c0_36 = arith.constant 0 : index
    %40 = vector.load %arg8[%c0_35, %c0_36] : memref<16x16xf32, #tpu.memory_space<vmem>>, vector<8x16xf32>
    tpu.vector_store %arg8[%c0_35, %c0_36], %39 {strides = array<i32>} : memref<16x16xf32, #tpu.memory_space<vmem>>, vector<8x16xf32>,
    %41 = vector.extract_strided_slice %36 {offsets = [10, 0], sizes = [8, 16], strides = [1, 1]} : vector<18x16xf32> to vector<8x16xf32>
    %cst_37 = arith.constant 0.000000e+00 : f32
    %42 = vector.broadcast %cst_37 : f32 to vector<8x16xf32>
    %43 = arith.maximumf %41, %42 : vector<8x16xf32>
    %c8 = arith.constant 8 : index
    %c0_38 = arith.constant 0 : index
    %44 = vector.load %arg8[%c8, %c0_38] : memref<16x16xf32, #tpu.memory_space<vmem>>, vector<8x16xf32>
    tpu.vector_store %arg8[%c8, %c0_38], %43 {strides = array<i32>} : memref<16x16xf32, #tpu.memory_space<vmem>>, vector<8x16xf32>,
    %c0_39 = arith.constant 0 : index
    %c0_40 = arith.constant 0 : index
    %45 = vector.load %arg8[%c0_39, %c0_40] : memref<16x16xf32, #tpu.memory_space<vmem>>, vector<16x16xf32>
    %c0_41 = arith.constant 0 : index
    %c0_42 = arith.constant 0 : index
    %46 = vector.load %arg4[%c0_41, %c0_42] : memref<16x16xbf16, #tpu.memory_space<vmem>>, vector<16x16xbf16>
    %cst_43 = arith.constant dense<0.000000e+00> : vector<16x16xf32>
    %47 = tpu.matmul %45, %46, %cst_43 {dimension_numbers = #tpu.dot_dimension_numbers<[1], [0], [0], [1], [0, 0, 1, 1], [], []>} : vector<16x16xf32>, vector<16x16xbf16>, vector<16x16xf32> -> vector<16x16xf32>
    %c0_44 = arith.constant 0 : index
    %c0_45 = arith.constant 0 : index
    %48 = vector.load %arg5[%c0_44, %c0_45] : memref<1x16xf32, #tpu.memory_space<vmem>>, vector<1x16xf32>
    %49 = vector.broadcast %48 : vector<1x16xf32> to vector<16x16xf32>
    %50 = arith.addf %47, %49 : vector<16x16xf32>
    %51 = vector.extract_strided_slice %50 {offsets = [0, 0], sizes = [8, 16], strides = [1, 1]} : vector<16x16xf32> to vector<8x16xf32>
    %c0_46 = arith.constant 0 : index
    %c0_47 = arith.constant 0 : index
    %c0_48 = arith.constant 0 : index
    %52 = vector.load %arg1[%c0_46, %c0_47, %c0_48] : memref<2x8x16xbf16, #tpu.memory_space<vmem>>, vector<1x8x16xbf16>
    %53 = vector.shape_cast %52 : vector<1x8x16xbf16> to vector<8x16xbf16>
    %54 = arith.extf %53 : vector<8x16xbf16> to vector<8x16xf32>
    %55 = arith.addf %51, %54 : vector<8x16xf32>
    %56 = arith.truncf %55 : vector<8x16xf32> to vector<8x16xbf16>
    %c0_49 = arith.constant 0 : index
    %c0_50 = arith.constant 0 : index
    %c0_51 = arith.constant 0 : index
    %57 = vector.load %arg6[%c0_49, %c0_50, %c0_51] : memref<2x8x16xbf16, #tpu.memory_space<vmem>>, vector<1x8x16xbf16>
    %58 = vector.shape_cast %57 : vector<1x8x16xbf16> to vector<8x16xbf16>
    %59 = vector.shape_cast %56 : vector<8x16xbf16> to vector<1x8x16xbf16>
    tpu.vector_store %arg6[%c0_49, %c0_50, %c0_51], %59 {strides = array<i32>} : memref<2x8x16xbf16, #tpu.memory_space<vmem>>, vector<1x8x16xbf16>,
    %60 = vector.extract_strided_slice %50 {offsets = [8, 0], sizes = [8, 16], strides = [1, 1]} : vector<16x16xf32> to vector<8x16xf32>
    %c1_52 = arith.constant 1 : index
    %c0_53 = arith.constant 0 : index
    %c0_54 = arith.constant 0 : index
    %61 = vector.load %arg1[%c1_52, %c0_53, %c0_54] : memref<2x8x16xbf16, #tpu.memory_space<vmem>>, vector<1x8x16xbf16>
    %62 = vector.shape_cast %61 : vector<1x8x16xbf16> to vector<8x16xbf16>
    %63 = arith.extf %62 : vector<8x16xbf16> to vector<8x16xf32>
    %64 = arith.addf %60, %63 : vector<8x16xf32>
    %65 = arith.truncf %64 : vector<8x16xf32> to vector<8x16xbf16>
    %c1_55 = arith.constant 1 : index
    %c0_56 = arith.constant 0 : index
    %c0_57 = arith.constant 0 : index
    %66 = vector.load %arg6[%c1_55, %c0_56, %c0_57] : memref<2x8x16xbf16, #tpu.memory_space<vmem>>, vector<1x8x16xbf16>
    %67 = vector.shape_cast %66 : vector<1x8x16xbf16> to vector<8x16xbf16>
    %68 = vector.shape_cast %65 : vector<8x16xbf16> to vector<1x8x16xbf16>
    tpu.vector_store %arg6[%c1_55, %c0_56, %c0_57], %68 {strides = array<i32>} : memref<2x8x16xbf16, #tpu.memory_space<vmem>>, vector<1x8x16xbf16>,
    return
  }
  func.func @transform_0(%arg0: i32) -> (i32, i32, i32) {
    %c0_i32 = arith.constant 0 : i32
    %c0_i32_0 = arith.constant 0 : i32
    %c0_i32_1 = arith.constant 0 : i32
    return %arg0, %c0_i32, %c0_i32_0 : i32, i32, i32
  }
  func.func @transform_1(%arg0: i32) -> (i32, i32, i32) {
    %c0_i32 = arith.constant 0 : i32
    %c0_i32_0 = arith.constant 0 : i32
    %c0_i32_1 = arith.constant 0 : i32
    %c0_i32_2 = arith.constant 0 : i32
    return %c0_i32, %c0_i32_0, %c0_i32_1 : i32, i32, i32
  }
  func.func @transform_2(%arg0: i32) -> (i32, i32) {
    %c0_i32 = arith.constant 0 : i32
    %c0_i32_0 = arith.constant 0 : i32
    %c0_i32_1 = arith.constant 0 : i32
    return %c0_i32, %c0_i32_0 : i32, i32
  }
  func.func @transform_3(%arg0: i32) -> (i32, i32) {
    %c0_i32 = arith.constant 0 : i32
    %c0_i32_0 = arith.constant 0 : i32
    %c0_i32_1 = arith.constant 0 : i32
    return %c0_i32, %c0_i32_0 : i32, i32
  }
  func.func @transform_4(%arg0: i32) -> (i32, i32) {
    %c0_i32 = arith.constant 0 : i32
    %c0_i32_0 = arith.constant 0 : i32
    %c0_i32_1 = arith.constant 0 : i32
    return %c0_i32, %c0_i32_0 : i32, i32
  }
  func.func @transform_5(%arg0: i32) -> (i32, i32, i32) {
    %c0_i32 = arith.constant 0 : i32
    %c0_i32_0 = arith.constant 0 : i32
    %c0_i32_1 = arith.constant 0 : i32
    return %arg0, %c0_i32, %c0_i32_0 : i32, i32, i32
  }
}

module attributes {stable_mosaic.version = 11 : i64} {
  func.func @kernel(%arg0: i32, %arg1: i32, %arg2: memref<2x4x32xbf16, #tpu.memory_space<vmem>>, %arg3: memref<3x32x16xbf16, #tpu.memory_space<vmem>>, %arg4: memref<1x16xf32, #tpu.memory_space<vmem>>, %arg5: memref<2x4x16xbf16, #tpu.memory_space<vmem>>, %arg6: memref<12x32xbf16, #tpu.memory_space<vmem>>) attributes {dimension_semantics = [#tpu.dimension_semantics<parallel>, #tpu.dimension_semantics<parallel>], iteration_bounds = array<i64: 1, 1>, scalar_prefetch = 0 : i64, scratch_operands = 1 : i64, tpu.core_type = #tpu.core_type<tc>, window_params = [{transform_indices = @transform_0, window_bounds = array<i64: 2, 4, 32>}, {transform_indices = @transform_1, window_bounds = array<i64: 3, 32, 16>}, {transform_indices = @transform_2, window_bounds = array<i64: 1, 16>}, {transform_indices = @transform_3, window_bounds = array<i64: 2, 4, 16>}]} {
    %cst = arith.constant 0.000000e+00 : bf16
    %0 = vector.broadcast %cst : bf16 to vector<1x32xbf16>
    %c0 = arith.constant 0 : index
    %c0_0 = arith.constant 0 : index
    %1 = vector.load %arg6[%c0, %c0_0] : memref<12x32xbf16, #tpu.memory_space<vmem>>, vector<1x32xbf16>
    tpu.vector_store %arg6[%c0, %c0_0], %0 {strides = array<i32>} : memref<12x32xbf16, #tpu.memory_space<vmem>>, vector<1x32xbf16>,
    %c5 = arith.constant 5 : index
    %c0_1 = arith.constant 0 : index
    %2 = vector.load %arg6[%c5, %c0_1] : memref<12x32xbf16, #tpu.memory_space<vmem>>, vector<1x32xbf16>
    tpu.vector_store %arg6[%c5, %c0_1], %0 {strides = array<i32>} : memref<12x32xbf16, #tpu.memory_space<vmem>>, vector<1x32xbf16>,
    %c0_2 = arith.constant 0 : index
    %c0_3 = arith.constant 0 : index
    %c0_4 = arith.constant 0 : index
    %3 = vector.load %arg2[%c0_2, %c0_3, %c0_4] : memref<2x4x32xbf16, #tpu.memory_space<vmem>>, vector<1x4x32xbf16>
    %4 = vector.shape_cast %3 : vector<1x4x32xbf16> to vector<4x32xbf16>
    %c1 = arith.constant 1 : index
    %c0_5 = arith.constant 0 : index
    %5 = vector.load %arg6[%c1, %c0_5] : memref<12x32xbf16, #tpu.memory_space<vmem>>, vector<4x32xbf16>
    tpu.vector_store %arg6[%c1, %c0_5], %4 {strides = array<i32>} : memref<12x32xbf16, #tpu.memory_space<vmem>>, vector<4x32xbf16>,
    %cst_6 = arith.constant 0.000000e+00 : bf16
    %6 = vector.broadcast %cst_6 : bf16 to vector<1x32xbf16>
    %c6 = arith.constant 6 : index
    %c0_7 = arith.constant 0 : index
    %7 = vector.load %arg6[%c6, %c0_7] : memref<12x32xbf16, #tpu.memory_space<vmem>>, vector<1x32xbf16>
    tpu.vector_store %arg6[%c6, %c0_7], %6 {strides = array<i32>} : memref<12x32xbf16, #tpu.memory_space<vmem>>, vector<1x32xbf16>,
    %c11 = arith.constant 11 : index
    %c0_8 = arith.constant 0 : index
    %8 = vector.load %arg6[%c11, %c0_8] : memref<12x32xbf16, #tpu.memory_space<vmem>>, vector<1x32xbf16>
    tpu.vector_store %arg6[%c11, %c0_8], %6 {strides = array<i32>} : memref<12x32xbf16, #tpu.memory_space<vmem>>, vector<1x32xbf16>,
    %c1_9 = arith.constant 1 : index
    %c0_10 = arith.constant 0 : index
    %c0_11 = arith.constant 0 : index
    %9 = vector.load %arg2[%c1_9, %c0_10, %c0_11] : memref<2x4x32xbf16, #tpu.memory_space<vmem>>, vector<1x4x32xbf16>
    %10 = vector.shape_cast %9 : vector<1x4x32xbf16> to vector<4x32xbf16>
    %c7 = arith.constant 7 : index
    %c0_12 = arith.constant 0 : index
    %11 = vector.load %arg6[%c7, %c0_12] : memref<12x32xbf16, #tpu.memory_space<vmem>>, vector<4x32xbf16>
    tpu.vector_store %arg6[%c7, %c0_12], %10 {strides = array<i32>} : memref<12x32xbf16, #tpu.memory_space<vmem>>, vector<4x32xbf16>,
    %c0_13 = arith.constant 0 : index
    %c0_14 = arith.constant 0 : index
    %12 = vector.load %arg6[%c0_13, %c0_14] : memref<12x32xbf16, #tpu.memory_space<vmem>>, vector<10x32xbf16>
    %c0_15 = arith.constant 0 : index
    %c0_16 = arith.constant 0 : index
    %c0_17 = arith.constant 0 : index
    %13 = vector.load %arg3[%c0_15, %c0_16, %c0_17] : memref<3x32x16xbf16, #tpu.memory_space<vmem>>, vector<1x32x16xbf16>
    %14 = vector.shape_cast %13 : vector<1x32x16xbf16> to vector<32x16xbf16>
    %cst_18 = arith.constant dense<0.000000e+00> : vector<10x16xf32>
    %15 = tpu.matmul %12, %14, %cst_18 {dimension_numbers = #tpu.dot_dimension_numbers<[1], [0], [0], [1], [0, 0, 1, 1], [], []>} : vector<10x32xbf16>, vector<32x16xbf16>, vector<10x16xf32> -> vector<10x16xf32>
    %c1_19 = arith.constant 1 : index
    %c0_20 = arith.constant 0 : index
    %16 = vector.load %arg6[%c1_19, %c0_20] : memref<12x32xbf16, #tpu.memory_space<vmem>>, vector<10x32xbf16>
    %c1_21 = arith.constant 1 : index
    %c0_22 = arith.constant 0 : index
    %c0_23 = arith.constant 0 : index
    %17 = vector.load %arg3[%c1_21, %c0_22, %c0_23] : memref<3x32x16xbf16, #tpu.memory_space<vmem>>, vector<1x32x16xbf16>
    %18 = vector.shape_cast %17 : vector<1x32x16xbf16> to vector<32x16xbf16>
    %cst_24 = arith.constant dense<0.000000e+00> : vector<10x16xf32>
    %19 = tpu.matmul %16, %18, %cst_24 {dimension_numbers = #tpu.dot_dimension_numbers<[1], [0], [0], [1], [0, 0, 1, 1], [], []>} : vector<10x32xbf16>, vector<32x16xbf16>, vector<10x16xf32> -> vector<10x16xf32>
    %20 = arith.addf %15, %19 : vector<10x16xf32>
    %c2 = arith.constant 2 : index
    %c0_25 = arith.constant 0 : index
    %21 = vector.load %arg6[%c2, %c0_25] : memref<12x32xbf16, #tpu.memory_space<vmem>>, vector<10x32xbf16>
    %c2_26 = arith.constant 2 : index
    %c0_27 = arith.constant 0 : index
    %c0_28 = arith.constant 0 : index
    %22 = vector.load %arg3[%c2_26, %c0_27, %c0_28] : memref<3x32x16xbf16, #tpu.memory_space<vmem>>, vector<1x32x16xbf16>
    %23 = vector.shape_cast %22 : vector<1x32x16xbf16> to vector<32x16xbf16>
    %cst_29 = arith.constant dense<0.000000e+00> : vector<10x16xf32>
    %24 = tpu.matmul %21, %23, %cst_29 {dimension_numbers = #tpu.dot_dimension_numbers<[1], [0], [0], [1], [0, 0, 1, 1], [], []>} : vector<10x32xbf16>, vector<32x16xbf16>, vector<10x16xf32> -> vector<10x16xf32>
    %25 = arith.addf %20, %24 : vector<10x16xf32>
    %c0_30 = arith.constant 0 : index
    %c0_31 = arith.constant 0 : index
    %26 = vector.load %arg4[%c0_30, %c0_31] : memref<1x16xf32, #tpu.memory_space<vmem>>, vector<1x16xf32>
    %27 = vector.broadcast %26 : vector<1x16xf32> to vector<10x16xf32>
    %28 = arith.addf %25, %27 : vector<10x16xf32>
    %29 = vector.extract_strided_slice %28 {offsets = [0, 0], sizes = [4, 16], strides = [1, 1]} : vector<10x16xf32> to vector<4x16xf32>
    %30 = arith.truncf %29 : vector<4x16xf32> to vector<4x16xbf16>
    %c0_32 = arith.constant 0 : index
    %c0_33 = arith.constant 0 : index
    %c0_34 = arith.constant 0 : index
    %31 = vector.load %arg5[%c0_32, %c0_33, %c0_34] : memref<2x4x16xbf16, #tpu.memory_space<vmem>>, vector<1x4x16xbf16>
    %32 = vector.shape_cast %31 : vector<1x4x16xbf16> to vector<4x16xbf16>
    %33 = vector.shape_cast %30 : vector<4x16xbf16> to vector<1x4x16xbf16>
    tpu.vector_store %arg5[%c0_32, %c0_33, %c0_34], %33 {strides = array<i32>} : memref<2x4x16xbf16, #tpu.memory_space<vmem>>, vector<1x4x16xbf16>,
    %34 = vector.extract_strided_slice %28 {offsets = [6, 0], sizes = [4, 16], strides = [1, 1]} : vector<10x16xf32> to vector<4x16xf32>
    %35 = arith.truncf %34 : vector<4x16xf32> to vector<4x16xbf16>
    %c1_35 = arith.constant 1 : index
    %c0_36 = arith.constant 0 : index
    %c0_37 = arith.constant 0 : index
    %36 = vector.load %arg5[%c1_35, %c0_36, %c0_37] : memref<2x4x16xbf16, #tpu.memory_space<vmem>>, vector<1x4x16xbf16>
    %37 = vector.shape_cast %36 : vector<1x4x16xbf16> to vector<4x16xbf16>
    %38 = vector.shape_cast %35 : vector<4x16xbf16> to vector<1x4x16xbf16>
    tpu.vector_store %arg5[%c1_35, %c0_36, %c0_37], %38 {strides = array<i32>} : memref<2x4x16xbf16, #tpu.memory_space<vmem>>, vector<1x4x16xbf16>,
    return
  }
  func.func @transform_0(%arg0: i32, %arg1: i32) -> (i32, i32, i32) {
    %c0_i32 = arith.constant 0 : i32
    %c0_i32_0 = arith.constant 0 : i32
    %c0_i32_1 = arith.constant 0 : i32
    return %arg1, %c0_i32, %c0_i32_0 : i32, i32, i32
  }
  func.func @transform_1(%arg0: i32, %arg1: i32) -> (i32, i32, i32) {
    %c0_i32 = arith.constant 0 : i32
    %c0_i32_0 = arith.constant 0 : i32
    %c0_i32_1 = arith.constant 0 : i32
    return %c0_i32, %c0_i32_0, %arg0 : i32, i32, i32
  }
  func.func @transform_2(%arg0: i32, %arg1: i32) -> (i32, i32) {
    %c0_i32 = arith.constant 0 : i32
    %c0_i32_0 = arith.constant 0 : i32
    return %c0_i32, %arg0 : i32, i32
  }
  func.func @transform_3(%arg0: i32, %arg1: i32) -> (i32, i32, i32) {
    %c0_i32 = arith.constant 0 : i32
    %c0_i32_0 = arith.constant 0 : i32
    return %arg1, %c0_i32, %arg0 : i32, i32, i32
  }
}

module attributes {stable_mosaic.version = 11 : i64} {
  func.func @kernel(%arg0: i32, %arg1: memref<2x4x16xbf16, #tpu.memory_space<vmem>>, %arg2: memref<3x16x16xbf16, #tpu.memory_space<vmem>>, %arg3: memref<1x16xf32, #tpu.memory_space<vmem>>, %arg4: memref<16x16xbf16, #tpu.memory_space<vmem>>, %arg5: memref<1x16xf32, #tpu.memory_space<vmem>>, %arg6: memref<2x4x16xbf16, #tpu.memory_space<vmem>>, %arg7: memref<20x16xbf16, #tpu.memory_space<vmem>>, %arg8: memref<8x16xf32, #tpu.memory_space<vmem>>) attributes {dimension_semantics = [#tpu.dimension_semantics<parallel>], iteration_bounds = array<i64: 1>, scalar_prefetch = 0 : i64, scratch_operands = 2 : i64, tpu.core_type = #tpu.core_type<tc>, window_params = [{transform_indices = @transform_0, window_bounds = array<i64: 2, 4, 16>}, {pipeline_mode = #tpu.pipeline_mode<synchronous>, transform_indices = @transform_1, window_bounds = array<i64: 3, 16, 16>}, {pipeline_mode = #tpu.pipeline_mode<synchronous>, transform_indices = @transform_2, window_bounds = array<i64: 1, 16>}, {pipeline_mode = #tpu.pipeline_mode<synchronous>, transform_indices = @transform_3, window_bounds = array<i64: 16, 16>}, {pipeline_mode = #tpu.pipeline_mode<synchronous>, transform_indices = @transform_4, window_bounds = array<i64: 1, 16>}, {transform_indices = @transform_5, window_bounds = array<i64: 2, 4, 16>}]} {
    %cst = arith.constant 0.000000e+00 : bf16
    %0 = vector.broadcast %cst : bf16 to vector<3x16xbf16>
    %c0 = arith.constant 0 : index
    %c0_0 = arith.constant 0 : index
    %1 = vector.load %arg7[%c0, %c0_0] : memref<20x16xbf16, #tpu.memory_space<vmem>>, vector<3x16xbf16>
    tpu.vector_store %arg7[%c0, %c0_0], %0 {strides = array<i32>} : memref<20x16xbf16, #tpu.memory_space<vmem>>, vector<3x16xbf16>,
    %c7 = arith.constant 7 : index
    %c0_1 = arith.constant 0 : index
    %2 = vector.load %arg7[%c7, %c0_1] : memref<20x16xbf16, #tpu.memory_space<vmem>>, vector<3x16xbf16>
    tpu.vector_store %arg7[%c7, %c0_1], %0 {strides = array<i32>} : memref<20x16xbf16, #tpu.memory_space<vmem>>, vector<3x16xbf16>,
    %c0_2 = arith.constant 0 : index
    %c0_3 = arith.constant 0 : index
    %c0_4 = arith.constant 0 : index
    %3 = vector.load %arg1[%c0_2, %c0_3, %c0_4] : memref<2x4x16xbf16, #tpu.memory_space<vmem>>, vector<1x4x16xbf16>
    %4 = vector.shape_cast %3 : vector<1x4x16xbf16> to vector<4x16xbf16>
    %5 = arith.extf %4 : vector<4x16xbf16> to vector<4x16xf32>
    %cst_5 = arith.constant 0.000000e+00 : f32
    %6 = vector.broadcast %cst_5 : f32 to vector<4x16xf32>
    %7 = arith.maximumf %5, %6 : vector<4x16xf32>
    %8 = arith.truncf %7 : vector<4x16xf32> to vector<4x16xbf16>
    %c3 = arith.constant 3 : index
    %c0_6 = arith.constant 0 : index
    %9 = vector.load %arg7[%c3, %c0_6] : memref<20x16xbf16, #tpu.memory_space<vmem>>, vector<4x16xbf16>
    tpu.vector_store %arg7[%c3, %c0_6], %8 {strides = array<i32>} : memref<20x16xbf16, #tpu.memory_space<vmem>>, vector<4x16xbf16>,
    %cst_7 = arith.constant 0.000000e+00 : bf16
    %10 = vector.broadcast %cst_7 : bf16 to vector<3x16xbf16>
    %c10 = arith.constant 10 : index
    %c0_8 = arith.constant 0 : index
    %11 = vector.load %arg7[%c10, %c0_8] : memref<20x16xbf16, #tpu.memory_space<vmem>>, vector<3x16xbf16>
    tpu.vector_store %arg7[%c10, %c0_8], %10 {strides = array<i32>} : memref<20x16xbf16, #tpu.memory_space<vmem>>, vector<3x16xbf16>,
    %c17 = arith.constant 17 : index
    %c0_9 = arith.constant 0 : index
    %12 = vector.load %arg7[%c17, %c0_9] : memref<20x16xbf16, #tpu.memory_space<vmem>>, vector<3x16xbf16>
    tpu.vector_store %arg7[%c17, %c0_9], %10 {strides = array<i32>} : memref<20x16xbf16, #tpu.memory_space<vmem>>, vector<3x16xbf16>,
    %c1 = arith.constant 1 : index
    %c0_10 = arith.constant 0 : index
    %c0_11 = arith.constant 0 : index
    %13 = vector.load %arg1[%c1, %c0_10, %c0_11] : memref<2x4x16xbf16, #tpu.memory_space<vmem>>, vector<1x4x16xbf16>
    %14 = vector.shape_cast %13 : vector<1x4x16xbf16> to vector<4x16xbf16>
    %15 = arith.extf %14 : vector<4x16xbf16> to vector<4x16xf32>
    %cst_12 = arith.constant 0.000000e+00 : f32
    %16 = vector.broadcast %cst_12 : f32 to vector<4x16xf32>
    %17 = arith.maximumf %15, %16 : vector<4x16xf32>
    %18 = arith.truncf %17 : vector<4x16xf32> to vector<4x16xbf16>
    %c13 = arith.constant 13 : index
    %c0_13 = arith.constant 0 : index
    %19 = vector.load %arg7[%c13, %c0_13] : memref<20x16xbf16, #tpu.memory_space<vmem>>, vector<4x16xbf16>
    tpu.vector_store %arg7[%c13, %c0_13], %18 {strides = array<i32>} : memref<20x16xbf16, #tpu.memory_space<vmem>>, vector<4x16xbf16>,
    %c0_14 = arith.constant 0 : index
    %c0_15 = arith.constant 0 : index
    %20 = vector.load %arg7[%c0_14, %c0_15] : memref<20x16xbf16, #tpu.memory_space<vmem>>, vector<14x16xbf16>
    %c0_16 = arith.constant 0 : index
    %c0_17 = arith.constant 0 : index
    %c0_18 = arith.constant 0 : index
    %21 = vector.load %arg2[%c0_16, %c0_17, %c0_18] : memref<3x16x16xbf16, #tpu.memory_space<vmem>>, vector<1x16x16xbf16>
    %22 = vector.shape_cast %21 : vector<1x16x16xbf16> to vector<16x16xbf16>
    %cst_19 = arith.constant dense<0.000000e+00> : vector<14x16xf32>
    %23 = tpu.matmul %20, %22, %cst_19 {dimension_numbers = #tpu.dot_dimension_numbers<[1], [0], [0], [1], [0, 0, 1, 1], [], []>} : vector<14x16xbf16>, vector<16x16xbf16>, vector<14x16xf32> -> vector<14x16xf32>
    %c3_20 = arith.constant 3 : index
    %c0_21 = arith.constant 0 : index
    %24 = vector.load %arg7[%c3_20, %c0_21] : memref<20x16xbf16, #tpu.memory_space<vmem>>, vector<14x16xbf16>
    %c1_22 = arith.constant 1 : index
    %c0_23 = arith.constant 0 : index
    %c0_24 = arith.constant 0 : index
    %25 = vector.load %arg2[%c1_22, %c0_23, %c0_24] : memref<3x16x16xbf16, #tpu.memory_space<vmem>>, vector<1x16x16xbf16>
    %26 = vector.shape_cast %25 : vector<1x16x16xbf16> to vector<16x16xbf16>
    %cst_25 = arith.constant dense<0.000000e+00> : vector<14x16xf32>
    %27 = tpu.matmul %24, %26, %cst_25 {dimension_numbers = #tpu.dot_dimension_numbers<[1], [0], [0], [1], [0, 0, 1, 1], [], []>} : vector<14x16xbf16>, vector<16x16xbf16>, vector<14x16xf32> -> vector<14x16xf32>
    %28 = arith.addf %23, %27 : vector<14x16xf32>
    %c6 = arith.constant 6 : index
    %c0_26 = arith.constant 0 : index
    %29 = vector.load %arg7[%c6, %c0_26] : memref<20x16xbf16, #tpu.memory_space<vmem>>, vector<14x16xbf16>
    %c2 = arith.constant 2 : index
    %c0_27 = arith.constant 0 : index
    %c0_28 = arith.constant 0 : index
    %30 = vector.load %arg2[%c2, %c0_27, %c0_28] : memref<3x16x16xbf16, #tpu.memory_space<vmem>>, vector<1x16x16xbf16>
    %31 = vector.shape_cast %30 : vector<1x16x16xbf16> to vector<16x16xbf16>
    %cst_29 = arith.constant dense<0.000000e+00> : vector<14x16xf32>
    %32 = tpu.matmul %29, %31, %cst_29 {dimension_numbers = #tpu.dot_dimension_numbers<[1], [0], [0], [1], [0, 0, 1, 1], [], []>} : vector<14x16xbf16>, vector<16x16xbf16>, vector<14x16xf32> -> vector<14x16xf32>
    %33 = arith.addf %28, %32 : vector<14x16xf32>
    %c0_30 = arith.constant 0 : index
    %c0_31 = arith.constant 0 : index
    %34 = vector.load %arg3[%c0_30, %c0_31] : memref<1x16xf32, #tpu.memory_space<vmem>>, vector<1x16xf32>
    %35 = vector.broadcast %34 : vector<1x16xf32> to vector<14x16xf32>
    %36 = arith.addf %33, %35 : vector<14x16xf32>
    %37 = vector.extract_strided_slice %36 {offsets = [0, 0], sizes = [4, 16], strides = [1, 1]} : vector<14x16xf32> to vector<4x16xf32>
    %cst_32 = arith.constant 0.000000e+00 : f32
    %38 = vector.broadcast %cst_32 : f32 to vector<4x16xf32>
    %39 = arith.maximumf %37, %38 : vector<4x16xf32>
    %c0_33 = arith.constant 0 : index
    %c0_34 = arith.constant 0 : index
    %40 = vector.load %arg8[%c0_33, %c0_34] : memref<8x16xf32, #tpu.memory_space<vmem>>, vector<4x16xf32>
    tpu.vector_store %arg8[%c0_33, %c0_34], %39 {strides = array<i32>} : memref<8x16xf32, #tpu.memory_space<vmem>>, vector<4x16xf32>,
    %41 = vector.extract_strided_slice %36 {offsets = [10, 0], sizes = [4, 16], strides = [1, 1]} : vector<14x16xf32> to vector<4x16xf32>
    %cst_35 = arith.constant 0.000000e+00 : f32
    %42 = vector.broadcast %cst_35 : f32 to vector<4x16xf32>
    %43 = arith.maximumf %41, %42 : vector<4x16xf32>
    %c4 = arith.constant 4 : index
    %c0_36 = arith.constant 0 : index
    %44 = vector.load %arg8[%c4, %c0_36] : memref<8x16xf32, #tpu.memory_space<vmem>>, vector<4x16xf32>
    tpu.vector_store %arg8[%c4, %c0_36], %43 {strides = array<i32>} : memref<8x16xf32, #tpu.memory_space<vmem>>, vector<4x16xf32>,
    %c0_37 = arith.constant 0 : index
    %c0_38 = arith.constant 0 : index
    %45 = vector.load %arg8[%c0_37, %c0_38] : memref<8x16xf32, #tpu.memory_space<vmem>>, vector<8x16xf32>
    %c0_39 = arith.constant 0 : index
    %c0_40 = arith.constant 0 : index
    %46 = vector.load %arg4[%c0_39, %c0_40] : memref<16x16xbf16, #tpu.memory_space<vmem>>, vector<16x16xbf16>
    %cst_41 = arith.constant dense<0.000000e+00> : vector<8x16xf32>
    %47 = tpu.matmul %45, %46, %cst_41 {dimension_numbers = #tpu.dot_dimension_numbers<[1], [0], [0], [1], [0, 0, 1, 1], [], []>} : vector<8x16xf32>, vector<16x16xbf16>, vector<8x16xf32> -> vector<8x16xf32>
    %c0_42 = arith.constant 0 : index
    %c0_43 = arith.constant 0 : index
    %48 = vector.load %arg5[%c0_42, %c0_43] : memref<1x16xf32, #tpu.memory_space<vmem>>, vector<1x16xf32>
    %49 = vector.broadcast %48 : vector<1x16xf32> to vector<8x16xf32>
    %50 = arith.addf %47, %49 : vector<8x16xf32>
    %51 = vector.extract_strided_slice %50 {offsets = [0, 0], sizes = [4, 16], strides = [1, 1]} : vector<8x16xf32> to vector<4x16xf32>
    %c0_44 = arith.constant 0 : index
    %c0_45 = arith.constant 0 : index
    %c0_46 = arith.constant 0 : index
    %52 = vector.load %arg1[%c0_44, %c0_45, %c0_46] : memref<2x4x16xbf16, #tpu.memory_space<vmem>>, vector<1x4x16xbf16>
    %53 = vector.shape_cast %52 : vector<1x4x16xbf16> to vector<4x16xbf16>
    %54 = arith.extf %53 : vector<4x16xbf16> to vector<4x16xf32>
    %55 = arith.addf %51, %54 : vector<4x16xf32>
    %56 = arith.truncf %55 : vector<4x16xf32> to vector<4x16xbf16>
    %c0_47 = arith.constant 0 : index
    %c0_48 = arith.constant 0 : index
    %c0_49 = arith.constant 0 : index
    %57 = vector.load %arg6[%c0_47, %c0_48, %c0_49] : memref<2x4x16xbf16, #tpu.memory_space<vmem>>, vector<1x4x16xbf16>
    %58 = vector.shape_cast %57 : vector<1x4x16xbf16> to vector<4x16xbf16>
    %59 = vector.shape_cast %56 : vector<4x16xbf16> to vector<1x4x16xbf16>
    tpu.vector_store %arg6[%c0_47, %c0_48, %c0_49], %59 {strides = array<i32>} : memref<2x4x16xbf16, #tpu.memory_space<vmem>>, vector<1x4x16xbf16>,
    %60 = vector.extract_strided_slice %50 {offsets = [4, 0], sizes = [4, 16], strides = [1, 1]} : vector<8x16xf32> to vector<4x16xf32>
    %c1_50 = arith.constant 1 : index
    %c0_51 = arith.constant 0 : index
    %c0_52 = arith.constant 0 : index
    %61 = vector.load %arg1[%c1_50, %c0_51, %c0_52] : memref<2x4x16xbf16, #tpu.memory_space<vmem>>, vector<1x4x16xbf16>
    %62 = vector.shape_cast %61 : vector<1x4x16xbf16> to vector<4x16xbf16>
    %63 = arith.extf %62 : vector<4x16xbf16> to vector<4x16xf32>
    %64 = arith.addf %60, %63 : vector<4x16xf32>
    %65 = arith.truncf %64 : vector<4x16xf32> to vector<4x16xbf16>
    %c1_53 = arith.constant 1 : index
    %c0_54 = arith.constant 0 : index
    %c0_55 = arith.constant 0 : index
    %66 = vector.load %arg6[%c1_53, %c0_54, %c0_55] : memref<2x4x16xbf16, #tpu.memory_space<vmem>>, vector<1x4x16xbf16>
    %67 = vector.shape_cast %66 : vector<1x4x16xbf16> to vector<4x16xbf16>
    %68 = vector.shape_cast %65 : vector<4x16xbf16> to vector<1x4x16xbf16>
    tpu.vector_store %arg6[%c1_53, %c0_54, %c0_55], %68 {strides = array<i32>} : memref<2x4x16xbf16, #tpu.memory_space<vmem>>, vector<1x4x16xbf16>,
    return
  }
  func.func @transform_0(%arg0: i32) -> (i32, i32, i32) {
    %c0_i32 = arith.constant 0 : i32
    %c0_i32_0 = arith.constant 0 : i32
    %c0_i32_1 = arith.constant 0 : i32
    return %arg0, %c0_i32, %c0_i32_0 : i32, i32, i32
  }
  func.func @transform_1(%arg0: i32) -> (i32, i32, i32) {
    %c0_i32 = arith.constant 0 : i32
    %c0_i32_0 = arith.constant 0 : i32
    %c0_i32_1 = arith.constant 0 : i32
    %c0_i32_2 = arith.constant 0 : i32
    return %c0_i32, %c0_i32_0, %c0_i32_1 : i32, i32, i32
  }
  func.func @transform_2(%arg0: i32) -> (i32, i32) {
    %c0_i32 = arith.constant 0 : i32
    %c0_i32_0 = arith.constant 0 : i32
    %c0_i32_1 = arith.constant 0 : i32
    return %c0_i32, %c0_i32_0 : i32, i32
  }
  func.func @transform_3(%arg0: i32) -> (i32, i32) {
    %c0_i32 = arith.constant 0 : i32
    %c0_i32_0 = arith.constant 0 : i32
    %c0_i32_1 = arith.constant 0 : i32
    return %c0_i32, %c0_i32_0 : i32, i32
  }
  func.func @transform_4(%arg0: i32) -> (i32, i32) {
    %c0_i32 = arith.constant 0 : i32
    %c0_i32_0 = arith.constant 0 : i32
    %c0_i32_1 = arith.constant 0 : i32
    return %c0_i32, %c0_i32_0 : i32, i32
  }
  func.func @transform_5(%arg0: i32) -> (i32, i32, i32) {
    %c0_i32 = arith.constant 0 : i32
    %c0_i32_0 = arith.constant 0 : i32
    %c0_i32_1 = arith.constant 0 : i32
    return %arg0, %c0_i32, %c0_i32_0 : i32, i32, i32
  }
}

module attributes {stable_mosaic.version = 11 : i64} {
  func.func @kernel(%arg0: i32, %arg1: memref<2x4x16xbf16, #tpu.memory_space<vmem>>, %arg2: memref<3x16x16xbf16, #tpu.memory_space<vmem>>, %arg3: memref<1x16xf32, #tpu.memory_space<vmem>>, %arg4: memref<16x16xbf16, #tpu.memory_space<vmem>>, %arg5: memref<1x16xf32, #tpu.memory_space<vmem>>, %arg6: memref<2x4x16xbf16, #tpu.memory_space<vmem>>, %arg7: memref<44x16xbf16, #tpu.memory_space<vmem>>, %arg8: memref<8x16xf32, #tpu.memory_space<vmem>>) attributes {dimension_semantics = [#tpu.dimension_semantics<parallel>], iteration_bounds = array<i64: 1>, scalar_prefetch = 0 : i64, scratch_operands = 2 : i64, tpu.core_type = #tpu.core_type<tc>, window_params = [{transform_indices = @transform_0, window_bounds = array<i64: 2, 4, 16>}, {pipeline_mode = #tpu.pipeline_mode<synchronous>, transform_indices = @transform_1, window_bounds = array<i64: 3, 16, 16>}, {pipeline_mode = #tpu.pipeline_mode<synchronous>, transform_indices = @transform_2, window_bounds = array<i64: 1, 16>}, {pipeline_mode = #tpu.pipeline_mode<synchronous>, transform_indices = @transform_3, window_bounds = array<i64: 16, 16>}, {pipeline_mode = #tpu.pipeline_mode<synchronous>, transform_indices = @transform_4, window_bounds = array<i64: 1, 16>}, {transform_indices = @transform_5, window_bounds = array<i64: 2, 4, 16>}]} {
    %cst = arith.constant 0.000000e+00 : bf16
    %0 = vector.broadcast %cst : bf16 to vector<9x16xbf16>
    %c0 = arith.constant 0 : index
    %c0_0 = arith.constant 0 : index
    %1 = vector.load %arg7[%c0, %c0_0] : memref<44x16xbf16, #tpu.memory_space<vmem>>, vector<9x16xbf16>
    tpu.vector_store %arg7[%c0, %c0_0], %0 {strides = array<i32>} : memref<44x16xbf16, #tpu.memory_space<vmem>>, vector<9x16xbf16>,
    %c13 = arith.constant 13 : index
    %c0_1 = arith.constant 0 : index
    %2 = vector.load %arg7[%c13, %c0_1] : memref<44x16xbf16, #tpu.memory_space<vmem>>, vector<9x16xbf16>
    tpu.vector_store %arg7[%c13, %c0_1], %0 {strides = array<i32>} : memref<44x16xbf16, #tpu.memory_space<vmem>>, vector<9x16xbf16>,
    %c0_2 = arith.constant 0 : index
    %c0_3 = arith.constant 0 : index
    %c0_4 = arith.constant 0 : index
    %3 = vector.load %arg1[%c0_2, %c0_3, %c0_4] : memref<2x4x16xbf16, #tpu.memory_space<vmem>>, vector<1x4x16xbf16>
    %4 = vector.shape_cast %3 : vector<1x4x16xbf16> to vector<4x16xbf16>
    %5 = arith.extf %4 : vector<4x16xbf16> to vector<4x16xf32>
    %cst_5 = arith.constant 0.000000e+00 : f32
    %6 = vector.broadcast %cst_5 : f32 to vector<4x16xf32>
    %7 = arith.maximumf %5, %6 : vector<4x16xf32>
    %8 = arith.truncf %7 : vector<4x16xf32> to vector<4x16xbf16>
    %c9 = arith.constant 9 : index
    %c0_6 = arith.constant 0 : index
    %9 = vector.load %arg7[%c9, %c0_6] : memref<44x16xbf16, #tpu.memory_space<vmem>>, vector<4x16xbf16>
    tpu.vector_store %arg7[%c9, %c0_6], %8 {strides = array<i32>} : memref<44x16xbf16, #tpu.memory_space<vmem>>, vector<4x16xbf16>,
    %cst_7 = arith.constant 0.000000e+00 : bf16
    %10 = vector.broadcast %cst_7 : bf16 to vector<9x16xbf16>
    %c22 = arith.constant 22 : index
    %c0_8 = arith.constant 0 : index
    %11 = vector.load %arg7[%c22, %c0_8] : memref<44x16xbf16, #tpu.memory_space<vmem>>, vector<9x16xbf16>
    tpu.vector_store %arg7[%c22, %c0_8], %10 {strides = array<i32>} : memref<44x16xbf16, #tpu.memory_space<vmem>>, vector<9x16xbf16>,
    %c35 = arith.constant 35 : index
    %c0_9 = arith.constant 0 : index
    %12 = vector.load %arg7[%c35, %c0_9] : memref<44x16xbf16, #tpu.memory_space<vmem>>, vector<9x16xbf16>
    tpu.vector_store %arg7[%c35, %c0_9], %10 {strides = array<i32>} : memref<44x16xbf16, #tpu.memory_space<vmem>>, vector<9x16xbf16>,
    %c1 = arith.constant 1 : index
    %c0_10 = arith.constant 0 : index
    %c0_11 = arith.constant 0 : index
    %13 = vector.load %arg1[%c1, %c0_10, %c0_11] : memref<2x4x16xbf16, #tpu.memory_space<vmem>>, vector<1x4x16xbf16>
    %14 = vector.shape_cast %13 : vector<1x4x16xbf16> to vector<4x16xbf16>
    %15 = arith.extf %14 : vector<4x16xbf16> to vector<4x16xf32>
    %cst_12 = arith.constant 0.000000e+00 : f32
    %16 = vector.broadcast %cst_12 : f32 to vector<4x16xf32>
    %17 = arith.maximumf %15, %16 : vector<4x16xf32>
    %18 = arith.truncf %17 : vector<4x16xf32> to vector<4x16xbf16>
    %c31 = arith.constant 31 : index
    %c0_13 = arith.constant 0 : index
    %19 = vector.load %arg7[%c31, %c0_13] : memref<44x16xbf16, #tpu.memory_space<vmem>>, vector<4x16xbf16>
    tpu.vector_store %arg7[%c31, %c0_13], %18 {strides = array<i32>} : memref<44x16xbf16, #tpu.memory_space<vmem>>, vector<4x16xbf16>,
    %c0_14 = arith.constant 0 : index
    %c0_15 = arith.constant 0 : index
    %20 = vector.load %arg7[%c0_14, %c0_15] : memref<44x16xbf16, #tpu.memory_space<vmem>>, vector<26x16xbf16>
    %c0_16 = arith.constant 0 : index
    %c0_17 = arith.constant 0 : index
    %c0_18 = arith.constant 0 : index
    %21 = vector.load %arg2[%c0_16, %c0_17, %c0_18] : memref<3x16x16xbf16, #tpu.memory_space<vmem>>, vector<1x16x16xbf16>
    %22 = vector.shape_cast %21 : vector<1x16x16xbf16> to vector<16x16xbf16>
    %cst_19 = arith.constant dense<0.000000e+00> : vector<26x16xf32>
    %23 = tpu.matmul %20, %22, %cst_19 {dimension_numbers = #tpu.dot_dimension_numbers<[1], [0], [0], [1], [0, 0, 1, 1], [], []>} : vector<26x16xbf16>, vector<16x16xbf16>, vector<26x16xf32> -> vector<26x16xf32>
    %c9_20 = arith.constant 9 : index
    %c0_21 = arith.constant 0 : index
    %24 = vector.load %arg7[%c9_20, %c0_21] : memref<44x16xbf16, #tpu.memory_space<vmem>>, vector<26x16xbf16>
    %c1_22 = arith.constant 1 : index
    %c0_23 = arith.constant 0 : index
    %c0_24 = arith.constant 0 : index
    %25 = vector.load %arg2[%c1_22, %c0_23, %c0_24] : memref<3x16x16xbf16, #tpu.memory_space<vmem>>, vector<1x16x16xbf16>
    %26 = vector.shape_cast %25 : vector<1x16x16xbf16> to vector<16x16xbf16>
    %cst_25 = arith.constant dense<0.000000e+00> : vector<26x16xf32>
    %27 = tpu.matmul %24, %26, %cst_25 {dimension_numbers = #tpu.dot_dimension_numbers<[1], [0], [0], [1], [0, 0, 1, 1], [], []>} : vector<26x16xbf16>, vector<16x16xbf16>, vector<26x16xf32> -> vector<26x16xf32>
    %28 = arith.addf %23, %27 : vector<26x16xf32>
    %c18 = arith.constant 18 : index
    %c0_26 = arith.constant 0 : index
    %29 = vector.load %arg7[%c18, %c0_26] : memref<44x16xbf16, #tpu.memory_space<vmem>>, vector<26x16xbf16>
    %c2 = arith.constant 2 : index
    %c0_27 = arith.constant 0 : index
    %c0_28 = arith.constant 0 : index
    %30 = vector.load %arg2[%c2, %c0_27, %c0_28] : memref<3x16x16xbf16, #tpu.memory_space<vmem>>, vector<1x16x16xbf16>
    %31 = vector.shape_cast %30 : vector<1x16x16xbf16> to vector<16x16xbf16>
    %cst_29 = arith.constant dense<0.000000e+00> : vector<26x16xf32>
    %32 = tpu.matmul %29, %31, %cst_29 {dimension_numbers = #tpu.dot_dimension_numbers<[1], [0], [0], [1], [0, 0, 1, 1], [], []>} : vector<26x16xbf16>, vector<16x16xbf16>, vector<26x16xf32> -> vector<26x16xf32>
    %33 = arith.addf %28, %32 : vector<26x16xf32>
    %c0_30 = arith.constant 0 : index
    %c0_31 = arith.constant 0 : index
    %34 = vector.load %arg3[%c0_30, %c0_31] : memref<1x16xf32, #tpu.memory_space<vmem>>, vector<1x16xf32>
    %35 = vector.broadcast %34 : vector<1x16xf32> to vector<26x16xf32>
    %36 = arith.addf %33, %35 : vector<26x16xf32>
    %37 = vector.extract_strided_slice %36 {offsets = [0, 0], sizes = [4, 16], strides = [1, 1]} : vector<26x16xf32> to vector<4x16xf32>
    %cst_32 = arith.constant 0.000000e+00 : f32
    %38 = vector.broadcast %cst_32 : f32 to vector<4x16xf32>
    %39 = arith.maximumf %37, %38 : vector<4x16xf32>
    %c0_33 = arith.constant 0 : index
    %c0_34 = arith.constant 0 : index
    %40 = vector.load %arg8[%c0_33, %c0_34] : memref<8x16xf32, #tpu.memory_space<vmem>>, vector<4x16xf32>
    tpu.vector_store %arg8[%c0_33, %c0_34], %39 {strides = array<i32>} : memref<8x16xf32, #tpu.memory_space<vmem>>, vector<4x16xf32>,
    %41 = vector.extract_strided_slice %36 {offsets = [22, 0], sizes = [4, 16], strides = [1, 1]} : vector<26x16xf32> to vector<4x16xf32>
    %cst_35 = arith.constant 0.000000e+00 : f32
    %42 = vector.broadcast %cst_35 : f32 to vector<4x16xf32>
    %43 = arith.maximumf %41, %42 : vector<4x16xf32>
    %c4 = arith.constant 4 : index
    %c0_36 = arith.constant 0 : index
    %44 = vector.load %arg8[%c4, %c0_36] : memref<8x16xf32, #tpu.memory_space<vmem>>, vector<4x16xf32>
    tpu.vector_store %arg8[%c4, %c0_36], %43 {strides = array<i32>} : memref<8x16xf32, #tpu.memory_space<vmem>>, vector<4x16xf32>,
    %c0_37 = arith.constant 0 : index
    %c0_38 = arith.constant 0 : index
    %45 = vector.load %arg8[%c0_37, %c0_38] : memref<8x16xf32, #tpu.memory_space<vmem>>, vector<8x16xf32>
    %c0_39 = arith.constant 0 : index
    %c0_40 = arith.constant 0 : index
    %46 = vector.load %arg4[%c0_39, %c0_40] : memref<16x16xbf16, #tpu.memory_space<vmem>>, vector<16x16xbf16>
    %cst_41 = arith.constant dense<0.000000e+00> : vector<8x16xf32>
    %47 = tpu.matmul %45, %46, %cst_41 {dimension_numbers = #tpu.dot_dimension_numbers<[1], [0], [0], [1], [0, 0, 1, 1], [], []>} : vector<8x16xf32>, vector<16x16xbf16>, vector<8x16xf32> -> vector<8x16xf32>
    %c0_42 = arith.constant 0 : index
    %c0_43 = arith.constant 0 : index
    %48 = vector.load %arg5[%c0_42, %c0_43] : memref<1x16xf32, #tpu.memory_space<vmem>>, vector<1x16xf32>
    %49 = vector.broadcast %48 : vector<1x16xf32> to vector<8x16xf32>
    %50 = arith.addf %47, %49 : vector<8x16xf32>
    %51 = vector.extract_strided_slice %50 {offsets = [0, 0], sizes = [4, 16], strides = [1, 1]} : vector<8x16xf32> to vector<4x16xf32>
    %c0_44 = arith.constant 0 : index
    %c0_45 = arith.constant 0 : index
    %c0_46 = arith.constant 0 : index
    %52 = vector.load %arg1[%c0_44, %c0_45, %c0_46] : memref<2x4x16xbf16, #tpu.memory_space<vmem>>, vector<1x4x16xbf16>
    %53 = vector.shape_cast %52 : vector<1x4x16xbf16> to vector<4x16xbf16>
    %54 = arith.extf %53 : vector<4x16xbf16> to vector<4x16xf32>
    %55 = arith.addf %51, %54 : vector<4x16xf32>
    %56 = arith.truncf %55 : vector<4x16xf32> to vector<4x16xbf16>
    %c0_47 = arith.constant 0 : index
    %c0_48 = arith.constant 0 : index
    %c0_49 = arith.constant 0 : index
    %57 = vector.load %arg6[%c0_47, %c0_48, %c0_49] : memref<2x4x16xbf16, #tpu.memory_space<vmem>>, vector<1x4x16xbf16>
    %58 = vector.shape_cast %57 : vector<1x4x16xbf16> to vector<4x16xbf16>
    %59 = vector.shape_cast %56 : vector<4x16xbf16> to vector<1x4x16xbf16>
    tpu.vector_store %arg6[%c0_47, %c0_48, %c0_49], %59 {strides = array<i32>} : memref<2x4x16xbf16, #tpu.memory_space<vmem>>, vector<1x4x16xbf16>,
    %60 = vector.extract_strided_slice %50 {offsets = [4, 0], sizes = [4, 16], strides = [1, 1]} : vector<8x16xf32> to vector<4x16xf32>
    %c1_50 = arith.constant 1 : index
    %c0_51 = arith.constant 0 : index
    %c0_52 = arith.constant 0 : index
    %61 = vector.load %arg1[%c1_50, %c0_51, %c0_52] : memref<2x4x16xbf16, #tpu.memory_space<vmem>>, vector<1x4x16xbf16>
    %62 = vector.shape_cast %61 : vector<1x4x16xbf16> to vector<4x16xbf16>
    %63 = arith.extf %62 : vector<4x16xbf16> to vector<4x16xf32>
    %64 = arith.addf %60, %63 : vector<4x16xf32>
    %65 = arith.truncf %64 : vector<4x16xf32> to vector<4x16xbf16>
    %c1_53 = arith.constant 1 : index
    %c0_54 = arith.constant 0 : index
    %c0_55 = arith.constant 0 : index
    %66 = vector.load %arg6[%c1_53, %c0_54, %c0_55] : memref<2x4x16xbf16, #tpu.memory_space<vmem>>, vector<1x4x16xbf16>
    %67 = vector.shape_cast %66 : vector<1x4x16xbf16> to vector<4x16xbf16>
    %68 = vector.shape_cast %65 : vector<4x16xbf16> to vector<1x4x16xbf16>
    tpu.vector_store %arg6[%c1_53, %c0_54, %c0_55], %68 {strides = array<i32>} : memref<2x4x16xbf16, #tpu.memory_space<vmem>>, vector<1x4x16xbf16>,
    return
  }
  func.func @transform_0(%arg0: i32) -> (i32, i32, i32) {
    %c0_i32 = arith.constant 0 : i32
    %c0_i32_0 = arith.constant 0 : i32
    %c0_i32_1 = arith.constant 0 : i32
    return %arg0, %c0_i32, %c0_i32_0 : i32, i32, i32
  }
  func.func @transform_1(%arg0: i32) -> (i32, i32, i32) {
    %c0_i32 = arith.constant 0 : i32
    %c0_i32_0 = arith.constant 0 : i32
    %c0_i32_1 = arith.constant 0 : i32
    %c0_i32_2 = arith.constant 0 : i32
    return %c0_i32, %c0_i32_0, %c0_i32_1 : i32, i32, i32
  }
  func.func @transform_2(%arg0: i32) -> (i32, i32) {
    %c0_i32 = arith.constant 0 : i32
    %c0_i32_0 = arith.constant 0 : i32
    %c0_i32_1 = arith.constant 0 : i32
    return %c0_i32, %c0_i32_0 : i32, i32
  }
  func.func @transform_3(%arg0: i32) -> (i32, i32) {
    %c0_i32 = arith.constant 0 : i32
    %c0_i32_0 = arith.constant 0 : i32
    %c0_i32_1 = arith.constant 0 : i32
    return %c0_i32, %c0_i32_0 : i32, i32
  }
  func.func @transform_4(%arg0: i32) -> (i32, i32) {
    %c0_i32 = arith.constant 0 : i32
    %c0_i32_0 = arith.constant 0 : i32
    %c0_i32_1 = arith.constant 0 : i32
    return %c0_i32, %c0_i32_0 : i32, i32
  }
  func.func @transform_5(%arg0: i32) -> (i32, i32, i32) {
    %c0_i32 = arith.constant 0 : i32
    %c0_i32_0 = arith.constant 0 : i32
    %c0_i32_1 = arith.constant 0 : i32
    return %arg0, %c0_i32, %c0_i32_0 : i32, i32, i32
  }
}

module attributes {stable_mosaic.version = 11 : i64} {
  func.func @kernel(%arg0: i32, %arg1: memref<2x4x16xbf16, #tpu.memory_space<vmem>>, %arg2: memref<3x16x16xbf16, #tpu.memory_space<vmem>>, %arg3: memref<1x16xf32, #tpu.memory_space<vmem>>, %arg4: memref<16x16xbf16, #tpu.memory_space<vmem>>, %arg5: memref<1x16xf32, #tpu.memory_space<vmem>>, %arg6: memref<2x4x16xbf16, #tpu.memory_space<vmem>>, %arg7: memref<12x16xbf16, #tpu.memory_space<vmem>>, %arg8: memref<8x16xf32, #tpu.memory_space<vmem>>) attributes {dimension_semantics = [#tpu.dimension_semantics<parallel>], iteration_bounds = array<i64: 1>, scalar_prefetch = 0 : i64, scratch_operands = 2 : i64, tpu.core_type = #tpu.core_type<tc>, window_params = [{transform_indices = @transform_0, window_bounds = array<i64: 2, 4, 16>}, {pipeline_mode = #tpu.pipeline_mode<synchronous>, transform_indices = @transform_1, window_bounds = array<i64: 3, 16, 16>}, {pipeline_mode = #tpu.pipeline_mode<synchronous>, transform_indices = @transform_2, window_bounds = array<i64: 1, 16>}, {pipeline_mode = #tpu.pipeline_mode<synchronous>, transform_indices = @transform_3, window_bounds = array<i64: 16, 16>}, {pipeline_mode = #tpu.pipeline_mode<synchronous>, transform_indices = @transform_4, window_bounds = array<i64: 1, 16>}, {transform_indices = @transform_5, window_bounds = array<i64: 2, 4, 16>}]} {
    %cst = arith.constant 0.000000e+00 : bf16
    %0 = vector.broadcast %cst : bf16 to vector<1x16xbf16>
    %c0 = arith.constant 0 : index
    %c0_0 = arith.constant 0 : index
    %1 = vector.load %arg7[%c0, %c0_0] : memref<12x16xbf16, #tpu.memory_space<vmem>>, vector<1x16xbf16>
    tpu.vector_store %arg7[%c0, %c0_0], %0 {strides = array<i32>} : memref<12x16xbf16, #tpu.memory_space<vmem>>, vector<1x16xbf16>,
    %c5 = arith.constant 5 : index
    %c0_1 = arith.constant 0 : index
    %2 = vector.load %arg7[%c5, %c0_1] : memref<12x16xbf16, #tpu.memory_space<vmem>>, vector<1x16xbf16>
    tpu.vector_store %arg7[%c5, %c0_1], %0 {strides = array<i32>} : memref<12x16xbf16, #tpu.memory_space<vmem>>, vector<1x16xbf16>,
    %c0_2 = arith.constant 0 : index
    %c0_3 = arith.constant 0 : index
    %c0_4 = arith.constant 0 : index
    %3 = vector.load %arg1[%c0_2, %c0_3, %c0_4] : memref<2x4x16xbf16, #tpu.memory_space<vmem>>, vector<1x4x16xbf16>
    %4 = vector.shape_cast %3 : vector<1x4x16xbf16> to vector<4x16xbf16>
    %5 = arith.extf %4 : vector<4x16xbf16> to vector<4x16xf32>
    %cst_5 = arith.constant 0.000000e+00 : f32
    %6 = vector.broadcast %cst_5 : f32 to vector<4x16xf32>
    %7 = arith.maximumf %5, %6 : vector<4x16xf32>
    %8 = arith.truncf %7 : vector<4x16xf32> to vector<4x16xbf16>
    %c1 = arith.constant 1 : index
    %c0_6 = arith.constant 0 : index
    %9 = vector.load %arg7[%c1, %c0_6] : memref<12x16xbf16, #tpu.memory_space<vmem>>, vector<4x16xbf16>
    tpu.vector_store %arg7[%c1, %c0_6], %8 {strides = array<i32>} : memref<12x16xbf16, #tpu.memory_space<vmem>>, vector<4x16xbf16>,
    %cst_7 = arith.constant 0.000000e+00 : bf16
    %10 = vector.broadcast %cst_7 : bf16 to vector<1x16xbf16>
    %c6 = arith.constant 6 : index
    %c0_8 = arith.constant 0 : index
    %11 = vector.load %arg7[%c6, %c0_8] : memref<12x16xbf16, #tpu.memory_space<vmem>>, vector<1x16xbf16>
    tpu.vector_store %arg7[%c6, %c0_8], %10 {strides = array<i32>} : memref<12x16xbf16, #tpu.memory_space<vmem>>, vector<1x16xbf16>,
    %c11 = arith.constant 11 : index
    %c0_9 = arith.constant 0 : index
    %12 = vector.load %arg7[%c11, %c0_9] : memref<12x16xbf16, #tpu.memory_space<vmem>>, vector<1x16xbf16>
    tpu.vector_store %arg7[%c11, %c0_9], %10 {strides = array<i32>} : memref<12x16xbf16, #tpu.memory_space<vmem>>, vector<1x16xbf16>,
    %c1_10 = arith.constant 1 : index
    %c0_11 = arith.constant 0 : index
    %c0_12 = arith.constant 0 : index
    %13 = vector.load %arg1[%c1_10, %c0_11, %c0_12] : memref<2x4x16xbf16, #tpu.memory_space<vmem>>, vector<1x4x16xbf16>
    %14 = vector.shape_cast %13 : vector<1x4x16xbf16> to vector<4x16xbf16>
    %15 = arith.extf %14 : vector<4x16xbf16> to vector<4x16xf32>
    %cst_13 = arith.constant 0.000000e+00 : f32
    %16 = vector.broadcast %cst_13 : f32 to vector<4x16xf32>
    %17 = arith.maximumf %15, %16 : vector<4x16xf32>
    %18 = arith.truncf %17 : vector<4x16xf32> to vector<4x16xbf16>
    %c7 = arith.constant 7 : index
    %c0_14 = arith.constant 0 : index
    %19 = vector.load %arg7[%c7, %c0_14] : memref<12x16xbf16, #tpu.memory_space<vmem>>, vector<4x16xbf16>
    tpu.vector_store %arg7[%c7, %c0_14], %18 {strides = array<i32>} : memref<12x16xbf16, #tpu.memory_space<vmem>>, vector<4x16xbf16>,
    %c0_15 = arith.constant 0 : index
    %c0_16 = arith.constant 0 : index
    %20 = vector.load %arg7[%c0_15, %c0_16] : memref<12x16xbf16, #tpu.memory_space<vmem>>, vector<10x16xbf16>
    %c0_17 = arith.constant 0 : index
    %c0_18 = arith.constant 0 : index
    %c0_19 = arith.constant 0 : index
    %21 = vector.load %arg2[%c0_17, %c0_18, %c0_19] : memref<3x16x16xbf16, #tpu.memory_space<vmem>>, vector<1x16x16xbf16>
    %22 = vector.shape_cast %21 : vector<1x16x16xbf16> to vector<16x16xbf16>
    %cst_20 = arith.constant dense<0.000000e+00> : vector<10x16xf32>
    %23 = tpu.matmul %20, %22, %cst_20 {dimension_numbers = #tpu.dot_dimension_numbers<[1], [0], [0], [1], [0, 0, 1, 1], [], []>} : vector<10x16xbf16>, vector<16x16xbf16>, vector<10x16xf32> -> vector<10x16xf32>
    %c1_21 = arith.constant 1 : index
    %c0_22 = arith.constant 0 : index
    %24 = vector.load %arg7[%c1_21, %c0_22] : memref<12x16xbf16, #tpu.memory_space<vmem>>, vector<10x16xbf16>
    %c1_23 = arith.constant 1 : index
    %c0_24 = arith.constant 0 : index
    %c0_25 = arith.constant 0 : index
    %25 = vector.load %arg2[%c1_23, %c0_24, %c0_25] : memref<3x16x16xbf16, #tpu.memory_space<vmem>>, vector<1x16x16xbf16>
    %26 = vector.shape_cast %25 : vector<1x16x16xbf16> to vector<16x16xbf16>
    %cst_26 = arith.constant dense<0.000000e+00> : vector<10x16xf32>
    %27 = tpu.matmul %24, %26, %cst_26 {dimension_numbers = #tpu.dot_dimension_numbers<[1], [0], [0], [1], [0, 0, 1, 1], [], []>} : vector<10x16xbf16>, vector<16x16xbf16>, vector<10x16xf32> -> vector<10x16xf32>
    %28 = arith.addf %23, %27 : vector<10x16xf32>
    %c2 = arith.constant 2 : index
    %c0_27 = arith.constant 0 : index
    %29 = vector.load %arg7[%c2, %c0_27] : memref<12x16xbf16, #tpu.memory_space<vmem>>, vector<10x16xbf16>
    %c2_28 = arith.constant 2 : index
    %c0_29 = arith.constant 0 : index
    %c0_30 = arith.constant 0 : index
    %30 = vector.load %arg2[%c2_28, %c0_29, %c0_30] : memref<3x16x16xbf16, #tpu.memory_space<vmem>>, vector<1x16x16xbf16>
    %31 = vector.shape_cast %30 : vector<1x16x16xbf16> to vector<16x16xbf16>
    %cst_31 = arith.constant dense<0.000000e+00> : vector<10x16xf32>
    %32 = tpu.matmul %29, %31, %cst_31 {dimension_numbers = #tpu.dot_dimension_numbers<[1], [0], [0], [1], [0, 0, 1, 1], [], []>} : vector<10x16xbf16>, vector<16x16xbf16>, vector<10x16xf32> -> vector<10x16xf32>
    %33 = arith.addf %28, %32 : vector<10x16xf32>
    %c0_32 = arith.constant 0 : index
    %c0_33 = arith.constant 0 : index
    %34 = vector.load %arg3[%c0_32, %c0_33] : memref<1x16xf32, #tpu.memory_space<vmem>>, vector<1x16xf32>
    %35 = vector.broadcast %34 : vector<1x16xf32> to vector<10x16xf32>
    %36 = arith.addf %33, %35 : vector<10x16xf32>
    %37 = vector.extract_strided_slice %36 {offsets = [0, 0], sizes = [4, 16], strides = [1, 1]} : vector<10x16xf32> to vector<4x16xf32>
    %cst_34 = arith.constant 0.000000e+00 : f32
    %38 = vector.broadcast %cst_34 : f32 to vector<4x16xf32>
    %39 = arith.maximumf %37, %38 : vector<4x16xf32>
    %c0_35 = arith.constant 0 : index
    %c0_36 = arith.constant 0 : index
    %40 = vector.load %arg8[%c0_35, %c0_36] : memref<8x16xf32, #tpu.memory_space<vmem>>, vector<4x16xf32>
    tpu.vector_store %arg8[%c0_35, %c0_36], %39 {strides = array<i32>} : memref<8x16xf32, #tpu.memory_space<vmem>>, vector<4x16xf32>,
    %41 = vector.extract_strided_slice %36 {offsets = [6, 0], sizes = [4, 16], strides = [1, 1]} : vector<10x16xf32> to vector<4x16xf32>
    %cst_37 = arith.constant 0.000000e+00 : f32
    %42 = vector.broadcast %cst_37 : f32 to vector<4x16xf32>
    %43 = arith.maximumf %41, %42 : vector<4x16xf32>
    %c4 = arith.constant 4 : index
    %c0_38 = arith.constant 0 : index
    %44 = vector.load %arg8[%c4, %c0_38] : memref<8x16xf32, #tpu.memory_space<vmem>>, vector<4x16xf32>
    tpu.vector_store %arg8[%c4, %c0_38], %43 {strides = array<i32>} : memref<8x16xf32, #tpu.memory_space<vmem>>, vector<4x16xf32>,
    %c0_39 = arith.constant 0 : index
    %c0_40 = arith.constant 0 : index
    %45 = vector.load %arg8[%c0_39, %c0_40] : memref<8x16xf32, #tpu.memory_space<vmem>>, vector<8x16xf32>
    %c0_41 = arith.constant 0 : index
    %c0_42 = arith.constant 0 : index
    %46 = vector.load %arg4[%c0_41, %c0_42] : memref<16x16xbf16, #tpu.memory_space<vmem>>, vector<16x16xbf16>
    %cst_43 = arith.constant dense<0.000000e+00> : vector<8x16xf32>
    %47 = tpu.matmul %45, %46, %cst_43 {dimension_numbers = #tpu.dot_dimension_numbers<[1], [0], [0], [1], [0, 0, 1, 1], [], []>} : vector<8x16xf32>, vector<16x16xbf16>, vector<8x16xf32> -> vector<8x16xf32>
    %c0_44 = arith.constant 0 : index
    %c0_45 = arith.constant 0 : index
    %48 = vector.load %arg5[%c0_44, %c0_45] : memref<1x16xf32, #tpu.memory_space<vmem>>, vector<1x16xf32>
    %49 = vector.broadcast %48 : vector<1x16xf32> to vector<8x16xf32>
    %50 = arith.addf %47, %49 : vector<8x16xf32>
    %51 = vector.extract_strided_slice %50 {offsets = [0, 0], sizes = [4, 16], strides = [1, 1]} : vector<8x16xf32> to vector<4x16xf32>
    %c0_46 = arith.constant 0 : index
    %c0_47 = arith.constant 0 : index
    %c0_48 = arith.constant 0 : index
    %52 = vector.load %arg1[%c0_46, %c0_47, %c0_48] : memref<2x4x16xbf16, #tpu.memory_space<vmem>>, vector<1x4x16xbf16>
    %53 = vector.shape_cast %52 : vector<1x4x16xbf16> to vector<4x16xbf16>
    %54 = arith.extf %53 : vector<4x16xbf16> to vector<4x16xf32>
    %55 = arith.addf %51, %54 : vector<4x16xf32>
    %56 = arith.truncf %55 : vector<4x16xf32> to vector<4x16xbf16>
    %c0_49 = arith.constant 0 : index
    %c0_50 = arith.constant 0 : index
    %c0_51 = arith.constant 0 : index
    %57 = vector.load %arg6[%c0_49, %c0_50, %c0_51] : memref<2x4x16xbf16, #tpu.memory_space<vmem>>, vector<1x4x16xbf16>
    %58 = vector.shape_cast %57 : vector<1x4x16xbf16> to vector<4x16xbf16>
    %59 = vector.shape_cast %56 : vector<4x16xbf16> to vector<1x4x16xbf16>
    tpu.vector_store %arg6[%c0_49, %c0_50, %c0_51], %59 {strides = array<i32>} : memref<2x4x16xbf16, #tpu.memory_space<vmem>>, vector<1x4x16xbf16>,
    %60 = vector.extract_strided_slice %50 {offsets = [4, 0], sizes = [4, 16], strides = [1, 1]} : vector<8x16xf32> to vector<4x16xf32>
    %c1_52 = arith.constant 1 : index
    %c0_53 = arith.constant 0 : index
    %c0_54 = arith.constant 0 : index
    %61 = vector.load %arg1[%c1_52, %c0_53, %c0_54] : memref<2x4x16xbf16, #tpu.memory_space<vmem>>, vector<1x4x16xbf16>
    %62 = vector.shape_cast %61 : vector<1x4x16xbf16> to vector<4x16xbf16>
    %63 = arith.extf %62 : vector<4x16xbf16> to vector<4x16xf32>
    %64 = arith.addf %60, %63 : vector<4x16xf32>
    %65 = arith.truncf %64 : vector<4x16xf32> to vector<4x16xbf16>
    %c1_55 = arith.constant 1 : index
    %c0_56 = arith.constant 0 : index
    %c0_57 = arith.constant 0 : index
    %66 = vector.load %arg6[%c1_55, %c0_56, %c0_57] : memref<2x4x16xbf16, #tpu.memory_space<vmem>>, vector<1x4x16xbf16>
    %67 = vector.shape_cast %66 : vector<1x4x16xbf16> to vector<4x16xbf16>
    %68 = vector.shape_cast %65 : vector<4x16xbf16> to vector<1x4x16xbf16>
    tpu.vector_store %arg6[%c1_55, %c0_56, %c0_57], %68 {strides = array<i32>} : memref<2x4x16xbf16, #tpu.memory_space<vmem>>, vector<1x4x16xbf16>,
    return
  }
  func.func @transform_0(%arg0: i32) -> (i32, i32, i32) {
    %c0_i32 = arith.constant 0 : i32
    %c0_i32_0 = arith.constant 0 : i32
    %c0_i32_1 = arith.constant 0 : i32
    return %arg0, %c0_i32, %c0_i32_0 : i32, i32, i32
  }
  func.func @transform_1(%arg0: i32) -> (i32, i32, i32) {
    %c0_i32 = arith.constant 0 : i32
    %c0_i32_0 = arith.constant 0 : i32
    %c0_i32_1 = arith.constant 0 : i32
    %c0_i32_2 = arith.constant 0 : i32
    return %c0_i32, %c0_i32_0, %c0_i32_1 : i32, i32, i32
  }
  func.func @transform_2(%arg0: i32) -> (i32, i32) {
    %c0_i32 = arith.constant 0 : i32
    %c0_i32_0 = arith.constant 0 : i32
    %c0_i32_1 = arith.constant 0 : i32
    return %c0_i32, %c0_i32_0 : i32, i32
  }
  func.func @transform_3(%arg0: i32) -> (i32, i32) {
    %c0_i32 = arith.constant 0 : i32
    %c0_i32_0 = arith.constant 0 : i32
    %c0_i32_1 = arith.constant 0 : i32
    return %c0_i32, %c0_i32_0 : i32, i32
  }
  func.func @transform_4(%arg0: i32) -> (i32, i32) {
    %c0_i32 = arith.constant 0 : i32
    %c0_i32_0 = arith.constant 0 : i32
    %c0_i32_1 = arith.constant 0 : i32
    return %c0_i32, %c0_i32_0 : i32, i32
  }
  func.func @transform_5(%arg0: i32) -> (i32, i32, i32) {
    %c0_i32 = arith.constant 0 : i32
    %c0_i32_0 = arith.constant 0 : i32
    %c0_i32_1 = arith.constant 0 : i32
    return %arg0, %c0_i32, %c0_i32_0 : i32, i32, i32
  }
}

module attributes {stable_mosaic.version = 11 : i64} {
  func.func @kernel(%arg0: i32, %arg1: i32, %arg2: memref<2x4x16xbf16, #tpu.memory_space<vmem>>, %arg3: memref<3x16x16xbf16, #tpu.memory_space<vmem>>, %arg4: memref<1x16xf32, #tpu.memory_space<vmem>>, %arg5: memref<2x4x16xf32, #tpu.memory_space<vmem>>, %arg6: memref<12x16xbf16, #tpu.memory_space<vmem>>) attributes {dimension_semantics = [#tpu.dimension_semantics<parallel>, #tpu.dimension_semantics<parallel>], iteration_bounds = array<i64: 1, 1>, scalar_prefetch = 0 : i64, scratch_operands = 1 : i64, tpu.core_type = #tpu.core_type<tc>, window_params = [{transform_indices = @transform_0, window_bounds = array<i64: 2, 4, 16>}, {transform_indices = @transform_1, window_bounds = array<i64: 3, 16, 16>}, {transform_indices = @transform_2, window_bounds = array<i64: 1, 16>}, {transform_indices = @transform_3, window_bounds = array<i64: 2, 4, 16>}]} {
    %cst = arith.constant 0.000000e+00 : bf16
    %0 = vector.broadcast %cst : bf16 to vector<1x16xbf16>
    %c0 = arith.constant 0 : index
    %c0_0 = arith.constant 0 : index
    %1 = vector.load %arg6[%c0, %c0_0] : memref<12x16xbf16, #tpu.memory_space<vmem>>, vector<1x16xbf16>
    tpu.vector_store %arg6[%c0, %c0_0], %0 {strides = array<i32>} : memref<12x16xbf16, #tpu.memory_space<vmem>>, vector<1x16xbf16>,
    %c5 = arith.constant 5 : index
    %c0_1 = arith.constant 0 : index
    %2 = vector.load %arg6[%c5, %c0_1] : memref<12x16xbf16, #tpu.memory_space<vmem>>, vector<1x16xbf16>
    tpu.vector_store %arg6[%c5, %c0_1], %0 {strides = array<i32>} : memref<12x16xbf16, #tpu.memory_space<vmem>>, vector<1x16xbf16>,
    %c0_2 = arith.constant 0 : index
    %c0_3 = arith.constant 0 : index
    %c0_4 = arith.constant 0 : index
    %3 = vector.load %arg2[%c0_2, %c0_3, %c0_4] : memref<2x4x16xbf16, #tpu.memory_space<vmem>>, vector<1x4x16xbf16>
    %4 = vector.shape_cast %3 : vector<1x4x16xbf16> to vector<4x16xbf16>
    %c1 = arith.constant 1 : index
    %c0_5 = arith.constant 0 : index
    %5 = vector.load %arg6[%c1, %c0_5] : memref<12x16xbf16, #tpu.memory_space<vmem>>, vector<4x16xbf16>
    tpu.vector_store %arg6[%c1, %c0_5], %4 {strides = array<i32>} : memref<12x16xbf16, #tpu.memory_space<vmem>>, vector<4x16xbf16>,
    %cst_6 = arith.constant 0.000000e+00 : bf16
    %6 = vector.broadcast %cst_6 : bf16 to vector<1x16xbf16>
    %c6 = arith.constant 6 : index
    %c0_7 = arith.constant 0 : index
    %7 = vector.load %arg6[%c6, %c0_7] : memref<12x16xbf16, #tpu.memory_space<vmem>>, vector<1x16xbf16>
    tpu.vector_store %arg6[%c6, %c0_7], %6 {strides = array<i32>} : memref<12x16xbf16, #tpu.memory_space<vmem>>, vector<1x16xbf16>,
    %c11 = arith.constant 11 : index
    %c0_8 = arith.constant 0 : index
    %8 = vector.load %arg6[%c11, %c0_8] : memref<12x16xbf16, #tpu.memory_space<vmem>>, vector<1x16xbf16>
    tpu.vector_store %arg6[%c11, %c0_8], %6 {strides = array<i32>} : memref<12x16xbf16, #tpu.memory_space<vmem>>, vector<1x16xbf16>,
    %c1_9 = arith.constant 1 : index
    %c0_10 = arith.constant 0 : index
    %c0_11 = arith.constant 0 : index
    %9 = vector.load %arg2[%c1_9, %c0_10, %c0_11] : memref<2x4x16xbf16, #tpu.memory_space<vmem>>, vector<1x4x16xbf16>
    %10 = vector.shape_cast %9 : vector<1x4x16xbf16> to vector<4x16xbf16>
    %c7 = arith.constant 7 : index
    %c0_12 = arith.constant 0 : index
    %11 = vector.load %arg6[%c7, %c0_12] : memref<12x16xbf16, #tpu.memory_space<vmem>>, vector<4x16xbf16>
    tpu.vector_store %arg6[%c7, %c0_12], %10 {strides = array<i32>} : memref<12x16xbf16, #tpu.memory_space<vmem>>, vector<4x16xbf16>,
    %c0_13 = arith.constant 0 : index
    %c0_14 = arith.constant 0 : index
    %12 = vector.load %arg6[%c0_13, %c0_14] : memref<12x16xbf16, #tpu.memory_space<vmem>>, vector<10x16xbf16>
    %c0_15 = arith.constant 0 : index
    %c0_16 = arith.constant 0 : index
    %c0_17 = arith.constant 0 : index
    %13 = vector.load %arg3[%c0_15, %c0_16, %c0_17] : memref<3x16x16xbf16, #tpu.memory_space<vmem>>, vector<1x16x16xbf16>
    %14 = vector.shape_cast %13 : vector<1x16x16xbf16> to vector<16x16xbf16>
    %cst_18 = arith.constant dense<0.000000e+00> : vector<10x16xf32>
    %15 = tpu.matmul %12, %14, %cst_18 {dimension_numbers = #tpu.dot_dimension_numbers<[1], [0], [0], [1], [0, 0, 1, 1], [], []>} : vector<10x16xbf16>, vector<16x16xbf16>, vector<10x16xf32> -> vector<10x16xf32>
    %c1_19 = arith.constant 1 : index
    %c0_20 = arith.constant 0 : index
    %16 = vector.load %arg6[%c1_19, %c0_20] : memref<12x16xbf16, #tpu.memory_space<vmem>>, vector<10x16xbf16>
    %c1_21 = arith.constant 1 : index
    %c0_22 = arith.constant 0 : index
    %c0_23 = arith.constant 0 : index
    %17 = vector.load %arg3[%c1_21, %c0_22, %c0_23] : memref<3x16x16xbf16, #tpu.memory_space<vmem>>, vector<1x16x16xbf16>
    %18 = vector.shape_cast %17 : vector<1x16x16xbf16> to vector<16x16xbf16>
    %cst_24 = arith.constant dense<0.000000e+00> : vector<10x16xf32>
    %19 = tpu.matmul %16, %18, %cst_24 {dimension_numbers = #tpu.dot_dimension_numbers<[1], [0], [0], [1], [0, 0, 1, 1], [], []>} : vector<10x16xbf16>, vector<16x16xbf16>, vector<10x16xf32> -> vector<10x16xf32>
    %20 = arith.addf %15, %19 : vector<10x16xf32>
    %c2 = arith.constant 2 : index
    %c0_25 = arith.constant 0 : index
    %21 = vector.load %arg6[%c2, %c0_25] : memref<12x16xbf16, #tpu.memory_space<vmem>>, vector<10x16xbf16>
    %c2_26 = arith.constant 2 : index
    %c0_27 = arith.constant 0 : index
    %c0_28 = arith.constant 0 : index
    %22 = vector.load %arg3[%c2_26, %c0_27, %c0_28] : memref<3x16x16xbf16, #tpu.memory_space<vmem>>, vector<1x16x16xbf16>
    %23 = vector.shape_cast %22 : vector<1x16x16xbf16> to vector<16x16xbf16>
    %cst_29 = arith.constant dense<0.000000e+00> : vector<10x16xf32>
    %24 = tpu.matmul %21, %23, %cst_29 {dimension_numbers = #tpu.dot_dimension_numbers<[1], [0], [0], [1], [0, 0, 1, 1], [], []>} : vector<10x16xbf16>, vector<16x16xbf16>, vector<10x16xf32> -> vector<10x16xf32>
    %25 = arith.addf %20, %24 : vector<10x16xf32>
    %c0_30 = arith.constant 0 : index
    %c0_31 = arith.constant 0 : index
    %26 = vector.load %arg4[%c0_30, %c0_31] : memref<1x16xf32, #tpu.memory_space<vmem>>, vector<1x16xf32>
    %27 = vector.broadcast %26 : vector<1x16xf32> to vector<10x16xf32>
    %28 = arith.addf %25, %27 : vector<10x16xf32>
    %29 = vector.extract_strided_slice %28 {offsets = [0, 0], sizes = [4, 16], strides = [1, 1]} : vector<10x16xf32> to vector<4x16xf32>
    %c0_32 = arith.constant 0 : index
    %c0_33 = arith.constant 0 : index
    %c0_34 = arith.constant 0 : index
    %30 = vector.load %arg5[%c0_32, %c0_33, %c0_34] : memref<2x4x16xf32, #tpu.memory_space<vmem>>, vector<1x4x16xf32>
    %31 = vector.shape_cast %30 : vector<1x4x16xf32> to vector<4x16xf32>
    %32 = vector.shape_cast %29 : vector<4x16xf32> to vector<1x4x16xf32>
    tpu.vector_store %arg5[%c0_32, %c0_33, %c0_34], %32 {strides = array<i32>} : memref<2x4x16xf32, #tpu.memory_space<vmem>>, vector<1x4x16xf32>,
    %33 = vector.extract_strided_slice %28 {offsets = [6, 0], sizes = [4, 16], strides = [1, 1]} : vector<10x16xf32> to vector<4x16xf32>
    %c1_35 = arith.constant 1 : index
    %c0_36 = arith.constant 0 : index
    %c0_37 = arith.constant 0 : index
    %34 = vector.load %arg5[%c1_35, %c0_36, %c0_37] : memref<2x4x16xf32, #tpu.memory_space<vmem>>, vector<1x4x16xf32>
    %35 = vector.shape_cast %34 : vector<1x4x16xf32> to vector<4x16xf32>
    %36 = vector.shape_cast %33 : vector<4x16xf32> to vector<1x4x16xf32>
    tpu.vector_store %arg5[%c1_35, %c0_36, %c0_37], %36 {strides = array<i32>} : memref<2x4x16xf32, #tpu.memory_space<vmem>>, vector<1x4x16xf32>,
    return
  }
  func.func @transform_0(%arg0: i32, %arg1: i32) -> (i32, i32, i32) {
    %c0_i32 = arith.constant 0 : i32
    %c0_i32_0 = arith.constant 0 : i32
    %c0_i32_1 = arith.constant 0 : i32
    return %arg1, %c0_i32, %c0_i32_0 : i32, i32, i32
  }
  func.func @transform_1(%arg0: i32, %arg1: i32) -> (i32, i32, i32) {
    %c0_i32 = arith.constant 0 : i32
    %c0_i32_0 = arith.constant 0 : i32
    %c0_i32_1 = arith.constant 0 : i32
    return %c0_i32, %c0_i32_0, %arg0 : i32, i32, i32
  }
  func.func @transform_2(%arg0: i32, %arg1: i32) -> (i32, i32) {
    %c0_i32 = arith.constant 0 : i32
    %c0_i32_0 = arith.constant 0 : i32
    return %c0_i32, %arg0 : i32, i32
  }
  func.func @transform_3(%arg0: i32, %arg1: i32) -> (i32, i32, i32) {
    %c0_i32 = arith.constant 0 : i32
    %c0_i32_0 = arith.constant 0 : i32
    return %arg1, %c0_i32, %arg0 : i32, i32, i32
  }
}

</mosaic_0001>

<llo_original>
// kernel: encoder_pallas.10
$region0: #{encoder_pallas.10}
  #allocation0 [shape = 'u32[]', space=smem, size = 0x4, offset = 0x4, fixed_abs, tag = 'smem constant byte address 0x4 - core index']
  #allocation1 [shape = 'u32[72,128]{1,0:T(1,128)}', space=vmem, size = 0x9000, scoped, tag = 'internal scratch']
  #allocation2 [shape = 'f32[36,8]{1,0:T(8,128)}', space=vmem, size = 0x5000, scoped, tag = 'scratch operand']
  %s0 = inlined_call_operand.vmem [shape: f32[2,16,8], index: 0, kind: input, shape index: {}]
  %s1 = inlined_call_operand.hbm [shape: bf16[3,8,16], index: 1, kind: input, shape index: {}]
  %s2 = inlined_call_operand.hbm [shape: f32[1,16], index: 2, kind: input, shape index: {}]
  %s3 = inlined_call_operand.vmem [shape: bf16[2,16,16], index: 3, kind: output, shape index: {}]
  %s4 = sld [smem:[#allocation0]]
  $region30: #{encoder_pallas.10} parent=0
    _
  %s6 = ssub.s32 1, %s4
  %s7 = scalar_select 0, %s6, %s4
  $region1: #{encoder_pallas.10} parent=0
    #allocation3 [shape = 'u8[6144]{0}', space=vmem, size = 0x1800, scoped, tag = 'input window, operand 1, single buffered']
    #allocation4 [shape = 's32[1]{0}', space=sflag, size = 0x4, scoped, tag = 'scoped memory for encoder_pallas.10']
    #allocation5 [shape = 'u8[512]{0}', space=vmem, size = 0x400, scoped, tag = 'input window, operand 2, single buffered']
    #allocation6 [shape = 's32[1]{0}', space=sflag, size = 0x4, scoped, tag = 'scoped memory for encoder_pallas.10']
    %8 = vsyncpa [#allocation4], 0
    %9 = vsyncpa [#allocation6], 0
    // Predicated region
    $region2: #{encoder_pallas.10} parent=1 // pred_check
      _
    $region3: #{encoder_pallas.10} parent=1 // pred_check_branch
      %11 = sbr.rel (0) target = $region5
    $region4: #{encoder_pallas.10} parent=1 // pred_region
      _
    $region5: #{encoder_pallas.10} parent=1 // pred_fallthru
      _
    // Predicated region
    $region6: #{encoder_pallas.10} parent=1 // pred_check
      _
    $region7: #{encoder_pallas.10} parent=1 // pred_check_branch
      %13 = sbr.rel (0) target = $region9
    $region8: #{encoder_pallas.10} parent=1 // pred_region
      %15 = vsyncadd [#allocation4], 0
      %s16 = sshll.u32 %s1, 4
      %s17 = int_to_ptr.hbm [resolvable:$true] %s16
      %s18 = sshll.u32 [#allocation3], 4
      %s19 = int_to_ptr.vmem [resolvable:$true] %s18
      %24 = dma.hbm_to_vmem [thread:$0]  %s17, 192, %s19, [#allocation4], 64, 64, 4
    $region9: #{encoder_pallas.10} parent=1 // pred_fallthru
      _
    // Predicated region
    $region10: #{encoder_pallas.10} parent=1 // pred_check
      _
    $region11: #{encoder_pallas.10} parent=1 // pred_check_branch
      %26 = sbr.rel (0) target = $region13
    $region12: #{encoder_pallas.10} parent=1 // pred_region
      %28 = vsyncadd [#allocation6], 0
      %s30 = sshll.u32 %s2, 4
      %s31 = int_to_ptr.hbm [resolvable:$true] %s30
      %s32 = sshll.u32 [#allocation5], 4
      %s33 = int_to_ptr.vmem [resolvable:$true] %s32
      %35 = dma.hbm_to_vmem [thread:$0]  %s31, 16, %s33, [#allocation6]
    $region13: #{encoder_pallas.10} parent=1 // pred_fallthru
      _
    // Predicated region
    $region14: #{encoder_pallas.10} parent=1 // pred_check
      _
    $region15: #{encoder_pallas.10} parent=1 // pred_check_branch
      %37 = sbr.rel (0) target = $region17
    $region16: #{encoder_pallas.10} parent=1 // pred_region
      %39 = dma.done [#allocation4], 192
    $region17: #{encoder_pallas.10} parent=1 // pred_fallthru
      _
    // Predicated region
    $region18: #{encoder_pallas.10} parent=1 // pred_check
      _
    $region19: #{encoder_pallas.10} parent=1 // pred_check_branch
      %41 = sbr.rel (0) target = $region21
    $region20: #{encoder_pallas.10} parent=1 // pred_region
      %43 = dma.done [#allocation6], 16
    $region21: #{encoder_pallas.10} parent=1 // pred_fallthru
      _
    %vm45 = vcmask 57344
    %46 = vst.msk [vmem:[#allocation2] sm:$0x1] %vm45, 0.0
    %47 = vst.msk [vmem:[#allocation2 + $0x11] sm:$0x1] %vm45, 0.0
    %v48 = vld [vmem:[%s0] sm:$0xff]
    %v49 = vld [vmem:[%s0 + $0x8] sm:$0xff]
    %vm50 = vcmask 64512
    %51 = vst.msk [vmem:[#allocation2 + $0x1] sm:$0xff] %vm50, %v48
    %52 = vst.msk [vmem:[#allocation2 + $0x9] sm:$0xff] %vm50, %v49
    %53 = vst.msk [vmem:[#allocation2 + $0x12] sm:$0x1] %vm45, 0.0
    %54 = vst.msk [vmem:[#allocation2 + $0x23] sm:$0x1] %vm45, 0.0
    %s55 = scalar_lea.vmem %s0, 16
    %v56 = vld [vmem:[%s55] sm:$0xff]
    %v57 = vld [vmem:[%s55 + $0x8] sm:$0xff]
    %58 = vst.msk [vmem:[#allocation2 + $0x13] sm:$0xff] %vm50, %v56
    %59 = vst.msk [vmem:[#allocation2 + $0x1b] sm:$0xff] %vm50, %v57
    %v60 = vld [vmem:[#allocation2] sm:$0xff]
    %v61 = vld [vmem:[#allocation2 + $0x8] sm:$0xff]
    %v62 = vld [vmem:[#allocation2 + $0x10] sm:$0xff]
    %v63 = vld [vmem:[#allocation2 + $0x18] sm:$0xff]
    %v64 = vld [vmem:[#allocation2 + $0x20] sm:$0x3]
    %v65 = vld [vmem:[#allocation3] sm:$0xf]
    %v66 = vld [vmem:[#allocation2 + $0x1] sm:$0xff]
    %v67 = vld [vmem:[#allocation2 + $0x9] sm:$0xff]
    %v68 = vld [vmem:[#allocation2 + $0x11] sm:$0xff]
    %v69 = vld [vmem:[#allocation2 + $0x19] sm:$0xff]
    %v70 = vld [vmem:[#allocation2 + $0x21] sm:$0x3]
    %s71 = scalar_lea.vmem [#allocation3], 4
    %v72 = vld [vmem:[%s71] sm:$0xf]
    %v74 = vsel %vm50, %v66, 0
    %v77 = vsel %vm50, %v67, 0
    %v80 = vsel %vm50, %v68, 0
    %v83 = vsel %vm50, %v69, 0
    %v86 = vsel %vm50, %v70, 0
    %vm88 = vcmask 1043456
    %v90 = vsel %vm88, %v72, 0
    %92 = vmatpush.bf16.msra.mxu0 0
    %93 = vmatpush.bf16.msra.mxu0 0
    %94 = vmatpush.bf16.msra.mxu0 0
    %95 = vmatpush.bf16.msra.mxu0 0
    %96 = vmatpush.bf16.msra.mxu0 0
    %97 = vmatpush.bf16.msra.mxu0 0
    %98 = vmatpush.bf16.msra.mxu0 0
    %99 = vmatpush.bf16.msra.mxu0 %v90
    %100 = vmatmul.f32.gmra.mxu0 %v74
    %v101 = vpop.f32.mrf.mxu0
    %v102 = vadd.f32 0.0, %v101
    %103 = vmatmul.f32.gmra.mxu0 %v77
    %v104 = vpop.f32.mrf.mxu0
    %v105 = vadd.f32 0.0, %v104
    %106 = vmatmul.f32.gmra.mxu0 %v80
    %v107 = vpop.f32.mrf.mxu0
    %v108 = vadd.f32 0.0, %v107
    %109 = vmatmul.f32.gmra.mxu0 %v83
    %v110 = vpop.f32.mrf.mxu0
    %v111 = vadd.f32 0.0, %v110
    %112 = vmatmul.f32.gmra.mxu0 %v86
    %v113 = vpop.f32.mrf.mxu0
    %v114 = vadd.f32 0.0, %v113
    %115 = vdwg.mxu0
    %v117 = vsel %vm50, %v60, 0
    %v120 = vsel %vm50, %v61, 0
    %v123 = vsel %vm50, %v62, 0
    %v126 = vsel %vm50, %v63, 0
    %v129 = vsel %vm50, %v64, 0
    %v132 = vsel %vm88, %v65, 0
    %134 = vmatpush.bf16.msra.mxu0 0
    %135 = vmatpush.bf16.msra.mxu0 0
    %136 = vmatpush.bf16.msra.mxu0 0
    %137 = vmatpush.bf16.msra.mxu0 0
    %138 = vmatpush.bf16.msra.mxu0 0
    %139 = vmatpush.bf16.msra.mxu0 0
    %140 = vmatpush.bf16.msra.mxu0 0
    %141 = vmatpush.bf16.msra.mxu0 %v132
    %142 = vmatmul.f32.gmra.mxu0 %v117
    %v143 = vpop.f32.mrf.mxu0
    %v144 = vadd.f32 %v102, %v143
    %145 = vmatmul.f32.gmra.mxu0 %v120
    %v146 = vpop.f32.mrf.mxu0
    %v147 = vadd.f32 %v105, %v146
    %148 = vmatmul.f32.gmra.mxu0 %v123
    %v149 = vpop.f32.mrf.mxu0
    %v150 = vadd.f32 %v108, %v149
    %151 = vmatmul.f32.gmra.mxu0 %v126
    %v152 = vpop.f32.mrf.mxu0
    %v153 = vadd.f32 %v111, %v152
    %154 = vmatmul.f32.gmra.mxu0 %v129
    %v155 = vpop.f32.mrf.mxu0
    %v156 = vadd.f32 %v114, %v155
    %157 = vdwg.mxu0
    %v158 = vld [vmem:[#allocation2 + $0x2] sm:$0xff]
    %v159 = vld [vmem:[#allocation2 + $0xa] sm:$0xff]
    %v160 = vld [vmem:[#allocation2 + $0x12] sm:$0xff]
    %v161 = vld [vmem:[#allocation2 + $0x1a] sm:$0xff]
    %v162 = vld [vmem:[#allocation2 + $0x22] sm:$0x3]
    %s163 = scalar_lea.vmem [#allocation3], 8
    %v164 = vld [vmem:[%s163] sm:$0xf]
    %v166 = vsel %vm50, %v158, 0
    %v169 = vsel %vm50, %v159, 0
    %v172 = vsel %vm50, %v160, 0
    %v175 = vsel %vm50, %v161, 0
    %v178 = vsel %vm50, %v162, 0
    %v181 = vsel %vm88, %v164, 0
    %183 = vmatpush.bf16.msra.mxu0 0
    %184 = vmatpush.bf16.msra.mxu0 0
    %185 = vmatpush.bf16.msra.mxu0 0
    %186 = vmatpush.bf16.msra.mxu0 0
    %187 = vmatpush.bf16.msra.mxu0 0
    %188 = vmatpush.bf16.msra.mxu0 0
    %189 = vmatpush.bf16.msra.mxu0 0
    %190 = vmatpush.bf16.msra.mxu0 %v181
    %191 = vmatmul.f32.gmra.mxu0 %v166
    %v192 = vpop.f32.mrf.mxu0
    %v193 = vadd.f32 0.0, %v192
    %194 = vmatmul.f32.gmra.mxu0 %v169
    %v195 = vpop.f32.mrf.mxu0
    %v196 = vadd.f32 0.0, %v195
    %197 = vmatmul.f32.gmra.mxu0 %v172
    %v198 = vpop.f32.mrf.mxu0
    %v199 = vadd.f32 0.0, %v198
    %200 = vmatmul.f32.gmra.mxu0 %v175
    %v201 = vpop.f32.mrf.mxu0
    %v202 = vadd.f32 0.0, %v201
    %203 = vmatmul.f32.gmra.mxu0 %v178
    %v204 = vpop.f32.mrf.mxu0
    %v205 = vadd.f32 0.0, %v204
    %206 = vdwg.mxu0
    %v207 = vadd.f32 %v144, %v193
    %v208 = vadd.f32 %v147, %v196
    %v209 = vadd.f32 %v150, %v199
    %v210 = vadd.f32 %v153, %v202
    %v211 = vadd.f32 %v156, %v205
    %v212 = vld [vmem:[#allocation5] sm:$0x1]
    %v214 = vperm.slane %v212, 0
    %v216 = vadd.f32 %v207, %v214
    %v217 = vadd.f32 %v208, %v214
    %v218 = vadd.f32 %v209, %v214
    %v219 = vadd.f32 %v210, %v214
    %v220 = vadd.f32 %v211, %v214
    %v221 = vmax.f32 %v216, 0.0
    %v222 = vmax.f32 %v217, 0.0
    %v223 = vmax.f32 %v218, 0.0
    %v224 = vmax.f32 %v219, 0.0
    %v225 = vmax.f32 %v220, 0.0
    %v226 = vpack.c.bf16 %v221, %v221
    %v227 = vpack.c.bf16 %v222, %v222
    %vm228 = vcmask 125952
    %229 = vst.msk [vmem:[%s3] sm:$0xf] %vm228, %v226
    %230 = vst.msk [vmem:[%s3 + $0x4] sm:$0xf] %vm228, %v227
    %v231 = vpack.c.bf16 %v223, %v223
    %v232 = vpack.c.bf16 %v224, %v224
    %v233 = vpack.c.bf16 %v225, %v225
    %vm237 = vcmask 1042432
    %vm238 = vcmask 1046532
    %vm239 = vmor %vm237, %vm238
    %v240 = vrot.slane %v231, 5
    %v241 = vrot.slane %v240, 4
    %v242 = vrot.slane %v232, 5
    %v243 = vsel %vm239, %v241, %v242
    %v244 = vrot.slane %v242, 4
    %v245 = vrot.slane %v233, 5
    %v246 = vsel %vm239, %v244, %v245
    %s249 = scalar_lea.vmem %s3, 8
    %250 = vst.msk [vmem:[%s249] sm:$0xf] %vm228, %v243
    %251 = vst.msk [vmem:[%s249 + $0x4] sm:$0xf] %vm228, %v246
    // Predicated region
    $region22: #{encoder_pallas.10} parent=1 // pred_check
      _
    $region23: #{encoder_pallas.10} parent=1 // pred_check_branch
      %253 = sbr.rel (0) target = $region25
    $region24: #{encoder_pallas.10} parent=1 // pred_region
      _
    $region25: #{encoder_pallas.10} parent=1 // pred_fallthru
      _
    // Predicated region
    $region26: #{encoder_pallas.10} parent=1 // pred_check
      _
    $region27: #{encoder_pallas.10} parent=1 // pred_check_branch
      %255 = sbr.rel (0) target = $region29
    $region28: #{encoder_pallas.10} parent=1 // pred_region
      _
    $region29: #{encoder_pallas.10} parent=1 // pred_fallthru
      _
    %256 = vsyncpa [#allocation4], 1
    %257 = vsyncpa [#allocation6], 1

// kernel: encoder_pallas.12
$region0: #{encoder_pallas.12}
  #allocation0 [shape = 'u32[]', space=smem, size = 0x4, offset = 0x4, fixed_abs, tag = 'smem constant byte address 0x4 - core index']
  #allocation1 [shape = 'u32[72,128]{1,0:T(1,128)}', space=vmem, size = 0x9000, scoped, tag = 'internal scratch']
  #allocation2 [shape = 'bf16[52,16]{1,0:T(8,128)(2,1)}', space=vmem, size = 0x3800, scoped, tag = 'scratch operand']
  #allocation3 [shape = 'f32[16,16]{1,0:T(8,128)}', space=vmem, size = 0x2000, scoped, tag = 'scratch operand']
  %s0 = inlined_call_operand.vmem [shape: bf16[2,8,16], index: 0, kind: input, shape index: {}]
  %s1 = inlined_call_operand.vmem [shape: bf16[3,16,16], index: 1, kind: input, shape index: {}]
  %s2 = inlined_call_operand.vmem [shape: f32[1,16], index: 2, kind: input, shape index: {}]
  %s3 = inlined_call_operand.vmem [shape: bf16[16,16], index: 3, kind: input, shape index: {}]
  %s4 = inlined_call_operand.hbm [shape: f32[1,16], index: 4, kind: input, shape index: {}]
  %s5 = inlined_call_operand.vmem [shape: bf16[2,8,16], index: 5, kind: output, shape index: {}]
  %s6 = sld [smem:[#allocation0]]
  $region34: #{encoder_pallas.12} parent=0
    _
  %s8 = ssub.s32 1, %s6
  %s9 = scalar_select 0, %s8, %s6
  $region1: #{encoder_pallas.12} parent=0
    #allocation4 [shape = 'u8[512]{0}', space=vmem, size = 0x400, scoped, tag = 'input window, operand 4, single buffered']
    #allocation5 [shape = 's32[1]{0}', space=sflag, size = 0x4, scoped, tag = 'scoped memory for encoder_pallas.12']
    %10 = vsyncpa [#allocation5], 0
    // Predicated region
    $region2: #{encoder_pallas.12} parent=1 // pred_check
      _
    $region3: #{encoder_pallas.12} parent=1 // pred_check_branch
      %12 = sbr.rel (0) target = $region5
    $region4: #{encoder_pallas.12} parent=1 // pred_region
      _
    $region5: #{encoder_pallas.12} parent=1 // pred_fallthru
      _
    // Predicated region
    $region6: #{encoder_pallas.12} parent=1 // pred_check
      _
    $region7: #{encoder_pallas.12} parent=1 // pred_check_branch
      %14 = sbr.rel (0) target = $region9
    $region8: #{encoder_pallas.12} parent=1 // pred_region
      _
    $region9: #{encoder_pallas.12} parent=1 // pred_fallthru
      _
    // Predicated region
    $region10: #{encoder_pallas.12} parent=1 // pred_check
      _
    $region11: #{encoder_pallas.12} parent=1 // pred_check_branch
      %16 = sbr.rel (0) target = $region13
    $region12: #{encoder_pallas.12} parent=1 // pred_region
      _
    $region13: #{encoder_pallas.12} parent=1 // pred_fallthru
      _
    // Predicated region
    $region14: #{encoder_pallas.12} parent=1 // pred_check
      _
    $region15: #{encoder_pallas.12} parent=1 // pred_check_branch
      %18 = sbr.rel (0) target = $region17
    $region16: #{encoder_pallas.12} parent=1 // pred_region
      _
    $region17: #{encoder_pallas.12} parent=1 // pred_fallthru
      _
    // Predicated region
    $region18: #{encoder_pallas.12} parent=1 // pred_check
      _
    $region19: #{encoder_pallas.12} parent=1 // pred_check_branch
      %20 = sbr.rel (0) target = $region21
    $region20: #{encoder_pallas.12} parent=1 // pred_region
      %22 = vsyncadd [#allocation5], 0
      %s24 = sshll.u32 %s4, 4
      %s25 = int_to_ptr.hbm [resolvable:$true] %s24
      %s26 = sshll.u32 [#allocation4], 4
      %s27 = int_to_ptr.vmem [resolvable:$true] %s26
      %29 = dma.hbm_to_vmem [thread:$0]  %s25, 16, %s27, [#allocation5]
    $region21: #{encoder_pallas.12} parent=1 // pred_fallthru
      _
    // Predicated region
    $region22: #{encoder_pallas.12} parent=1 // pred_check
      _
    $region23: #{encoder_pallas.12} parent=1 // pred_check_branch
      %31 = sbr.rel (0) target = $region25
    $region24: #{encoder_pallas.12} parent=1 // pred_region
      %33 = dma.done [#allocation5], 16
    $region25: #{encoder_pallas.12} parent=1 // pred_fallthru
      _
    %vm35 = vcmask 125952
    %36 = vst.msk [vmem:[#allocation2] sm:$0xf] %vm35, 0
    %vm37 = vcmask 122880
    %vm38 = vsmask.f32 256
    %vm39 = vmand %vm37, %vm38
    %v40 = vld [vmem:[#allocation2 + $0x4] sm:$0x1]
    %v41 = vsel %vm39, 0, %v40
    %42 = vst [vmem:[#allocation2 + $0x4] sm:$0x1] %v41
    %vm43 = vcmask 125952
    %vm44 = vsmask.f32 7938
    %vm45 = vmand %vm43, %vm44
    %v46 = vld [vmem:[#allocation2 + $0x8] sm:$0xf]
    %v47 = vsel %vm45, 0, %v46
    %48 = vst [vmem:[#allocation2 + $0x8] sm:$0xf] %v47
    %vm49 = vcmask 122880
    %50 = vst.msk [vmem:[#allocation2 + $0xc] sm:$0x1] %vm49, 0
    %v51 = vld [vmem:[%s0] sm:$0xf]
    %v52 = vunpack.c.l.bf16 %v51
    %v53 = vmax.f32 %v52, 0.0
    %v54 = vpack.c.bf16 %v53, %v53
    %v56 = vshrl.u32 %v54, 16
    %v58 = vrot.slane %v56, 7
    %v59 = vshll.u32 %v54, 16
    %v61 = vor.u32 %v58, %v59
    %v62 = vrot.slane %v58, 4
    %v65 = vld [vmem:[#allocation2 + $0x4] sm:$0xf]
    %v66 = vsel %vm45, %v61, %v65
    %67 = vst [vmem:[#allocation2 + $0x4] sm:$0xf] %v66
    %v68 = vld [vmem:[#allocation2 + $0x8] sm:$0x1]
    %v69 = vsel %vm39, %v62, %v68
    %70 = vst [vmem:[#allocation2 + $0x8] sm:$0x1] %v69
    %vm71 = vcmask 125953
    %72 = vst.msk [vmem:[#allocation2 + $0xc] sm:$0xe] %vm71, 0
    %vm73 = vcmask 123904
    %vm74 = vsmask.f32 1280
    %vm75 = vmand %vm73, %vm74
    %v76 = vld [vmem:[#allocation2 + $0x10] sm:$0x3]
    %v77 = vsel %vm75, 0, %v76
    %78 = vst [vmem:[#allocation2 + $0x10] sm:$0x3] %v77
    %vm79 = vcmask 125953
    %vm80 = vsmask.f32 7942
    %vm81 = vmand %vm79, %vm80
    %v82 = vld [vmem:[#allocation2 + $0x14] sm:$0xe]
    %v83 = vsel %vm81, 0, %v82
    %84 = vst [vmem:[#allocation2 + $0x14] sm:$0xe] %v83
    %vm85 = vcmask 123904
    %86 = vst.msk [vmem:[#allocation2 + $0x18] sm:$0x3] %vm85, 0
    %s87 = scalar_lea.vmem %s0, 4
    %v88 = vld [vmem:[%s87] sm:$0xf]
    %v89 = vunpack.c.l.bf16 %v88
    %v90 = vmax.f32 %v89, 0.0
    %v91 = vpack.c.bf16 %v90, %v90
    %v93 = vshrl.u32 %v91, 16
    %v95 = vrot.slane %v93, 6
    %v96 = vshll.u32 %v91, 16
    %v98 = vrot.slane %v96, 7
    %v99 = vor.u32 %v95, %v98
    %v100 = vrot.slane %v99, 4
    %v103 = vld [vmem:[#allocation2 + $0x10] sm:$0xe]
    %v104 = vsel %vm81, %v99, %v103
    %105 = vst [vmem:[#allocation2 + $0x10] sm:$0xe] %v104
    %v106 = vld [vmem:[#allocation2 + $0x14] sm:$0x3]
    %v107 = vsel %vm75, %v100, %v106
    %108 = vst [vmem:[#allocation2 + $0x14] sm:$0x3] %v107
    %v109 = vld [vmem:[#allocation2] sm:$0xf]
    %v110 = vld [vmem:[#allocation2 + $0x4] sm:$0xf]
    %v111 = vld [vmem:[#allocation2 + $0x8] sm:$0xf]
    %v112 = vld [vmem:[#allocation2 + $0xc] sm:$0xf]
    %v113 = vld [vmem:[#allocation2 + $0x10] sm:$0x1]
    %v114 = vld [vmem:[%s1] sm:$0xf]
    %v115 = vld [vmem:[%s1 + $0x4] sm:$0xf]
    %v116 = vld [vmem:[#allocation2 + $0x10] sm:$0xf]
    %v117 = vld [vmem:[#allocation2 + $0x14] sm:$0x3]
    %s118 = scalar_lea.vmem %s1, 8
    %v119 = vld [vmem:[%s118] sm:$0xf]
    %v120 = vld [vmem:[%s118 + $0x4] sm:$0xf]
    %v126 = vunpack.c.l.b16 %v110
    %v127 = vunpack.c.l.b16 %v111
    %v128 = vunpack.c.l.b16 %v112
    %v129 = vunpack.c.l.b16 %v116
    %v130 = vunpack.c.l.b16 %v117
    %v131 = vpack.c.b16 %v127, %v126
    %v132 = vpack.c.b16 %v129, %v128
    %v133 = vpack.c.b16 %v130, %v130
    %vm134 = vsmask.f32 7424
    %v136 = vshrl.u32 %v131, 16
    %v138 = vshll.u32 %v131, 16
    %v140 = vrot.slane %v138, 1
    %v141 = vor.u32 %v136, %v140
    %v143 = vshll.u32 %v132, 16
    %v145 = vrot.slane %v143, 1
    %v146 = vsel %vm134, %v141, %v145
    %v147 = vshrl.u32 %v132, 16
    %v149 = vor.u32 %v147, %v145
    %v151 = vshll.u32 %v133, 16
    %v153 = vrot.slane %v151, 1
    %v154 = vsel %vm134, %v149, %v153
    %v155 = vshrl.u32 %v133, 16
    %v157 = vor.u32 %v155, %v153
    %v160 = vunpack.c.l.b16 %v119
    %v161 = vunpack.c.l.b16 %v120
    %v162 = vpack.c.b16 %v161, %v160
    %vm164 = vcmask 130048
    %v166 = vsel %vm164, %v146, 0
    %v169 = vsel %vm164, %v154, 0
    %v172 = vsel %vm164, %v157, 0
    %174 = vmatpush.bf16.msra.mxu0 0
    %175 = vmatpush.bf16.msra.mxu0 0
    %176 = vmatpush.bf16.msra.mxu0 0
    %177 = vmatpush.bf16.msra.mxu0 0
    %178 = vmatpush.bf16.msra.mxu0 0
    %179 = vmatpush.bf16.msra.mxu0 0
    %180 = vmatpush.bf16.msra.mxu0 0
    %181 = vmatpush.bf16.msra.mxu0 %v162
    %182 = vmatmul.bf16.gmra.mxu0 %v166
    %v183 = vpop.f32.mrf.mxu0
    %v184 = vadd.f32 0.0, %v183
    %v185 = vpop.f32.mrf.mxu0
    %186 = vmatmul.bf16.gmra.mxu0 %v169
    %v187 = vpop.f32.mrf.mxu0
    %v188 = vpop.f32.mrf.mxu0
    %v189 = vadd.f32 0.0, %v188
    %190 = vmatmul.bf16.gmra.mxu0 %v172
    %v191 = vpop.f32.mrf.mxu0
    %v192 = vadd.f32 0.0, %v191
    %v193 = vpop.f32.mrf.mxu0
    %194 = vdwg.mxu0
    %v197 = vunpack.c.l.b16 %v109
    %v198 = vunpack.c.l.b16 %v113
    %v199 = vpack.c.b16 %v126, %v197
    %v200 = vpack.c.b16 %v128, %v127
    %v201 = vpack.c.b16 %v198, %v198
    %v204 = vunpack.c.l.b16 %v114
    %v205 = vunpack.c.l.b16 %v115
    %v206 = vpack.c.b16 %v205, %v204
    %v209 = vsel %vm164, %v199, 0
    %v212 = vsel %vm164, %v200, 0
    %v215 = vsel %vm164, %v201, 0
    %217 = vmatpush.bf16.msra.mxu0 0
    %218 = vmatpush.bf16.msra.mxu0 0
    %219 = vmatpush.bf16.msra.mxu0 0
    %220 = vmatpush.bf16.msra.mxu0 0
    %221 = vmatpush.bf16.msra.mxu0 0
    %222 = vmatpush.bf16.msra.mxu0 0
    %223 = vmatpush.bf16.msra.mxu0 0
    %224 = vmatpush.bf16.msra.mxu0 %v206
    %225 = vmatmul.bf16.gmra.mxu0 %v209
    %v226 = vpop.f32.mrf.mxu0
    %v227 = vadd.f32 %v184, %v226
    %v228 = vpop.f32.mrf.mxu0
    %229 = vmatmul.bf16.gmra.mxu0 %v212
    %v230 = vpop.f32.mrf.mxu0
    %v231 = vpop.f32.mrf.mxu0
    %v232 = vadd.f32 %v189, %v231
    %233 = vmatmul.bf16.gmra.mxu0 %v215
    %v234 = vpop.f32.mrf.mxu0
    %v235 = vadd.f32 %v192, %v234
    %v236 = vpop.f32.mrf.mxu0
    %237 = vdwg.mxu0
    %v238 = vld [vmem:[#allocation2 + $0x8] sm:$0xe]
    %v239 = vld [vmem:[#allocation2 + $0xc] sm:$0xf]
    %v240 = vld [vmem:[#allocation2 + $0x10] sm:$0xf]
    %v241 = vld [vmem:[#allocation2 + $0x14] sm:$0xf]
    %v242 = vld [vmem:[#allocation2 + $0x18] sm:$0x3]
    %s243 = scalar_lea.vmem %s1, 16
    %v244 = vld [vmem:[%s243] sm:$0xf]
    %v245 = vld [vmem:[%s243 + $0x4] sm:$0xf]
    %v251 = vunpack.c.l.b16 %v238
    %v252 = vunpack.c.l.b16 %v239
    %v253 = vunpack.c.l.b16 %v240
    %v254 = vunpack.c.l.b16 %v241
    %v255 = vunpack.c.l.b16 %v242
    %v256 = vpack.c.b16 %v252, %v251
    %v257 = vpack.c.b16 %v254, %v253
    %v258 = vpack.c.b16 %v255, %v255
    %vm259 = vcmask 1046528
    %v260 = vrot.slane %v256, 1
    %v261 = vrot.slane %v257, 1
    %v262 = vsel %vm259, %v260, %v261
    %v263 = vrot.slane %v258, 1
    %v264 = vsel %vm259, %v261, %v263
    %v267 = vunpack.c.l.b16 %v244
    %v268 = vunpack.c.l.b16 %v245
    %v269 = vpack.c.b16 %v268, %v267
    %v272 = vsel %vm164, %v262, 0
    %v275 = vsel %vm164, %v264, 0
    %v278 = vsel %vm164, %v263, 0
    %280 = vmatpush.bf16.msra.mxu0 0
    %281 = vmatpush.bf16.msra.mxu0 0
    %282 = vmatpush.bf16.msra.mxu0 0
    %283 = vmatpush.bf16.msra.mxu0 0
    %284 = vmatpush.bf16.msra.mxu0 0
    %285 = vmatpush.bf16.msra.mxu0 0
    %286 = vmatpush.bf16.msra.mxu0 0
    %287 = vmatpush.bf16.msra.mxu0 %v269
    %288 = vmatmul.bf16.gmra.mxu0 %v272
    %v289 = vpop.f32.mrf.mxu0
    %v290 = vadd.f32 0.0, %v289
    %v291 = vpop.f32.mrf.mxu0
    %292 = vmatmul.bf16.gmra.mxu0 %v275
    %v293 = vpop.f32.mrf.mxu0
    %v294 = vpop.f32.mrf.mxu0
    %v295 = vadd.f32 0.0, %v294
    %296 = vmatmul.bf16.gmra.mxu0 %v278
    %v297 = vpop.f32.mrf.mxu0
    %v298 = vadd.f32 0.0, %v297
    %v299 = vpop.f32.mrf.mxu0
    %300 = vdwg.mxu0
    %v301 = vadd.f32 %v227, %v290
    %v302 = vadd.f32 %v232, %v295
    %v303 = vadd.f32 %v235, %v298
    %v304 = vld [vmem:[%s2] sm:$0x1]
    %v306 = vperm.slane %v304, 0
    %v308 = vadd.f32 %v301, %v306
    %v309 = vadd.f32 %v302, %v306
    %v310 = vadd.f32 %v303, %v306
    %v311 = vmax.f32 %v308, 0.0
    %312 = vst.msk [vmem:[#allocation3] sm:$0xff] %vm164, %v311
    %v313 = vmax.f32 %v309, 0.0
    %v314 = vmax.f32 %v310, 0.0
    %vm315 = vcmask 130050
    %316 = vst.msk [vmem:[#allocation3 + $0x6] sm:$0xfc] %vm315, %v313
    %317 = vst.msk [vmem:[#allocation3 + $0xe] sm:$0x3] %vm85, %v314
    %v318 = vld [vmem:[#allocation3] sm:$0xff]
    %v319 = vld [vmem:[#allocation3 + $0x8] sm:$0xff]
    %v320 = vld [vmem:[%s3] sm:$0xf]
    %v321 = vld [vmem:[%s3 + $0x4] sm:$0xf]
    %v322 = vld [vmem:[#allocation4] sm:$0x1]
    %v324 = vperm.slane %v322, 0
    %v328 = vunpack.c.l.b16 %v320
    %v329 = vunpack.c.l.b16 %v321
    %v330 = vpack.c.b16 %v329, %v328
    %v333 = vsel %vm164, %v318, 0
    %v336 = vsel %vm164, %v319, 0
    %338 = vmatpush.bf16.msra.mxu0 0
    %339 = vmatpush.bf16.msra.mxu0 0
    %340 = vmatpush.bf16.msra.mxu0 0
    %341 = vmatpush.bf16.msra.mxu0 0
    %342 = vmatpush.bf16.msra.mxu0 0
    %343 = vmatpush.bf16.msra.mxu0 0
    %344 = vmatpush.bf16.msra.mxu0 0
    %345 = vmatpush.bf16.msra.mxu0 %v330
    %346 = vmatmul.f32.gmra.mxu0 %v333
    %v347 = vpop.f32.mrf.mxu0
    %v348 = vadd.f32 %v324, %v347
    %349 = vmatmul.f32.gmra.mxu0 %v336
    %v350 = vpop.f32.mrf.mxu0
    %v351 = vadd.f32 %v324, %v350
    %352 = vdwg.mxu0
    %v353 = vld [vmem:[%s0] sm:$0xf]
    %v354 = vunpack.c.l.bf16 %v353
    %v355 = vadd.f32 %v348, %v354
    %v356 = vpack.c.bf16 %v355, %v355
    %357 = vst.msk [vmem:[%s5] sm:$0xf] %vm35, %v356
    %v358 = vld [vmem:[%s87] sm:$0xf]
    %v359 = vunpack.c.l.bf16 %v358
    %v360 = vadd.f32 %v351, %v359
    %v361 = vpack.c.bf16 %v360, %v360
    %s362 = scalar_lea.vmem %s5, 4
    %363 = vst.msk [vmem:[%s362] sm:$0xf] %vm35, %v361
    // Predicated region
    $region26: #{encoder_pallas.12} parent=1 // pred_check
      _
    $region27: #{encoder_pallas.12} parent=1 // pred_check_branch
      %365 = sbr.rel (0) target = $region29
    $region28: #{encoder_pallas.12} parent=1 // pred_region
      _
    $region29: #{encoder_pallas.12} parent=1 // pred_fallthru
      _
    // Predicated region
    $region30: #{encoder_pallas.12} parent=1 // pred_check
      _
    $region31: #{encoder_pallas.12} parent=1 // pred_check_branch
      %367 = sbr.rel (0) target = $region33
    $region32: #{encoder_pallas.12} parent=1 // pred_region
      _
    $region33: #{encoder_pallas.12} parent=1 // pred_fallthru
      _
    %368 = vsyncpa [#allocation5], 1

// kernel: encoder_pallas.13
$region0: #{encoder_pallas.13}
  #allocation0 [shape = 'u32[]', space=smem, size = 0x4, offset = 0x4, fixed_abs, tag = 'smem constant byte address 0x4 - core index']
  #allocation1 [shape = 'u32[72,128]{1,0:T(1,128)}', space=vmem, size = 0x9000, scoped, tag = 'internal scratch']
  #allocation2 [shape = 'bf16[28,16]{1,0:T(8,128)(2,1)}', space=vmem, size = 0x2000, scoped, tag = 'scratch operand']
  #allocation3 [shape = 'f32[16,16]{1,0:T(8,128)}', space=vmem, size = 0x2000, scoped, tag = 'scratch operand']
  %s0 = inlined_call_operand.vmem [shape: bf16[2,8,16], index: 0, kind: input, shape index: {}]
  %s1 = inlined_call_operand.vmem [shape: bf16[3,16,16], index: 1, kind: input, shape index: {}]
  %s2 = inlined_call_operand.hbm [shape: f32[1,16], index: 2, kind: input, shape index: {}]
  %s3 = inlined_call_operand.hbm [shape: bf16[16,16], index: 3, kind: input, shape index: {}]
  %s4 = inlined_call_operand.hbm [shape: f32[1,16], index: 4, kind: input, shape index: {}]
  %s5 = inlined_call_operand.vmem [shape: bf16[2,8,16], index: 5, kind: output, shape index: {}]
  %s6 = sld [smem:[#allocation0]]
  $region42: #{encoder_pallas.13} parent=0
    _
  %s8 = ssub.s32 1, %s6
  %s9 = scalar_select 0, %s8, %s6
  $region1: #{encoder_pallas.13} parent=0
    #allocation4 [shape = 'u8[512]{0}', space=vmem, size = 0x400, scoped, tag = 'input window, operand 2, single buffered']
    #allocation5 [shape = 's32[1]{0}', space=sflag, size = 0x4, scoped, tag = 'scoped memory for encoder_pallas.13']
    #allocation6 [shape = 'u8[4096]{0}', space=vmem, size = 0x1000, scoped, tag = 'input window, operand 3, single buffered']
    #allocation7 [shape = 's32[1]{0}', space=sflag, size = 0x4, scoped, tag = 'scoped memory for encoder_pallas.13']
    #allocation8 [shape = 'u8[512]{0}', space=vmem, size = 0x400, scoped, tag = 'input window, operand 4, single buffered']
    %10 = vsyncpa [#allocation5], 0
    %11 = vsyncpa [#allocation7], 0
    // Predicated region
    $region2: #{encoder_pallas.13} parent=1 // pred_check
      _
    $region3: #{encoder_pallas.13} parent=1 // pred_check_branch
      %13 = sbr.rel (0) target = $region5
    $region4: #{encoder_pallas.13} parent=1 // pred_region
      _
    $region5: #{encoder_pallas.13} parent=1 // pred_fallthru
      _
    // Predicated region
    $region6: #{encoder_pallas.13} parent=1 // pred_check
      _
    $region7: #{encoder_pallas.13} parent=1 // pred_check_branch
      %15 = sbr.rel (0) target = $region9
    $region8: #{encoder_pallas.13} parent=1 // pred_region
      _
    $region9: #{encoder_pallas.13} parent=1 // pred_fallthru
      _
    // Predicated region
    $region10: #{encoder_pallas.13} parent=1 // pred_check
      _
    $region11: #{encoder_pallas.13} parent=1 // pred_check_branch
      %17 = sbr.rel (0) target = $region13
    $region12: #{encoder_pallas.13} parent=1 // pred_region
      %19 = vsyncadd [#allocation5], 0
      %s21 = sshll.u32 %s2, 4
      %s22 = int_to_ptr.hbm [resolvable:$true] %s21
      %s23 = sshll.u32 [#allocation4], 4
      %s24 = int_to_ptr.vmem [resolvable:$true] %s23
      %26 = dma.hbm_to_vmem [thread:$0]  %s22, 16, %s24, [#allocation5]
    $region13: #{encoder_pallas.13} parent=1 // pred_fallthru
      _
    // Predicated region
    $region14: #{encoder_pallas.13} parent=1 // pred_check
      _
    $region15: #{encoder_pallas.13} parent=1 // pred_check_branch
      %28 = sbr.rel (0) target = $region17
    $region16: #{encoder_pallas.13} parent=1 // pred_region
      %30 = vsyncadd [#allocation7], 0
      %s31 = sshll.u32 %s3, 4
      %s32 = int_to_ptr.hbm [resolvable:$true] %s31
      %s33 = sshll.u32 [#allocation6], 4
      %s34 = int_to_ptr.vmem [resolvable:$true] %s33
      %39 = dma.hbm_to_vmem [thread:$0]  %s32, 128, %s34, [#allocation7], 64, 64, 4
    $region17: #{encoder_pallas.13} parent=1 // pred_fallthru
      _
    // Predicated region
    $region18: #{encoder_pallas.13} parent=1 // pred_check
      _
    $region19: #{encoder_pallas.13} parent=1 // pred_check_branch
      %41 = sbr.rel (0) target = $region21
    $region20: #{encoder_pallas.13} parent=1 // pred_region
      %43 = vsyncadd [#allocation7], 0
      %s45 = sshll.u32 %s4, 4
      %s46 = int_to_ptr.hbm [resolvable:$true] %s45
      %s47 = sshll.u32 [#allocation8], 4
      %s48 = int_to_ptr.vmem [resolvable:$true] %s47
      %50 = dma.hbm_to_vmem [thread:$0]  %s46, 16, %s48, [#allocation7]
    $region21: #{encoder_pallas.13} parent=1 // pred_fallthru
      _
    // Predicated region
    $region22: #{encoder_pallas.13} parent=1 // pred_check
      _
    $region23: #{encoder_pallas.13} parent=1 // pred_check_branch
      %52 = sbr.rel (0) target = $region25
    $region24: #{encoder_pallas.13} parent=1 // pred_region
      %54 = dma.done [#allocation5], 16
    $region25: #{encoder_pallas.13} parent=1 // pred_fallthru
      _
    // Predicated region
    $region26: #{encoder_pallas.13} parent=1 // pred_check
      _
    $region27: #{encoder_pallas.13} parent=1 // pred_check_branch
      %56 = sbr.rel (0) target = $region29
    $region28: #{encoder_pallas.13} parent=1 // pred_region
      %58 = dma.done [#allocation7], 128
    $region29: #{encoder_pallas.13} parent=1 // pred_fallthru
      _
    // Predicated region
    $region30: #{encoder_pallas.13} parent=1 // pred_check
      _
    $region31: #{encoder_pallas.13} parent=1 // pred_check_branch
      %60 = sbr.rel (0) target = $region33
    $region32: #{encoder_pallas.13} parent=1 // pred_region
      %62 = dma.done [#allocation7], 16
    $region33: #{encoder_pallas.13} parent=1 // pred_fallthru
      _
    %vm64 = vcmask 123904
    %vm65 = vsmask.f32 1280
    %vm66 = vmand %vm64, %vm65
    %v67 = vld [vmem:[#allocation2] sm:$0x3]
    %v68 = vsel %vm66, 0, %v67
    %69 = vst [vmem:[#allocation2] sm:$0x3] %v68
    %vm70 = vcmask 124929
    %vm71 = vsmask.f32 7942
    %vm72 = vmand %vm70, %vm71
    %v73 = vld [vmem:[#allocation2 + $0x4] sm:$0x6]
    %v74 = vsel %vm72, 0, %v73
    %75 = vst [vmem:[#allocation2 + $0x4] sm:$0x6] %v74
    %v76 = vld [vmem:[%s0] sm:$0xf]
    %v77 = vunpack.c.l.bf16 %v76
    %v78 = vmax.f32 %v77, 0.0
    %v79 = vpack.c.bf16 %v78, %v78
    %v81 = vshrl.u32 %v79, 16
    %v83 = vrot.slane %v81, 6
    %v84 = vshll.u32 %v79, 16
    %v86 = vrot.slane %v84, 7
    %v87 = vor.u32 %v83, %v86
    %v88 = vrot.slane %v87, 4
    %vm91 = vcmask 125953
    %vm92 = vmand %vm91, %vm71
    %v93 = vld [vmem:[#allocation2] sm:$0xe]
    %v94 = vsel %vm92, %v87, %v93
    %95 = vst [vmem:[#allocation2] sm:$0xe] %v94
    %v96 = vld [vmem:[#allocation2 + $0x4] sm:$0x3]
    %v97 = vsel %vm66, %v88, %v96
    %98 = vst [vmem:[#allocation2 + $0x4] sm:$0x3] %v97
    %vm99 = vcmask 125955
    %100 = vst.msk [vmem:[#allocation2 + $0x4] sm:$0x8] %vm99, 0
    %vm101 = vcmask 122880
    %vm102 = vsmask.f32 256
    %vm103 = vmand %vm101, %vm102
    %v104 = vld [vmem:[#allocation2 + $0x8] sm:$0x1]
    %v105 = vsel %vm103, 0, %v104
    %106 = vst [vmem:[#allocation2 + $0x8] sm:$0x1] %v105
    %vm107 = vsmask.f32 7938
    %vm108 = vmand %vm64, %vm107
    %v109 = vld [vmem:[#allocation2 + $0xc] sm:$0x3]
    %v110 = vsel %vm108, 0, %v109
    %111 = vst [vmem:[#allocation2 + $0xc] sm:$0x3] %v110
    %s112 = scalar_lea.vmem %s0, 4
    %v113 = vld [vmem:[%s112] sm:$0xf]
    %v114 = vunpack.c.l.bf16 %v113
    %v115 = vmax.f32 %v114, 0.0
    %v116 = vpack.c.bf16 %v115, %v115
    %v118 = vshrl.u32 %v116, 16
    %v120 = vrot.slane %v118, 7
    %v121 = vshll.u32 %v116, 16
    %v123 = vor.u32 %v120, %v121
    %v124 = vrot.slane %v120, 4
    %vm127 = vcmask 125952
    %vm128 = vmand %vm127, %vm107
    %v129 = vld [vmem:[#allocation2 + $0x8] sm:$0xf]
    %v130 = vsel %vm128, %v123, %v129
    %131 = vst [vmem:[#allocation2 + $0x8] sm:$0xf] %v130
    %v132 = vld [vmem:[#allocation2 + $0xc] sm:$0x1]
    %v133 = vsel %vm103, %v124, %v132
    %134 = vst [vmem:[#allocation2 + $0xc] sm:$0x1] %v133
    %v135 = vld [vmem:[#allocation2] sm:$0xf]
    %v136 = vld [vmem:[#allocation2 + $0x4] sm:$0xf]
    %v137 = vld [vmem:[#allocation2 + $0x8] sm:$0x7]
    %v138 = vld [vmem:[%s1] sm:$0xf]
    %v139 = vld [vmem:[%s1 + $0x4] sm:$0xf]
    %v140 = vld [vmem:[#allocation2] sm:$0xe]
    %v141 = vld [vmem:[#allocation2 + $0x8] sm:$0xf]
    %v142 = vld [vmem:[#allocation2 + $0xc] sm:$0x1]
    %s143 = scalar_lea.vmem %s1, 8
    %v144 = vld [vmem:[%s143] sm:$0xf]
    %v145 = vld [vmem:[%s143 + $0x4] sm:$0xf]
    %v150 = vunpack.c.l.b16 %v140
    %v151 = vunpack.c.l.b16 %v136
    %v152 = vunpack.c.l.b16 %v141
    %v153 = vunpack.c.l.b16 %v142
    %v154 = vpack.c.b16 %v151, %v150
    %v155 = vpack.c.b16 %v153, %v152
    %vm156 = vsmask.f32 6400
    %v158 = vshrl.u32 %v154, 16
    %v160 = vrot.slane %v158, 1
    %v161 = vshll.u32 %v154, 16
    %v163 = vrot.slane %v161, 2
    %v164 = vor.u32 %v160, %v163
    %v166 = vshrl.u32 %v155, 16
    %v168 = vrot.slane %v166, 1
    %v169 = vshll.u32 %v155, 16
    %v171 = vrot.slane %v169, 2
    %v172 = vor.u32 %v168, %v171
    %v173 = vsel %vm156, %v164, %v172
    %v176 = vunpack.c.l.b16 %v144
    %v177 = vunpack.c.l.b16 %v145
    %v178 = vpack.c.b16 %v177, %v176
    %vm180 = vcmask 130048
    %v182 = vsel %vm180, %v173, 0
    %v185 = vsel %vm180, %v172, 0
    %187 = vmatpush.bf16.msra.mxu0 0
    %188 = vmatpush.bf16.msra.mxu0 0
    %189 = vmatpush.bf16.msra.mxu0 0
    %190 = vmatpush.bf16.msra.mxu0 0
    %191 = vmatpush.bf16.msra.mxu0 0
    %192 = vmatpush.bf16.msra.mxu0 0
    %193 = vmatpush.bf16.msra.mxu0 0
    %194 = vmatpush.bf16.msra.mxu0 %v178
    %195 = vmatmul.bf16.gmra.mxu0 %v182
    %v196 = vpop.f32.mrf.mxu0
    %v197 = vadd.f32 0.0, %v196
    %v198 = vpop.f32.mrf.mxu0
    %v199 = vadd.f32 0.0, %v198
    %200 = vmatmul.bf16.gmra.mxu0 %v185
    %v201 = vpop.f32.mrf.mxu0
    %v202 = vadd.f32 0.0, %v201
    %v203 = vpop.f32.mrf.mxu0
    %204 = vdwg.mxu0
    %v207 = vunpack.c.l.b16 %v135
    %v208 = vunpack.c.l.b16 %v137
    %v209 = vpack.c.b16 %v151, %v207
    %v210 = vpack.c.b16 %v208, %v208
    %v213 = vunpack.c.l.b16 %v138
    %v214 = vunpack.c.l.b16 %v139
    %v215 = vpack.c.b16 %v214, %v213
    %v218 = vsel %vm180, %v209, 0
    %v221 = vsel %vm180, %v210, 0
    %223 = vmatpush.bf16.msra.mxu0 0
    %224 = vmatpush.bf16.msra.mxu0 0
    %225 = vmatpush.bf16.msra.mxu0 0
    %226 = vmatpush.bf16.msra.mxu0 0
    %227 = vmatpush.bf16.msra.mxu0 0
    %228 = vmatpush.bf16.msra.mxu0 0
    %229 = vmatpush.bf16.msra.mxu0 0
    %230 = vmatpush.bf16.msra.mxu0 %v215
    %231 = vmatmul.bf16.gmra.mxu0 %v218
    %v232 = vpop.f32.mrf.mxu0
    %v233 = vadd.f32 %v197, %v232
    %v234 = vpop.f32.mrf.mxu0
    %v235 = vadd.f32 %v199, %v234
    %236 = vmatmul.bf16.gmra.mxu0 %v221
    %v237 = vpop.f32.mrf.mxu0
    %v238 = vadd.f32 %v202, %v237
    %v239 = vpop.f32.mrf.mxu0
    %240 = vdwg.mxu0
    %v241 = vld [vmem:[#allocation2] sm:$0x8]
    %v242 = vld [vmem:[#allocation2 + $0xc] sm:$0x3]
    %s243 = scalar_lea.vmem %s1, 16
    %v244 = vld [vmem:[%s243] sm:$0xf]
    %v245 = vld [vmem:[%s243 + $0x4] sm:$0xf]
    %v248 = vunpack.c.l.b16 %v241
    %v249 = vunpack.c.l.b16 %v242
    %v250 = vpack.c.b16 %v151, %v248
    %v251 = vpack.c.b16 %v249, %v152
    %vm252 = vcmask 1044480
    %v253 = vrot.slane %v250, 3
    %v254 = vrot.slane %v251, 3
    %v255 = vsel %vm252, %v253, %v254
    %v258 = vunpack.c.l.b16 %v244
    %v259 = vunpack.c.l.b16 %v245
    %v260 = vpack.c.b16 %v259, %v258
    %v263 = vsel %vm180, %v255, 0
    %v266 = vsel %vm180, %v254, 0
    %268 = vmatpush.bf16.msra.mxu0 0
    %269 = vmatpush.bf16.msra.mxu0 0
    %270 = vmatpush.bf16.msra.mxu0 0
    %271 = vmatpush.bf16.msra.mxu0 0
    %272 = vmatpush.bf16.msra.mxu0 0
    %273 = vmatpush.bf16.msra.mxu0 0
    %274 = vmatpush.bf16.msra.mxu0 0
    %275 = vmatpush.bf16.msra.mxu0 %v260
    %276 = vmatmul.bf16.gmra.mxu0 %v263
    %v277 = vpop.f32.mrf.mxu0
    %v278 = vadd.f32 0.0, %v277
    %v279 = vpop.f32.mrf.mxu0
    %v280 = vadd.f32 0.0, %v279
    %281 = vmatmul.bf16.gmra.mxu0 %v266
    %v282 = vpop.f32.mrf.mxu0
    %v283 = vadd.f32 0.0, %v282
    %v284 = vpop.f32.mrf.mxu0
    %285 = vdwg.mxu0
    %v286 = vadd.f32 %v233, %v278
    %v287 = vadd.f32 %v235, %v280
    %v288 = vadd.f32 %v238, %v283
    %v289 = vld [vmem:[#allocation4] sm:$0x1]
    %v291 = vperm.slane %v289, 0
    %v293 = vadd.f32 %v286, %v291
    %v294 = vadd.f32 %v287, %v291
    %v295 = vadd.f32 %v288, %v291
    %v296 = vmax.f32 %v293, 0.0
    %297 = vst.msk [vmem:[#allocation3] sm:$0xff] %vm180, %v296
    %v298 = vmax.f32 %v294, 0.0
    %v299 = vmax.f32 %v295, 0.0
    %vm300 = vcmask 130054
    %301 = vst.msk [vmem:[#allocation3 + $0x2] sm:$0xc0] %vm300, %v298
    %vm302 = vcmask 128000
    %303 = vst.msk [vmem:[#allocation3 + $0xa] sm:$0x3f] %vm302, %v299
    %v304 = vld [vmem:[#allocation3] sm:$0xff]
    %v305 = vld [vmem:[#allocation3 + $0x8] sm:$0xff]
    %v306 = vld [vmem:[#allocation6] sm:$0xf]
    %v307 = vld [vmem:[#allocation6 + $0x4] sm:$0xf]
    %v308 = vld [vmem:[#allocation8] sm:$0x1]
    %v310 = vperm.slane %v308, 0
    %v314 = vunpack.c.l.b16 %v306
    %v315 = vunpack.c.l.b16 %v307
    %v316 = vpack.c.b16 %v315, %v314
    %v319 = vsel %vm180, %v304, 0
    %v322 = vsel %vm180, %v305, 0
    %324 = vmatpush.bf16.msra.mxu0 0
    %325 = vmatpush.bf16.msra.mxu0 0
    %326 = vmatpush.bf16.msra.mxu0 0
    %327 = vmatpush.bf16.msra.mxu0 0
    %328 = vmatpush.bf16.msra.mxu0 0
    %329 = vmatpush.bf16.msra.mxu0 0
    %330 = vmatpush.bf16.msra.mxu0 0
    %331 = vmatpush.bf16.msra.mxu0 %v316
    %332 = vmatmul.f32.gmra.mxu0 %v319
    %v333 = vpop.f32.mrf.mxu0
    %v334 = vadd.f32 %v310, %v333
    %335 = vmatmul.f32.gmra.mxu0 %v322
    %v336 = vpop.f32.mrf.mxu0
    %v337 = vadd.f32 %v310, %v336
    %338 = vdwg.mxu0
    %v339 = vld [vmem:[%s0] sm:$0xf]
    %v340 = vunpack.c.l.bf16 %v339
    %v341 = vadd.f32 %v334, %v340
    %v342 = vpack.c.bf16 %v341, %v341
    %vm343 = vcmask 125952
    %344 = vst.msk [vmem:[%s5] sm:$0xf] %vm343, %v342
    %v345 = vld [vmem:[%s112] sm:$0xf]
    %v346 = vunpack.c.l.bf16 %v345
    %v347 = vadd.f32 %v337, %v346
    %v348 = vpack.c.bf16 %v347, %v347
    %s349 = scalar_lea.vmem %s5, 4
    %350 = vst.msk [vmem:[%s349] sm:$0xf] %vm343, %v348
    // Predicated region
    $region34: #{encoder_pallas.13} parent=1 // pred_check
      _
    $region35: #{encoder_pallas.13} parent=1 // pred_check_branch
      %352 = sbr.rel (0) target = $region37
    $region36: #{encoder_pallas.13} parent=1 // pred_region
      _
    $region37: #{encoder_pallas.13} parent=1 // pred_fallthru
      _
    // Predicated region
    $region38: #{encoder_pallas.13} parent=1 // pred_check
      _
    $region39: #{encoder_pallas.13} parent=1 // pred_check_branch
      %354 = sbr.rel (0) target = $region41
    $region40: #{encoder_pallas.13} parent=1 // pred_region
      _
    $region41: #{encoder_pallas.13} parent=1 // pred_fallthru
      _
    %355 = vsyncpa [#allocation5], 1
    %356 = vsyncpa [#allocation7], 1

// kernel: encoder_pallas.11
$region0: #{encoder_pallas.11}
  #allocation0 [shape = 'u32[]', space=smem, size = 0x4, offset = 0x4, fixed_abs, tag = 'smem constant byte address 0x4 - core index']
  #allocation1 [shape = 'u32[72,128]{1,0:T(1,128)}', space=vmem, size = 0x9000, scoped, tag = 'internal scratch']
  #allocation2 [shape = 'bf16[20,32]{1,0:T(8,128)(2,1)}', space=vmem, size = 0x1800, scoped, tag = 'scratch operand']
  %s0 = inlined_call_operand.vmem [shape: bf16[2,8,32], index: 0, kind: input, shape index: {}]
  %s1 = inlined_call_operand.vmem [shape: bf16[3,32,16], index: 1, kind: input, shape index: {}]
  %s2 = inlined_call_operand.vmem [shape: f32[1,16], index: 2, kind: input, shape index: {}]
  %s3 = inlined_call_operand.vmem [shape: bf16[2,8,16], index: 3, kind: output, shape index: {}]
  %s4 = sld [smem:[#allocation0]]
  $region22: #{encoder_pallas.11} parent=0
    _
  %s6 = ssub.s32 1, %s4
  %s7 = scalar_select 0, %s6, %s4
  // Predicated region
  $region2: #{encoder_pallas.11} parent=0 // pred_check
    _
  $region3: #{encoder_pallas.11} parent=0 // pred_check_branch
    %9 = sbr.rel (0) target = $region5
  $region4: #{encoder_pallas.11} parent=0 // pred_region
    _
  $region5: #{encoder_pallas.11} parent=0 // pred_fallthru
    _
  // Predicated region
  $region6: #{encoder_pallas.11} parent=0 // pred_check
    _
  $region7: #{encoder_pallas.11} parent=0 // pred_check_branch
    %11 = sbr.rel (0) target = $region9
  $region8: #{encoder_pallas.11} parent=0 // pred_region
    _
  $region9: #{encoder_pallas.11} parent=0 // pred_fallthru
    _
  // Predicated region
  $region10: #{encoder_pallas.11} parent=0 // pred_check
    _
  $region11: #{encoder_pallas.11} parent=0 // pred_check_branch
    %13 = sbr.rel (0) target = $region13
  $region12: #{encoder_pallas.11} parent=0 // pred_region
    _
  $region13: #{encoder_pallas.11} parent=0 // pred_fallthru
    _
  %vm15 = vcmask 253952
  %vm16 = vsmask.f32 256
  %vm17 = vmand %vm15, %vm16
  %v18 = vld [vmem:[#allocation2] sm:$0x1]
  %v19 = vsel %vm17, 0, %v18
  %20 = vst [vmem:[#allocation2] sm:$0x1] %v19
  %vm21 = vsmask.f32 7938
  %vm22 = vmand %vm15, %vm21
  %v23 = vld [vmem:[#allocation2 + $0x4] sm:$0x1]
  %v24 = vsel %vm22, 0, %v23
  %25 = vst [vmem:[#allocation2 + $0x4] sm:$0x1] %v24
  %v26 = vld [vmem:[%s0] sm:$0xf]
  %v28 = vshrl.u32 %v26, 16
  %v30 = vrot.slane %v28, 7
  %v31 = vshll.u32 %v26, 16
  %v33 = vor.u32 %v30, %v31
  %v34 = vrot.slane %v30, 4
  %vm37 = vcmask 257024
  %vm38 = vmand %vm37, %vm21
  %v39 = vld [vmem:[#allocation2] sm:$0xf]
  %v40 = vsel %vm38, %v33, %v39
  %41 = vst [vmem:[#allocation2] sm:$0xf] %v40
  %v42 = vld [vmem:[#allocation2 + $0x4] sm:$0x1]
  %v43 = vsel %vm17, %v34, %v42
  %44 = vst [vmem:[#allocation2 + $0x4] sm:$0x1] %v43
  %vm45 = vcmask 254977
  %vm46 = vsmask.f32 1280
  %vm47 = vmand %vm45, %vm46
  %v48 = vld [vmem:[#allocation2 + $0x4] sm:$0x2]
  %v49 = vsel %vm47, 0, %v48
  %50 = vst [vmem:[#allocation2 + $0x4] sm:$0x2] %v49
  %vm51 = vsmask.f32 7942
  %vm52 = vmand %vm45, %vm51
  %v53 = vld [vmem:[#allocation2 + $0x8] sm:$0x2]
  %v54 = vsel %vm52, 0, %v53
  %55 = vst [vmem:[#allocation2 + $0x8] sm:$0x2] %v54
  %s56 = scalar_lea.vmem %s0, 4
  %v57 = vld [vmem:[%s56] sm:$0xf]
  %v59 = vshrl.u32 %v57, 16
  %v61 = vrot.slane %v59, 6
  %v62 = vshll.u32 %v57, 16
  %v64 = vrot.slane %v62, 7
  %v65 = vor.u32 %v61, %v64
  %v66 = vrot.slane %v65, 4
  %vm69 = vcmask 257025
  %vm70 = vmand %vm69, %vm51
  %v71 = vld [vmem:[#allocation2 + $0x4] sm:$0xe]
  %v72 = vsel %vm70, %v65, %v71
  %73 = vst [vmem:[#allocation2 + $0x4] sm:$0xe] %v72
  %vm74 = vcmask 254976
  %vm75 = vmand %vm74, %vm46
  %v76 = vld [vmem:[#allocation2 + $0x8] sm:$0x3]
  %v77 = vsel %vm75, %v66, %v76
  %78 = vst [vmem:[#allocation2 + $0x8] sm:$0x3] %v77
  %v79 = vld [vmem:[#allocation2] sm:$0xf]
  %v80 = vld [vmem:[#allocation2 + $0x4] sm:$0xf]
  %v81 = vld [vmem:[#allocation2 + $0x8] sm:$0x1]
  %v82 = vld [vmem:[%s1] sm:$0xf]
  %v83 = vld [vmem:[%s1 + $0x4] sm:$0xf]
  %v84 = vld [vmem:[%s1 + $0x8] sm:$0xf]
  %v85 = vld [vmem:[%s1 + $0xc] sm:$0xf]
  %v86 = vld [vmem:[#allocation2 + $0x8] sm:$0x3]
  %s87 = scalar_lea.vmem %s1, 16
  %v88 = vld [vmem:[%s87] sm:$0xf]
  %v89 = vld [vmem:[%s87 + $0x4] sm:$0xf]
  %v90 = vld [vmem:[%s87 + $0x8] sm:$0xf]
  %v91 = vld [vmem:[%s87 + $0xc] sm:$0xf]
  %v95 = vunpack.c.l.b16 %v79
  %v96 = vunpack.c.l.b16 %v80
  %v97 = vunpack.c.l.b16 %v86
  %v98 = vpack.c.b16 %v96, %v95
  %v99 = vpack.c.b16 %v97, %v97
  %vm100 = vsmask.f32 7424
  %v102 = vshrl.u32 %v98, 16
  %v104 = vshll.u32 %v98, 16
  %v106 = vrot.slane %v104, 1
  %v107 = vor.u32 %v102, %v106
  %v109 = vshll.u32 %v99, 16
  %v111 = vrot.slane %v109, 1
  %v112 = vsel %vm100, %v107, %v111
  %v113 = vshrl.u32 %v99, 16
  %v115 = vor.u32 %v113, %v111
  %v120 = vunpack.c.l.b16 %v88
  %v121 = vunpack.c.l.b16 %v89
  %v122 = vunpack.c.l.b16 %v90
  %v123 = vunpack.c.l.b16 %v91
  %v124 = vpack.c.b16 %v121, %v120
  %v125 = vpack.c.b16 %v123, %v122
  %vm128 = vcmask 261120
  %v130 = vsel %vm128, %v112, 0
  %v133 = vsel %vm128, %v115, 0
  %135 = vmatpush.bf16.msra.mxu0 0
  %136 = vmatpush.bf16.msra.mxu0 0
  %137 = vmatpush.bf16.msra.mxu0 0
  %138 = vmatpush.bf16.msra.mxu0 0
  %139 = vmatpush.bf16.msra.mxu0 0
  %140 = vmatpush.bf16.msra.mxu0 0
  %141 = vmatpush.bf16.msra.mxu0 %v125
  %142 = vmatpush.bf16.msra.mxu0 %v124
  %143 = vmatmul.bf16.gmra.mxu0 %v130
  %v144 = vpop.f32.mrf.mxu0
  %v145 = vadd.f32 0.0, %v144
  %v146 = vpop.f32.mrf.mxu0
  %v147 = vadd.f32 0.0, %v146
  %148 = vmatmul.bf16.gmra.mxu0 %v133
  %v149 = vpop.f32.mrf.mxu0
  %v150 = vadd.f32 0.0, %v149
  %v151 = vpop.f32.mrf.mxu0
  %152 = vdwg.mxu0
  %v154 = vunpack.c.l.b16 %v81
  %v155 = vpack.c.b16 %v154, %v154
  %v160 = vunpack.c.l.b16 %v82
  %v161 = vunpack.c.l.b16 %v83
  %v162 = vunpack.c.l.b16 %v84
  %v163 = vunpack.c.l.b16 %v85
  %v164 = vpack.c.b16 %v161, %v160
  %v165 = vpack.c.b16 %v163, %v162
  %v168 = vsel %vm128, %v98, 0
  %v171 = vsel %vm128, %v155, 0
  %173 = vmatpush.bf16.msra.mxu0 0
  %174 = vmatpush.bf16.msra.mxu0 0
  %175 = vmatpush.bf16.msra.mxu0 0
  %176 = vmatpush.bf16.msra.mxu0 0
  %177 = vmatpush.bf16.msra.mxu0 0
  %178 = vmatpush.bf16.msra.mxu0 0
  %179 = vmatpush.bf16.msra.mxu0 %v165
  %180 = vmatpush.bf16.msra.mxu0 %v164
  %181 = vmatmul.bf16.gmra.mxu0 %v168
  %v182 = vpop.f32.mrf.mxu0
  %v183 = vadd.f32 %v145, %v182
  %v184 = vpop.f32.mrf.mxu0
  %v185 = vadd.f32 %v147, %v184
  %186 = vmatmul.bf16.gmra.mxu0 %v171
  %v187 = vpop.f32.mrf.mxu0
  %v188 = vadd.f32 %v150, %v187
  %v189 = vpop.f32.mrf.mxu0
  %190 = vdwg.mxu0
  %v191 = vld [vmem:[#allocation2] sm:$0xe]
  %s192 = scalar_lea.vmem %s1, 32
  %v193 = vld [vmem:[%s192] sm:$0xf]
  %v194 = vld [vmem:[%s192 + $0x4] sm:$0xf]
  %v195 = vld [vmem:[%s192 + $0x8] sm:$0xf]
  %v196 = vld [vmem:[%s192 + $0xc] sm:$0xf]
  %v198 = vunpack.c.l.b16 %v191
  %v199 = vpack.c.b16 %v96, %v198
  %vm200 = vcmask 1046528
  %v201 = vrot.slane %v199, 1
  %v202 = vrot.slane %v99, 1
  %v203 = vsel %vm200, %v201, %v202
  %v208 = vunpack.c.l.b16 %v193
  %v209 = vunpack.c.l.b16 %v194
  %v210 = vunpack.c.l.b16 %v195
  %v211 = vunpack.c.l.b16 %v196
  %v212 = vpack.c.b16 %v209, %v208
  %v213 = vpack.c.b16 %v211, %v210
  %v217 = vsel %vm128, %v203, 0
  %v220 = vsel %vm128, %v202, 0
  %222 = vmatpush.bf16.msra.mxu0 0
  %223 = vmatpush.bf16.msra.mxu0 0
  %224 = vmatpush.bf16.msra.mxu0 0
  %225 = vmatpush.bf16.msra.mxu0 0
  %226 = vmatpush.bf16.msra.mxu0 0
  %227 = vmatpush.bf16.msra.mxu0 0
  %228 = vmatpush.bf16.msra.mxu0 %v213
  %229 = vmatpush.bf16.msra.mxu0 %v212
  %230 = vmatmul.bf16.gmra.mxu0 %v217
  %v231 = vpop.f32.mrf.mxu0
  %v232 = vadd.f32 0.0, %v231
  %v233 = vpop.f32.mrf.mxu0
  %v234 = vadd.f32 0.0, %v233
  %235 = vmatmul.bf16.gmra.mxu0 %v220
  %v236 = vpop.f32.mrf.mxu0
  %v237 = vadd.f32 0.0, %v236
  %v238 = vpop.f32.mrf.mxu0
  %239 = vdwg.mxu0
  %v240 = vadd.f32 %v183, %v232
  %v241 = vadd.f32 %v185, %v234
  %v242 = vadd.f32 %v188, %v237
  %v243 = vld [vmem:[%s2] sm:$0x1]
  %v245 = vperm.slane %v243, 0
  %v247 = vadd.f32 %v240, %v245
  %v248 = vadd.f32 %v241, %v245
  %v249 = vadd.f32 %v242, %v245
  %v250 = vpack.c.bf16 %v247, %v247
  %vm251 = vcmask 125952
  %252 = vst.msk [vmem:[%s3] sm:$0xf] %vm251, %v250
  %v253 = vpack.c.bf16 %v248, %v248
  %v254 = vpack.c.bf16 %v249, %v249
  %vm257 = vcmask 1042432
  %vm258 = vcmask 1046532
  %vm259 = vmor %vm257, %vm258
  %v260 = vrot.slane %v253, 5
  %v261 = vrot.slane %v260, 4
  %v262 = vrot.slane %v254, 5
  %v263 = vsel %vm259, %v261, %v262
  %s265 = scalar_lea.vmem %s3, 4
  %266 = vst.msk [vmem:[%s265] sm:$0xf] %vm251, %v263
  // Predicated region
  $region14: #{encoder_pallas.11} parent=0 // pred_check
    _
  $region15: #{encoder_pallas.11} parent=0 // pred_check_branch
    %268 = sbr.rel (0) target = $region17
  $region16: #{encoder_pallas.11} parent=0 // pred_region
    _
  $region17: #{encoder_pallas.11} parent=0 // pred_fallthru
    _
  // Predicated region
  $region18: #{encoder_pallas.11} parent=0 // pred_check
    _
  $region19: #{encoder_pallas.11} parent=0 // pred_check_branch
    %270 = sbr.rel (0) target = $region21
  $region20: #{encoder_pallas.11} parent=0 // pred_region
    _
  $region21: #{encoder_pallas.11} parent=0 // pred_fallthru
    _

// kernel: encoder_pallas.14
$region0: #{encoder_pallas.14}
  #allocation0 [shape = 'u32[]', space=smem, size = 0x4, offset = 0x4, fixed_abs, tag = 'smem constant byte address 0x4 - core index']
  #allocation1 [shape = 'u32[72,128]{1,0:T(1,128)}', space=vmem, size = 0x9000, scoped, tag = 'internal scratch']
  #allocation2 [shape = 'bf16[20,16]{1,0:T(8,128)(2,1)}', space=vmem, size = 0x1800, scoped, tag = 'scratch operand']
  #allocation3 [shape = 'f32[16,16]{1,0:T(8,128)}', space=vmem, size = 0x2000, scoped, tag = 'scratch operand']
  %s0 = inlined_call_operand.vmem [shape: bf16[2,8,16], index: 0, kind: input, shape index: {}]
  %s1 = inlined_call_operand.vmem [shape: bf16[3,16,16], index: 1, kind: input, shape index: {}]
  %s2 = inlined_call_operand.vmem [shape: f32[1,16], index: 2, kind: input, shape index: {}]
  %s3 = inlined_call_operand.vmem [shape: bf16[16,16], index: 3, kind: input, shape index: {}]
  %s4 = inlined_call_operand.hbm [shape: f32[1,16], index: 4, kind: input, shape index: {}]
  %s5 = inlined_call_operand.vmem [shape: bf16[2,8,16], index: 5, kind: output, shape index: {}]
  %s6 = sld [smem:[#allocation0]]
  $region34: #{encoder_pallas.14} parent=0
    _
  %s8 = ssub.s32 1, %s6
  %s9 = scalar_select 0, %s8, %s6
  $region1: #{encoder_pallas.14} parent=0
    #allocation4 [shape = 'u8[512]{0}', space=vmem, size = 0x400, scoped, tag = 'input window, operand 4, single buffered']
    #allocation5 [shape = 's32[1]{0}', space=sflag, size = 0x4, scoped, tag = 'scoped memory for encoder_pallas.14']
    %10 = vsyncpa [#allocation5], 0
    // Predicated region
    $region2: #{encoder_pallas.14} parent=1 // pred_check
      _
    $region3: #{encoder_pallas.14} parent=1 // pred_check_branch
      %12 = sbr.rel (0) target = $region5
    $region4: #{encoder_pallas.14} parent=1 // pred_region
      _
    $region5: #{encoder_pallas.14} parent=1 // pred_fallthru
      _
    // Predicated region
    $region6: #{encoder_pallas.14} parent=1 // pred_check
      _
    $region7: #{encoder_pallas.14} parent=1 // pred_check_branch
      %14 = sbr.rel (0) target = $region9
    $region8: #{encoder_pallas.14} parent=1 // pred_region
      _
    $region9: #{encoder_pallas.14} parent=1 // pred_fallthru
      _
    // Predicated region
    $region10: #{encoder_pallas.14} parent=1 // pred_check
      _
    $region11: #{encoder_pallas.14} parent=1 // pred_check_branch
      %16 = sbr.rel (0) target = $region13
    $region12: #{encoder_pallas.14} parent=1 // pred_region
      _
    $region13: #{encoder_pallas.14} parent=1 // pred_fallthru
      _
    // Predicated region
    $region14: #{encoder_pallas.14} parent=1 // pred_check
      _
    $region15: #{encoder_pallas.14} parent=1 // pred_check_branch
      %18 = sbr.rel (0) target = $region17
    $region16: #{encoder_pallas.14} parent=1 // pred_region
      _
    $region17: #{encoder_pallas.14} parent=1 // pred_fallthru
      _
    // Predicated region
    $region18: #{encoder_pallas.14} parent=1 // pred_check
      _
    $region19: #{encoder_pallas.14} parent=1 // pred_check_branch
      %20 = sbr.rel (0) target = $region21
    $region20: #{encoder_pallas.14} parent=1 // pred_region
      %22 = vsyncadd [#allocation5], 0
      %s24 = sshll.u32 %s4, 4
      %s25 = int_to_ptr.hbm [resolvable:$true] %s24
      %s26 = sshll.u32 [#allocation4], 4
      %s27 = int_to_ptr.vmem [resolvable:$true] %s26
      %29 = dma.hbm_to_vmem [thread:$0]  %s25, 16, %s27, [#allocation5]
    $region21: #{encoder_pallas.14} parent=1 // pred_fallthru
      _
    // Predicated region
    $region22: #{encoder_pallas.14} parent=1 // pred_check
      _
    $region23: #{encoder_pallas.14} parent=1 // pred_check_branch
      %31 = sbr.rel (0) target = $region25
    $region24: #{encoder_pallas.14} parent=1 // pred_region
      %33 = dma.done [#allocation5], 16
    $region25: #{encoder_pallas.14} parent=1 // pred_fallthru
      _
    %vm35 = vcmask 122880
    %vm36 = vsmask.f32 256
    %vm37 = vmand %vm35, %vm36
    %v38 = vld [vmem:[#allocation2] sm:$0x1]
    %v39 = vsel %vm37, 0, %v38
    %40 = vst [vmem:[#allocation2] sm:$0x1] %v39
    %vm41 = vsmask.f32 7938
    %vm42 = vmand %vm35, %vm41
    %v43 = vld [vmem:[#allocation2 + $0x4] sm:$0x1]
    %v44 = vsel %vm42, 0, %v43
    %45 = vst [vmem:[#allocation2 + $0x4] sm:$0x1] %v44
    %v46 = vld [vmem:[%s0] sm:$0xf]
    %v47 = vunpack.c.l.bf16 %v46
    %v48 = vmax.f32 %v47, 0.0
    %v49 = vpack.c.bf16 %v48, %v48
    %v51 = vshrl.u32 %v49, 16
    %v53 = vrot.slane %v51, 7
    %v54 = vshll.u32 %v49, 16
    %v56 = vor.u32 %v53, %v54
    %v57 = vrot.slane %v53, 4
    %vm60 = vcmask 125952
    %vm61 = vmand %vm60, %vm41
    %v62 = vld [vmem:[#allocation2] sm:$0xf]
    %v63 = vsel %vm61, %v56, %v62
    %64 = vst [vmem:[#allocation2] sm:$0xf] %v63
    %v65 = vld [vmem:[#allocation2 + $0x4] sm:$0x1]
    %v66 = vsel %vm37, %v57, %v65
    %67 = vst [vmem:[#allocation2 + $0x4] sm:$0x1] %v66
    %vm68 = vcmask 123905
    %vm69 = vsmask.f32 1280
    %vm70 = vmand %vm68, %vm69
    %v71 = vld [vmem:[#allocation2 + $0x4] sm:$0x2]
    %v72 = vsel %vm70, 0, %v71
    %73 = vst [vmem:[#allocation2 + $0x4] sm:$0x2] %v72
    %vm74 = vsmask.f32 7942
    %vm75 = vmand %vm68, %vm74
    %v76 = vld [vmem:[#allocation2 + $0x8] sm:$0x2]
    %v77 = vsel %vm75, 0, %v76
    %78 = vst [vmem:[#allocation2 + $0x8] sm:$0x2] %v77
    %s79 = scalar_lea.vmem %s0, 4
    %v80 = vld [vmem:[%s79] sm:$0xf]
    %v81 = vunpack.c.l.bf16 %v80
    %v82 = vmax.f32 %v81, 0.0
    %v83 = vpack.c.bf16 %v82, %v82
    %v85 = vshrl.u32 %v83, 16
    %v87 = vrot.slane %v85, 6
    %v88 = vshll.u32 %v83, 16
    %v90 = vrot.slane %v88, 7
    %v91 = vor.u32 %v87, %v90
    %v92 = vrot.slane %v91, 4
    %vm95 = vcmask 125953
    %vm96 = vmand %vm95, %vm74
    %v97 = vld [vmem:[#allocation2 + $0x4] sm:$0xe]
    %v98 = vsel %vm96, %v91, %v97
    %99 = vst [vmem:[#allocation2 + $0x4] sm:$0xe] %v98
    %vm100 = vcmask 123904
    %vm101 = vmand %vm100, %vm69
    %v102 = vld [vmem:[#allocation2 + $0x8] sm:$0x3]
    %v103 = vsel %vm101, %v92, %v102
    %104 = vst [vmem:[#allocation2 + $0x8] sm:$0x3] %v103
    %v105 = vld [vmem:[#allocation2] sm:$0xf]
    %v106 = vld [vmem:[#allocation2 + $0x4] sm:$0xf]
    %v107 = vld [vmem:[#allocation2 + $0x8] sm:$0x1]
    %v108 = vld [vmem:[%s1] sm:$0xf]
    %v109 = vld [vmem:[%s1 + $0x4] sm:$0xf]
    %v110 = vld [vmem:[#allocation2 + $0x8] sm:$0x3]
    %s111 = scalar_lea.vmem %s1, 8
    %v112 = vld [vmem:[%s111] sm:$0xf]
    %v113 = vld [vmem:[%s111 + $0x4] sm:$0xf]
    %v117 = vunpack.c.l.b16 %v105
    %v118 = vunpack.c.l.b16 %v106
    %v119 = vunpack.c.l.b16 %v110
    %v120 = vpack.c.b16 %v118, %v117
    %v121 = vpack.c.b16 %v119, %v119
    %vm122 = vsmask.f32 7424
    %v124 = vshrl.u32 %v120, 16
    %v126 = vshll.u32 %v120, 16
    %v128 = vrot.slane %v126, 1
    %v129 = vor.u32 %v124, %v128
    %v131 = vshll.u32 %v121, 16
    %v133 = vrot.slane %v131, 1
    %v134 = vsel %vm122, %v129, %v133
    %v135 = vshrl.u32 %v121, 16
    %v137 = vor.u32 %v135, %v133
    %v140 = vunpack.c.l.b16 %v112
    %v141 = vunpack.c.l.b16 %v113
    %v142 = vpack.c.b16 %v141, %v140
    %vm144 = vcmask 130048
    %v146 = vsel %vm144, %v134, 0
    %v149 = vsel %vm144, %v137, 0
    %151 = vmatpush.bf16.msra.mxu0 0
    %152 = vmatpush.bf16.msra.mxu0 0
    %153 = vmatpush.bf16.msra.mxu0 0
    %154 = vmatpush.bf16.msra.mxu0 0
    %155 = vmatpush.bf16.msra.mxu0 0
    %156 = vmatpush.bf16.msra.mxu0 0
    %157 = vmatpush.bf16.msra.mxu0 0
    %158 = vmatpush.bf16.msra.mxu0 %v142
    %159 = vmatmul.bf16.gmra.mxu0 %v146
    %v160 = vpop.f32.mrf.mxu0
    %v161 = vadd.f32 0.0, %v160
    %v162 = vpop.f32.mrf.mxu0
    %v163 = vadd.f32 0.0, %v162
    %164 = vmatmul.bf16.gmra.mxu0 %v149
    %v165 = vpop.f32.mrf.mxu0
    %v166 = vadd.f32 0.0, %v165
    %v167 = vpop.f32.mrf.mxu0
    %168 = vdwg.mxu0
    %v170 = vunpack.c.l.b16 %v107
    %v171 = vpack.c.b16 %v170, %v170
    %v174 = vunpack.c.l.b16 %v108
    %v175 = vunpack.c.l.b16 %v109
    %v176 = vpack.c.b16 %v175, %v174
    %v178 = vsel %vm144, %v120, 0
    %v181 = vsel %vm144, %v171, 0
    %183 = vmatpush.bf16.msra.mxu0 0
    %184 = vmatpush.bf16.msra.mxu0 0
    %185 = vmatpush.bf16.msra.mxu0 0
    %186 = vmatpush.bf16.msra.mxu0 0
    %187 = vmatpush.bf16.msra.mxu0 0
    %188 = vmatpush.bf16.msra.mxu0 0
    %189 = vmatpush.bf16.msra.mxu0 0
    %190 = vmatpush.bf16.msra.mxu0 %v176
    %191 = vmatmul.bf16.gmra.mxu0 %v178
    %v192 = vpop.f32.mrf.mxu0
    %v193 = vadd.f32 %v161, %v192
    %v194 = vpop.f32.mrf.mxu0
    %v195 = vadd.f32 %v163, %v194
    %196 = vmatmul.bf16.gmra.mxu0 %v181
    %v197 = vpop.f32.mrf.mxu0
    %v198 = vadd.f32 %v166, %v197
    %v199 = vpop.f32.mrf.mxu0
    %200 = vdwg.mxu0
    %v201 = vld [vmem:[#allocation2] sm:$0xe]
    %s202 = scalar_lea.vmem %s1, 16
    %v203 = vld [vmem:[%s202] sm:$0xf]
    %v204 = vld [vmem:[%s202 + $0x4] sm:$0xf]
    %v206 = vunpack.c.l.b16 %v201
    %v207 = vpack.c.b16 %v118, %v206
    %vm208 = vcmask 1046528
    %v209 = vrot.slane %v207, 1
    %v210 = vrot.slane %v121, 1
    %v211 = vsel %vm208, %v209, %v210
    %v214 = vunpack.c.l.b16 %v203
    %v215 = vunpack.c.l.b16 %v204
    %v216 = vpack.c.b16 %v215, %v214
    %v219 = vsel %vm144, %v211, 0
    %v222 = vsel %vm144, %v210, 0
    %224 = vmatpush.bf16.msra.mxu0 0
    %225 = vmatpush.bf16.msra.mxu0 0
    %226 = vmatpush.bf16.msra.mxu0 0
    %227 = vmatpush.bf16.msra.mxu0 0
    %228 = vmatpush.bf16.msra.mxu0 0
    %229 = vmatpush.bf16.msra.mxu0 0
    %230 = vmatpush.bf16.msra.mxu0 0
    %231 = vmatpush.bf16.msra.mxu0 %v216
    %232 = vmatmul.bf16.gmra.mxu0 %v219
    %v233 = vpop.f32.mrf.mxu0
    %v234 = vadd.f32 0.0, %v233
    %v235 = vpop.f32.mrf.mxu0
    %v236 = vadd.f32 0.0, %v235
    %237 = vmatmul.bf16.gmra.mxu0 %v222
    %v238 = vpop.f32.mrf.mxu0
    %v239 = vadd.f32 0.0, %v238
    %v240 = vpop.f32.mrf.mxu0
    %241 = vdwg.mxu0
    %v242 = vadd.f32 %v193, %v234
    %v243 = vadd.f32 %v195, %v236
    %v244 = vadd.f32 %v198, %v239
    %v245 = vld [vmem:[%s2] sm:$0x1]
    %v247 = vperm.slane %v245, 0
    %v249 = vadd.f32 %v242, %v247
    %v250 = vadd.f32 %v243, %v247
    %v251 = vadd.f32 %v244, %v247
    %v252 = vmax.f32 %v249, 0.0
    %253 = vst.msk [vmem:[#allocation3] sm:$0xff] %vm144, %v252
    %v254 = vmax.f32 %v250, 0.0
    %v255 = vmax.f32 %v251, 0.0
    %vm256 = vcmask 130050
    %257 = vst.msk [vmem:[#allocation3 + $0x6] sm:$0xfc] %vm256, %v254
    %vm258 = vcmask 123904
    %259 = vst.msk [vmem:[#allocation3 + $0xe] sm:$0x3] %vm258, %v255
    %v260 = vld [vmem:[#allocation3] sm:$0xff]
    %v261 = vld [vmem:[#allocation3 + $0x8] sm:$0xff]
    %v262 = vld [vmem:[%s3] sm:$0xf]
    %v263 = vld [vmem:[%s3 + $0x4] sm:$0xf]
    %v264 = vld [vmem:[#allocation4] sm:$0x1]
    %v266 = vperm.slane %v264, 0
    %v270 = vunpack.c.l.b16 %v262
    %v271 = vunpack.c.l.b16 %v263
    %v272 = vpack.c.b16 %v271, %v270
    %v275 = vsel %vm144, %v260, 0
    %v278 = vsel %vm144, %v261, 0
    %280 = vmatpush.bf16.msra.mxu0 0
    %281 = vmatpush.bf16.msra.mxu0 0
    %282 = vmatpush.bf16.msra.mxu0 0
    %283 = vmatpush.bf16.msra.mxu0 0
    %284 = vmatpush.bf16.msra.mxu0 0
    %285 = vmatpush.bf16.msra.mxu0 0
    %286 = vmatpush.bf16.msra.mxu0 0
    %287 = vmatpush.bf16.msra.mxu0 %v272
    %288 = vmatmul.f32.gmra.mxu0 %v275
    %v289 = vpop.f32.mrf.mxu0
    %v290 = vadd.f32 %v266, %v289
    %291 = vmatmul.f32.gmra.mxu0 %v278
    %v292 = vpop.f32.mrf.mxu0
    %v293 = vadd.f32 %v266, %v292
    %294 = vdwg.mxu0
    %v295 = vld [vmem:[%s0] sm:$0xf]
    %v296 = vunpack.c.l.bf16 %v295
    %v297 = vadd.f32 %v290, %v296
    %v298 = vpack.c.bf16 %v297, %v297
    %vm299 = vcmask 125952
    %300 = vst.msk [vmem:[%s5] sm:$0xf] %vm299, %v298
    %v301 = vld [vmem:[%s79] sm:$0xf]
    %v302 = vunpack.c.l.bf16 %v301
    %v303 = vadd.f32 %v293, %v302
    %v304 = vpack.c.bf16 %v303, %v303
    %s305 = scalar_lea.vmem %s5, 4
    %306 = vst.msk [vmem:[%s305] sm:$0xf] %vm299, %v304
    // Predicated region
    $region26: #{encoder_pallas.14} parent=1 // pred_check
      _
    $region27: #{encoder_pallas.14} parent=1 // pred_check_branch
      %308 = sbr.rel (0) target = $region29
    $region28: #{encoder_pallas.14} parent=1 // pred_region
      _
    $region29: #{encoder_pallas.14} parent=1 // pred_fallthru
      _
    // Predicated region
    $region30: #{encoder_pallas.14} parent=1 // pred_check
      _
    $region31: #{encoder_pallas.14} parent=1 // pred_check_branch
      %310 = sbr.rel (0) target = $region33
    $region32: #{encoder_pallas.14} parent=1 // pred_region
      _
    $region33: #{encoder_pallas.14} parent=1 // pred_fallthru
      _
    %311 = vsyncpa [#allocation5], 1

// kernel: encoder_pallas.15
$region0: #{encoder_pallas.15}
  #allocation0 [shape = 'u32[]', space=smem, size = 0x4, offset = 0x4, fixed_abs, tag = 'smem constant byte address 0x4 - core index']
  #allocation1 [shape = 'u32[72,128]{1,0:T(1,128)}', space=vmem, size = 0x9000, scoped, tag = 'internal scratch']
  #allocation2 [shape = 'bf16[12,32]{1,0:T(8,128)(2,1)}', space=vmem, size = 0x1000, scoped, tag = 'scratch operand']
  %s0 = inlined_call_operand.vmem [shape: bf16[2,4,32], index: 0, kind: input, shape index: {}]
  %s1 = inlined_call_operand.vmem [shape: bf16[3,32,16], index: 1, kind: input, shape index: {}]
  %s2 = inlined_call_operand.hbm [shape: f32[1,16], index: 2, kind: input, shape index: {}]
  %s3 = inlined_call_operand.vmem [shape: bf16[2,4,16], index: 3, kind: output, shape index: {}]
  %s4 = sld [smem:[#allocation0]]
  $region26: #{encoder_pallas.15} parent=0
    _
  %s6 = ssub.s32 1, %s4
  %s7 = scalar_select 0, %s6, %s4
  $region1: #{encoder_pallas.15} parent=0
    #allocation3 [shape = 'u8[512]{0}', space=vmem, size = 0x400, scoped, tag = 'input window, operand 2, single buffered']
    #allocation4 [shape = 's32[1]{0}', space=sflag, size = 0x4, scoped, tag = 'scoped memory for encoder_pallas.15']
    %8 = vsyncpa [#allocation4], 0
    // Predicated region
    $region2: #{encoder_pallas.15} parent=1 // pred_check
      _
    $region3: #{encoder_pallas.15} parent=1 // pred_check_branch
      %10 = sbr.rel (0) target = $region5
    $region4: #{encoder_pallas.15} parent=1 // pred_region
      _
    $region5: #{encoder_pallas.15} parent=1 // pred_fallthru
      _
    // Predicated region
    $region6: #{encoder_pallas.15} parent=1 // pred_check
      _
    $region7: #{encoder_pallas.15} parent=1 // pred_check_branch
      %12 = sbr.rel (0) target = $region9
    $region8: #{encoder_pallas.15} parent=1 // pred_region
      _
    $region9: #{encoder_pallas.15} parent=1 // pred_fallthru
      _
    // Predicated region
    $region10: #{encoder_pallas.15} parent=1 // pred_check
      _
    $region11: #{encoder_pallas.15} parent=1 // pred_check_branch
      %14 = sbr.rel (0) target = $region13
    $region12: #{encoder_pallas.15} parent=1 // pred_region
      %16 = vsyncadd [#allocation4], 0
      %s18 = sshll.u32 %s2, 4
      %s19 = int_to_ptr.hbm [resolvable:$true] %s18
      %s20 = sshll.u32 [#allocation3], 4
      %s21 = int_to_ptr.vmem [resolvable:$true] %s20
      %23 = dma.hbm_to_vmem [thread:$0]  %s19, 16, %s21, [#allocation4]
    $region13: #{encoder_pallas.15} parent=1 // pred_fallthru
      _
    // Predicated region
    $region14: #{encoder_pallas.15} parent=1 // pred_check
      _
    $region15: #{encoder_pallas.15} parent=1 // pred_check_branch
      %25 = sbr.rel (0) target = $region17
    $region16: #{encoder_pallas.15} parent=1 // pred_region
      %27 = dma.done [#allocation4], 16
    $region17: #{encoder_pallas.15} parent=1 // pred_fallthru
      _
    %vm29 = vcmask 253952
    %vm30 = vsmask.f32 256
    %vm31 = vmand %vm29, %vm30
    %v32 = vld [vmem:[#allocation2] sm:$0x1]
    %v33 = vsel %vm31, 0, %v32
    %34 = vst [vmem:[#allocation2] sm:$0x1] %v33
    %vm35 = vcmask 256002
    %vm36 = vsmask.f32 7946
    %vm37 = vmand %vm35, %vm36
    %v38 = vld [vmem:[#allocation2] sm:$0x4]
    %v39 = vsel %vm37, 0, %v38
    %40 = vst [vmem:[#allocation2] sm:$0x4] %v39
    %v41 = vld [vmem:[%s0] sm:$0x3]
    %43 = vst [vmem:[#allocation1] ss:$2 sm:$0xff] %v41
    %v44 = vld.sshfl [vmem:[#allocation1] sm:$0xff pattern:$0x75643120]
    %v45 = vshrl.u32 %v44, 16
    %v47 = vrot.slane %v45, 7
    %v48 = vshll.u32 %v44, 16
    %v50 = vor.u32 %v47, %v48
    %vm52 = vcmask 256000
    %vm53 = vsmask.f32 2306
    %vm54 = vmand %vm52, %vm53
    %v55 = vld [vmem:[#allocation2] sm:$0x7]
    %v56 = vsel %vm54, %v50, %v55
    %57 = vst [vmem:[#allocation2] sm:$0x7] %v56
    %vm58 = vcmask 257027
    %vm59 = vsmask.f32 3328
    %vm60 = vmand %vm58, %vm59
    %v61 = vld [vmem:[#allocation2] sm:$0x8]
    %v62 = vsel %vm60, 0, %v61
    %63 = vst [vmem:[#allocation2] sm:$0x8] %v62
    %vm64 = vcmask 254977
    %vm65 = vsmask.f32 7942
    %vm66 = vmand %vm64, %vm65
    %v67 = vld [vmem:[#allocation2 + $0x4] sm:$0x2]
    %v68 = vsel %vm66, 0, %v67
    %69 = vst [vmem:[#allocation2 + $0x4] sm:$0x2] %v68
    %s70 = scalar_lea.vmem %s0, 2
    %v71 = vld [vmem:[%s70] sm:$0x3]
    %73 = vst [vmem:[#allocation1] ss:$2 sm:$0xff] %v71
    %v74 = vld.sshfl [vmem:[#allocation1] sm:$0xff pattern:$0x75643120]
    %v75 = vshll.u32 %v74, 16
    %v77 = vrot.slane %v75, 5
    %v78 = vshrl.u32 %v74, 16
    %v80 = vrot.slane %v78, 4
    %v81 = vor.u32 %v80, %v77
    %v82 = vrot.slane %v81, 4
    %vm85 = vsmask.f32 7950
    %vm86 = vmand %vm58, %vm85
    %v87 = vld [vmem:[#allocation2] sm:$0x8]
    %v88 = vsel %vm86, %v77, %v87
    %89 = vst [vmem:[#allocation2] sm:$0x8] %v88
    %vm90 = vcmask 254976
    %vm91 = vsmask.f32 1280
    %vm92 = vmand %vm90, %vm91
    %v93 = vld [vmem:[#allocation2 + $0x4] sm:$0x3]
    %v94 = vsel %vm92, %v82, %v93
    %95 = vst [vmem:[#allocation2 + $0x4] sm:$0x3] %v94
    %v96 = vld [vmem:[#allocation2] sm:$0xf]
    %v97 = vld [vmem:[#allocation2 + $0x4] sm:$0x1]
    %v98 = vld [vmem:[%s1] sm:$0xf]
    %v99 = vld [vmem:[%s1 + $0x4] sm:$0xf]
    %v100 = vld [vmem:[%s1 + $0x8] sm:$0xf]
    %v101 = vld [vmem:[%s1 + $0xc] sm:$0xf]
    %v102 = vld [vmem:[#allocation2 + $0x4] sm:$0x3]
    %s103 = scalar_lea.vmem %s1, 16
    %v104 = vld [vmem:[%s103] sm:$0xf]
    %v105 = vld [vmem:[%s103 + $0x4] sm:$0xf]
    %v106 = vld [vmem:[%s103 + $0x8] sm:$0xf]
    %v107 = vld [vmem:[%s103 + $0xc] sm:$0xf]
    %v110 = vunpack.c.l.b16 %v96
    %v111 = vunpack.c.l.b16 %v102
    %v112 = vpack.c.b16 %v111, %v110
    %v114 = vshrl.u32 %v112, 16
    %v116 = vshll.u32 %v112, 16
    %v118 = vrot.slane %v116, 1
    %v119 = vor.u32 %v114, %v118
    %v124 = vunpack.c.l.b16 %v104
    %v125 = vunpack.c.l.b16 %v105
    %v126 = vunpack.c.l.b16 %v106
    %v127 = vunpack.c.l.b16 %v107
    %v128 = vpack.c.b16 %v125, %v124
    %v129 = vpack.c.b16 %v127, %v126
    %vm132 = vcmask 261120
    %v134 = vsel %vm132, %v119, 0
    %136 = vmatpush.bf16.msra.mxu0 0
    %137 = vmatpush.bf16.msra.mxu0 0
    %138 = vmatpush.bf16.msra.mxu0 0
    %139 = vmatpush.bf16.msra.mxu0 0
    %140 = vmatpush.bf16.msra.mxu0 0
    %141 = vmatpush.bf16.msra.mxu0 0
    %142 = vmatpush.bf16.msra.mxu0 %v129
    %143 = vmatpush.bf16.msra.mxu0 %v128
    %144 = vmatmul.bf16.gmra.mxu0 %v134
    %v145 = vpop.f32.mrf.mxu0
    %v146 = vadd.f32 0.0, %v145
    %v147 = vpop.f32.mrf.mxu0
    %v148 = vadd.f32 0.0, %v147
    %149 = vdwg.mxu0
    %v151 = vunpack.c.l.b16 %v97
    %v152 = vpack.c.b16 %v151, %v110
    %v157 = vunpack.c.l.b16 %v98
    %v158 = vunpack.c.l.b16 %v99
    %v159 = vunpack.c.l.b16 %v100
    %v160 = vunpack.c.l.b16 %v101
    %v161 = vpack.c.b16 %v158, %v157
    %v162 = vpack.c.b16 %v160, %v159
    %v166 = vsel %vm132, %v152, 0
    %168 = vmatpush.bf16.msra.mxu0 0
    %169 = vmatpush.bf16.msra.mxu0 0
    %170 = vmatpush.bf16.msra.mxu0 0
    %171 = vmatpush.bf16.msra.mxu0 0
    %172 = vmatpush.bf16.msra.mxu0 0
    %173 = vmatpush.bf16.msra.mxu0 0
    %174 = vmatpush.bf16.msra.mxu0 %v162
    %175 = vmatpush.bf16.msra.mxu0 %v161
    %176 = vmatmul.bf16.gmra.mxu0 %v166
    %v177 = vpop.f32.mrf.mxu0
    %v178 = vadd.f32 %v146, %v177
    %v179 = vpop.f32.mrf.mxu0
    %v180 = vadd.f32 %v148, %v179
    %181 = vdwg.mxu0
    %v182 = vld [vmem:[#allocation2] sm:$0xe]
    %s183 = scalar_lea.vmem %s1, 32
    %v184 = vld [vmem:[%s183] sm:$0xf]
    %v185 = vld [vmem:[%s183 + $0x4] sm:$0xf]
    %v186 = vld [vmem:[%s183 + $0x8] sm:$0xf]
    %v187 = vld [vmem:[%s183 + $0xc] sm:$0xf]
    %v189 = vunpack.c.l.b16 %v182
    %v190 = vpack.c.b16 %v111, %v189
    %v191 = vrot.slane %v190, 1
    %v196 = vunpack.c.l.b16 %v184
    %v197 = vunpack.c.l.b16 %v185
    %v198 = vunpack.c.l.b16 %v186
    %v199 = vunpack.c.l.b16 %v187
    %v200 = vpack.c.b16 %v197, %v196
    %v201 = vpack.c.b16 %v199, %v198
    %v205 = vsel %vm132, %v191, 0
    %207 = vmatpush.bf16.msra.mxu0 0
    %208 = vmatpush.bf16.msra.mxu0 0
    %209 = vmatpush.bf16.msra.mxu0 0
    %210 = vmatpush.bf16.msra.mxu0 0
    %211 = vmatpush.bf16.msra.mxu0 0
    %212 = vmatpush.bf16.msra.mxu0 0
    %213 = vmatpush.bf16.msra.mxu0 %v201
    %214 = vmatpush.bf16.msra.mxu0 %v200
    %215 = vmatmul.bf16.gmra.mxu0 %v205
    %v216 = vpop.f32.mrf.mxu0
    %v217 = vadd.f32 0.0, %v216
    %v218 = vpop.f32.mrf.mxu0
    %v219 = vadd.f32 0.0, %v218
    %220 = vdwg.mxu0
    %v221 = vadd.f32 %v178, %v217
    %v222 = vadd.f32 %v180, %v219
    %v223 = vld [vmem:[#allocation3] sm:$0x1]
    %v225 = vperm.slane %v223, 0
    %v227 = vadd.f32 %v221, %v225
    %v228 = vadd.f32 %v222, %v225
    %v229 = vpack.c.bf16 %v227, %v227
    %vm230 = vcmask 123904
    %231 = vst.msk [vmem:[%s3] sm:$0x3] %vm230, %v229
    %v232 = vpack.c.bf16 %v228, %v228
    %234 = vst.sshfl [vmem:[#allocation1] sm:$0xff pattern:$0x75643120] %v229
    %236 = vst.sshfl [vmem:[#allocation1 + $0x10] sm:$0xff pattern:$0x75643120] %v232
    %s237 = scalar_lea.vmem [#allocation1], 1
    %v238 = vld [vmem:[%s237] ss:$2 sm:$0xff]
    %s240 = scalar_lea.vmem [#allocation1], 16
    %v241 = vld [vmem:[%s240] ss:$2 sm:$0xff]
    %vm243 = vcmask 1040384
    %vm244 = vcmask 1042434
    %vm245 = vmor %vm243, %vm244
    %vm246 = vcmask 1044484
    %vm247 = vmor %vm245, %vm246
    %vm248 = vcmask 1046534
    %vm249 = vmor %vm247, %vm248
    %v250 = vrot.slane %v238, 7
    %v251 = vrot.slane %v250, 2
    %v252 = vrot.slane %v241, 7
    %v253 = vsel %vm249, %v251, %v252
    %s255 = scalar_lea.vmem %s3, 2
    %256 = vst.msk [vmem:[%s255] sm:$0x3] %vm230, %v253
    // Predicated region
    $region18: #{encoder_pallas.15} parent=1 // pred_check
      _
    $region19: #{encoder_pallas.15} parent=1 // pred_check_branch
      %258 = sbr.rel (0) target = $region21
    $region20: #{encoder_pallas.15} parent=1 // pred_region
      _
    $region21: #{encoder_pallas.15} parent=1 // pred_fallthru
      _
    // Predicated region
    $region22: #{encoder_pallas.15} parent=1 // pred_check
      _
    $region23: #{encoder_pallas.15} parent=1 // pred_check_branch
      %260 = sbr.rel (0) target = $region25
    $region24: #{encoder_pallas.15} parent=1 // pred_region
      _
    $region25: #{encoder_pallas.15} parent=1 // pred_fallthru
      _
    %261 = vsyncpa [#allocation4], 1

// kernel: encoder_pallas.17
$region0: #{encoder_pallas.17}
  #allocation0 [shape = 'u32[]', space=smem, size = 0x4, offset = 0x4, fixed_abs, tag = 'smem constant byte address 0x4 - core index']
  #allocation1 [shape = 'u32[72,128]{1,0:T(1,128)}', space=vmem, size = 0x9000, scoped, tag = 'internal scratch']
  #allocation2 [shape = 'bf16[20,16]{1,0:T(8,128)(2,1)}', space=vmem, size = 0x1800, scoped, tag = 'scratch operand']
  #allocation3 [shape = 'f32[8,16]{1,0:T(8,128)}', space=vmem, size = 0x1000, scoped, tag = 'scratch operand']
  %s0 = inlined_call_operand.vmem [shape: bf16[2,4,16], index: 0, kind: input, shape index: {}]
  %s1 = inlined_call_operand.vmem [shape: bf16[3,16,16], index: 1, kind: input, shape index: {}]
  %s2 = inlined_call_operand.hbm [shape: f32[1,16], index: 2, kind: input, shape index: {}]
  %s3 = inlined_call_operand.vmem [shape: bf16[16,16], index: 3, kind: input, shape index: {}]
  %s4 = inlined_call_operand.hbm [shape: f32[1,16], index: 4, kind: input, shape index: {}]
  %s5 = inlined_call_operand.vmem [shape: bf16[2,4,16], index: 5, kind: output, shape index: {}]
  %s6 = sld [smem:[#allocation0]]
  $region38: #{encoder_pallas.17} parent=0
    _
  %s8 = ssub.s32 1, %s6
  %s9 = scalar_select 0, %s8, %s6
  $region1: #{encoder_pallas.17} parent=0
    #allocation4 [shape = 'u8[512]{0}', space=vmem, size = 0x400, scoped, tag = 'input window, operand 2, single buffered']
    #allocation5 [shape = 's32[1]{0}', space=sflag, size = 0x4, scoped, tag = 'scoped memory for encoder_pallas.17']
    #allocation6 [shape = 'u8[512]{0}', space=vmem, size = 0x400, scoped, tag = 'input window, operand 4, single buffered']
    #allocation7 [shape = 's32[1]{0}', space=sflag, size = 0x4, scoped, tag = 'scoped memory for encoder_pallas.17']
    %10 = vsyncpa [#allocation5], 0
    %11 = vsyncpa [#allocation7], 0
    // Predicated region
    $region2: #{encoder_pallas.17} parent=1 // pred_check
      _
    $region3: #{encoder_pallas.17} parent=1 // pred_check_branch
      %13 = sbr.rel (0) target = $region5
    $region4: #{encoder_pallas.17} parent=1 // pred_region
      _
    $region5: #{encoder_pallas.17} parent=1 // pred_fallthru
      _
    // Predicated region
    $region6: #{encoder_pallas.17} parent=1 // pred_check
      _
    $region7: #{encoder_pallas.17} parent=1 // pred_check_branch
      %15 = sbr.rel (0) target = $region9
    $region8: #{encoder_pallas.17} parent=1 // pred_region
      _
    $region9: #{encoder_pallas.17} parent=1 // pred_fallthru
      _
    // Predicated region
    $region10: #{encoder_pallas.17} parent=1 // pred_check
      _
    $region11: #{encoder_pallas.17} parent=1 // pred_check_branch
      %17 = sbr.rel (0) target = $region13
    $region12: #{encoder_pallas.17} parent=1 // pred_region
      %19 = vsyncadd [#allocation5], 0
      %s21 = sshll.u32 %s2, 4
      %s22 = int_to_ptr.hbm [resolvable:$true] %s21
      %s23 = sshll.u32 [#allocation4], 4
      %s24 = int_to_ptr.vmem [resolvable:$true] %s23
      %26 = dma.hbm_to_vmem [thread:$0]  %s22, 16, %s24, [#allocation5]
    $region13: #{encoder_pallas.17} parent=1 // pred_fallthru
      _
    // Predicated region
    $region14: #{encoder_pallas.17} parent=1 // pred_check
      _
    $region15: #{encoder_pallas.17} parent=1 // pred_check_branch
      %28 = sbr.rel (0) target = $region17
    $region16: #{encoder_pallas.17} parent=1 // pred_region
      _
    $region17: #{encoder_pallas.17} parent=1 // pred_fallthru
      _
    // Predicated region
    $region18: #{encoder_pallas.17} parent=1 // pred_check
      _
    $region19: #{encoder_pallas.17} parent=1 // pred_check_branch
      %30 = sbr.rel (0) target = $region21
    $region20: #{encoder_pallas.17} parent=1 // pred_region
      %32 = vsyncadd [#allocation7], 0
      %s34 = sshll.u32 %s4, 4
      %s35 = int_to_ptr.hbm [resolvable:$true] %s34
      %s36 = sshll.u32 [#allocation6], 4
      %s37 = int_to_ptr.vmem [resolvable:$true] %s36
      %39 = dma.hbm_to_vmem [thread:$0]  %s35, 16, %s37, [#allocation7]
    $region21: #{encoder_pallas.17} parent=1 // pred_fallthru
      _
    // Predicated region
    $region22: #{encoder_pallas.17} parent=1 // pred_check
      _
    $region23: #{encoder_pallas.17} parent=1 // pred_check_branch
      %41 = sbr.rel (0) target = $region25
    $region24: #{encoder_pallas.17} parent=1 // pred_region
      %43 = dma.done [#allocation5], 16
    $region25: #{encoder_pallas.17} parent=1 // pred_fallthru
      _
    // Predicated region
    $region26: #{encoder_pallas.17} parent=1 // pred_check
      _
    $region27: #{encoder_pallas.17} parent=1 // pred_check_branch
      %45 = sbr.rel (0) target = $region29
    $region28: #{encoder_pallas.17} parent=1 // pred_region
      %47 = dma.done [#allocation7], 16
    $region29: #{encoder_pallas.17} parent=1 // pred_fallthru
      _
    %vm49 = vcmask 123904
    %vm50 = vsmask.f32 1280
    %vm51 = vmand %vm49, %vm50
    %v52 = vld [vmem:[#allocation2] sm:$0x3]
    %v53 = vsel %vm51, 0, %v52
    %54 = vst [vmem:[#allocation2] sm:$0x3] %v53
    %vm55 = vcmask 125955
    %vm56 = vsmask.f32 7950
    %vm57 = vmand %vm55, %vm56
    %v58 = vld [vmem:[#allocation2] sm:$0x8]
    %v59 = vsel %vm57, 0, %v58
    %60 = vst [vmem:[#allocation2] sm:$0x8] %v59
    %vm61 = vcmask 122880
    %62 = vst.msk [vmem:[#allocation2 + $0x4] sm:$0x1] %vm61, 0
    %v63 = vld [vmem:[%s0] sm:$0x3]
    %v64 = vunpack.c.l.bf16 %v63
    %v65 = vmax.f32 %v64, 0.0
    %v66 = vpack.c.bf16 %v65, %v65
    %v68 = vshrl.u32 %v66, 16
    %v70 = vrot.slane %v68, 6
    %v71 = vshll.u32 %v66, 16
    %v73 = vrot.slane %v71, 7
    %v74 = vor.u32 %v70, %v73
    %vm76 = vcmask 125953
    %vm77 = vsmask.f32 3334
    %vm78 = vmand %vm76, %vm77
    %v79 = vld [vmem:[#allocation2] sm:$0xe]
    %v80 = vsel %vm78, %v74, %v79
    %81 = vst [vmem:[#allocation2] sm:$0xe] %v80
    %vm82 = vcmask 124929
    %vm83 = vsmask.f32 2304
    %vm84 = vmand %vm82, %vm83
    %v85 = vld [vmem:[#allocation2 + $0x4] sm:$0x6]
    %v86 = vsel %vm84, 0, %v85
    %87 = vst [vmem:[#allocation2 + $0x4] sm:$0x6] %v86
    %vm88 = vsmask.f32 7938
    %vm89 = vmand %vm49, %vm88
    %v90 = vld [vmem:[#allocation2 + $0x8] sm:$0x3]
    %v91 = vsel %vm89, 0, %v90
    %92 = vst [vmem:[#allocation2 + $0x8] sm:$0x3] %v91
    %s93 = scalar_lea.vmem %s0, 2
    %v94 = vld [vmem:[%s93] sm:$0x3]
    %v95 = vunpack.c.l.bf16 %v94
    %v96 = vmax.f32 %v95, 0.0
    %v97 = vpack.c.bf16 %v96, %v96
    %v99 = vshrl.u32 %v97, 16
    %v101 = vrot.slane %v99, 5
    %v102 = vshll.u32 %v97, 16
    %v104 = vrot.slane %v102, 6
    %v105 = vor.u32 %v101, %v104
    %v106 = vrot.slane %v101, 4
    %vm109 = vcmask 125954
    %vm110 = vsmask.f32 7946
    %vm111 = vmand %vm109, %vm110
    %v112 = vld [vmem:[#allocation2 + $0x4] sm:$0xc]
    %v113 = vsel %vm111, %v105, %v112
    %114 = vst [vmem:[#allocation2 + $0x4] sm:$0xc] %v113
    %vm115 = vcmask 122880
    %vm116 = vsmask.f32 256
    %vm117 = vmand %vm115, %vm116
    %v118 = vld [vmem:[#allocation2 + $0x8] sm:$0x1]
    %v119 = vsel %vm117, %v106, %v118
    %120 = vst [vmem:[#allocation2 + $0x8] sm:$0x1] %v119
    %v121 = vld [vmem:[#allocation2] sm:$0xf]
    %v122 = vld [vmem:[#allocation2 + $0x4] sm:$0x7]
    %v123 = vld [vmem:[%s1] sm:$0xf]
    %v124 = vld [vmem:[%s1 + $0x4] sm:$0xf]
    %v125 = vld [vmem:[#allocation2] sm:$0xe]
    %v126 = vld [vmem:[#allocation2 + $0x4] sm:$0xf]
    %v127 = vld [vmem:[#allocation2 + $0x8] sm:$0x1]
    %s128 = scalar_lea.vmem %s1, 8
    %v129 = vld [vmem:[%s128] sm:$0xf]
    %v130 = vld [vmem:[%s128 + $0x4] sm:$0xf]
    %v134 = vunpack.c.l.b16 %v125
    %v135 = vunpack.c.l.b16 %v126
    %v136 = vunpack.c.l.b16 %v127
    %v137 = vpack.c.b16 %v135, %v134
    %v138 = vpack.c.b16 %v136, %v136
    %vm139 = vsmask.f32 6400
    %v141 = vshrl.u32 %v137, 16
    %v143 = vrot.slane %v141, 1
    %v144 = vshll.u32 %v137, 16
    %v146 = vrot.slane %v144, 2
    %v147 = vor.u32 %v143, %v146
    %v149 = vshll.u32 %v138, 16
    %v151 = vrot.slane %v149, 2
    %v152 = vsel %vm139, %v147, %v151
    %v155 = vunpack.c.l.b16 %v129
    %v156 = vunpack.c.l.b16 %v130
    %v157 = vpack.c.b16 %v156, %v155
    %vm159 = vcmask 130048
    %v161 = vsel %vm159, %v152, 0
    %163 = vmatpush.bf16.msra.mxu0 0
    %164 = vmatpush.bf16.msra.mxu0 0
    %165 = vmatpush.bf16.msra.mxu0 0
    %166 = vmatpush.bf16.msra.mxu0 0
    %167 = vmatpush.bf16.msra.mxu0 0
    %168 = vmatpush.bf16.msra.mxu0 0
    %169 = vmatpush.bf16.msra.mxu0 0
    %170 = vmatpush.bf16.msra.mxu0 %v157
    %171 = vmatmul.bf16.gmra.mxu0 %v161
    %v172 = vpop.f32.mrf.mxu0
    %v173 = vadd.f32 0.0, %v172
    %v174 = vpop.f32.mrf.mxu0
    %v175 = vadd.f32 0.0, %v174
    %176 = vdwg.mxu0
    %v179 = vunpack.c.l.b16 %v121
    %v180 = vunpack.c.l.b16 %v122
    %v181 = vpack.c.b16 %v180, %v179
    %v184 = vunpack.c.l.b16 %v123
    %v185 = vunpack.c.l.b16 %v124
    %v186 = vpack.c.b16 %v185, %v184
    %v189 = vsel %vm159, %v181, 0
    %191 = vmatpush.bf16.msra.mxu0 0
    %192 = vmatpush.bf16.msra.mxu0 0
    %193 = vmatpush.bf16.msra.mxu0 0
    %194 = vmatpush.bf16.msra.mxu0 0
    %195 = vmatpush.bf16.msra.mxu0 0
    %196 = vmatpush.bf16.msra.mxu0 0
    %197 = vmatpush.bf16.msra.mxu0 0
    %198 = vmatpush.bf16.msra.mxu0 %v186
    %199 = vmatmul.bf16.gmra.mxu0 %v189
    %v200 = vpop.f32.mrf.mxu0
    %v201 = vadd.f32 %v173, %v200
    %v202 = vpop.f32.mrf.mxu0
    %v203 = vadd.f32 %v175, %v202
    %204 = vdwg.mxu0
    %v205 = vld [vmem:[#allocation2] sm:$0x8]
    %v206 = vld [vmem:[#allocation2 + $0x8] sm:$0x3]
    %s207 = scalar_lea.vmem %s1, 16
    %v208 = vld [vmem:[%s207] sm:$0xf]
    %v209 = vld [vmem:[%s207 + $0x4] sm:$0xf]
    %v212 = vunpack.c.l.b16 %v205
    %v213 = vunpack.c.l.b16 %v206
    %v214 = vpack.c.b16 %v135, %v212
    %v215 = vpack.c.b16 %v213, %v213
    %vm216 = vcmask 1044480
    %v217 = vrot.slane %v214, 3
    %v218 = vrot.slane %v215, 3
    %v219 = vsel %vm216, %v217, %v218
    %v222 = vunpack.c.l.b16 %v208
    %v223 = vunpack.c.l.b16 %v209
    %v224 = vpack.c.b16 %v223, %v222
    %v227 = vsel %vm159, %v219, 0
    %229 = vmatpush.bf16.msra.mxu0 0
    %230 = vmatpush.bf16.msra.mxu0 0
    %231 = vmatpush.bf16.msra.mxu0 0
    %232 = vmatpush.bf16.msra.mxu0 0
    %233 = vmatpush.bf16.msra.mxu0 0
    %234 = vmatpush.bf16.msra.mxu0 0
    %235 = vmatpush.bf16.msra.mxu0 0
    %236 = vmatpush.bf16.msra.mxu0 %v224
    %237 = vmatmul.bf16.gmra.mxu0 %v227
    %v238 = vpop.f32.mrf.mxu0
    %v239 = vadd.f32 0.0, %v238
    %v240 = vpop.f32.mrf.mxu0
    %v241 = vadd.f32 0.0, %v240
    %242 = vdwg.mxu0
    %v243 = vadd.f32 %v201, %v239
    %v244 = vadd.f32 %v203, %v241
    %v245 = vld [vmem:[#allocation4] sm:$0x1]
    %v247 = vperm.slane %v245, 0
    %v249 = vadd.f32 %v243, %v247
    %v250 = vadd.f32 %v244, %v247
    %v251 = vmax.f32 %v249, 0.0
    %vm252 = vcmask 125952
    %253 = vst.msk [vmem:[#allocation3] sm:$0xf] %vm252, %v251
    %v254 = vmax.f32 %v250, 0.0
    %vm255 = vcmask 128002
    %256 = vst.msk [vmem:[#allocation3 + $0x2] sm:$0x3c] %vm255, %v254
    %v257 = vld [vmem:[#allocation3] sm:$0xff]
    %v258 = vld [vmem:[%s3] sm:$0xf]
    %v259 = vld [vmem:[%s3 + $0x4] sm:$0xf]
    %v260 = vld [vmem:[#allocation6] sm:$0x1]
    %v262 = vperm.slane %v260, 0
    %v266 = vunpack.c.l.b16 %v258
    %v267 = vunpack.c.l.b16 %v259
    %v268 = vpack.c.b16 %v267, %v266
    %v271 = vsel %vm159, %v257, 0
    %273 = vmatpush.bf16.msra.mxu0 0
    %274 = vmatpush.bf16.msra.mxu0 0
    %275 = vmatpush.bf16.msra.mxu0 0
    %276 = vmatpush.bf16.msra.mxu0 0
    %277 = vmatpush.bf16.msra.mxu0 0
    %278 = vmatpush.bf16.msra.mxu0 0
    %279 = vmatpush.bf16.msra.mxu0 0
    %280 = vmatpush.bf16.msra.mxu0 %v268
    %281 = vmatmul.f32.gmra.mxu0 %v271
    %v282 = vpop.f32.mrf.mxu0
    %v283 = vadd.f32 %v262, %v282
    %284 = vdwg.mxu0
    %v285 = vld [vmem:[%s0] sm:$0x3]
    %v286 = vunpack.c.l.bf16 %v285
    %v287 = vadd.f32 %v283, %v286
    %v288 = vpack.c.bf16 %v287, %v287
    %vm289 = vcmask 123904
    %290 = vst.msk [vmem:[%s5] sm:$0x3] %vm289, %v288
    %v291 = vld [vmem:[%s93] sm:$0x3]
    %v292 = vunpack.c.l.bf16 %v291
    %s294 = scalar_lea.vmem [#allocation1], 1
    %295 = vst [vmem:[%s294] ss:$2 sm:$0xff] %v292
    %v296 = vld.sshfl [vmem:[#allocation1] sm:$0xff pattern:$0x75316420]
    %v298 = vadd.f32 %v283, %v296
    %v299 = vpack.c.bf16 %v298, %v298
    %301 = vst.sshfl [vmem:[#allocation1] sm:$0xff pattern:$0x75643120] %v299
    %s302 = scalar_lea.vmem [#allocation1], 1
    %v303 = vld [vmem:[%s302] ss:$2 sm:$0xff]
    %s305 = scalar_lea.vmem %s5, 2
    %306 = vst.msk [vmem:[%s305] sm:$0x3] %vm289, %v303
    // Predicated region
    $region30: #{encoder_pallas.17} parent=1 // pred_check
      _
    $region31: #{encoder_pallas.17} parent=1 // pred_check_branch
      %308 = sbr.rel (0) target = $region33
    $region32: #{encoder_pallas.17} parent=1 // pred_region
      _
    $region33: #{encoder_pallas.17} parent=1 // pred_fallthru
      _
    // Predicated region
    $region34: #{encoder_pallas.17} parent=1 // pred_check
      _
    $region35: #{encoder_pallas.17} parent=1 // pred_check_branch
      %310 = sbr.rel (0) target = $region37
    $region36: #{encoder_pallas.17} parent=1 // pred_region
      _
    $region37: #{encoder_pallas.17} parent=1 // pred_fallthru
      _
    %311 = vsyncpa [#allocation5], 1
    %312 = vsyncpa [#allocation7], 1

// kernel: encoder_pallas.16
$region0: #{encoder_pallas.16}
  #allocation0 [shape = 'u32[]', space=smem, size = 0x4, offset = 0x4, fixed_abs, tag = 'smem constant byte address 0x4 - core index']
  #allocation1 [shape = 'u32[72,128]{1,0:T(1,128)}', space=vmem, size = 0x9000, scoped, tag = 'internal scratch']
  #allocation2 [shape = 'bf16[44,16]{1,0:T(8,128)(2,1)}', space=vmem, size = 0x3000, scoped, tag = 'scratch operand']
  #allocation3 [shape = 'f32[8,16]{1,0:T(8,128)}', space=vmem, size = 0x1000, scoped, tag = 'scratch operand']
  %s0 = inlined_call_operand.vmem [shape: bf16[2,4,16], index: 0, kind: input, shape index: {}]
  %s1 = inlined_call_operand.vmem [shape: bf16[3,16,16], index: 1, kind: input, shape index: {}]
  %s2 = inlined_call_operand.hbm [shape: f32[1,16], index: 2, kind: input, shape index: {}]
  %s3 = inlined_call_operand.vmem [shape: bf16[16,16], index: 3, kind: input, shape index: {}]
  %s4 = inlined_call_operand.hbm [shape: f32[1,16], index: 4, kind: input, shape index: {}]
  %s5 = inlined_call_operand.vmem [shape: bf16[2,4,16], index: 5, kind: output, shape index: {}]
  %s6 = sld [smem:[#allocation0]]
  $region38: #{encoder_pallas.16} parent=0
    _
  %s8 = ssub.s32 1, %s6
  %s9 = scalar_select 0, %s8, %s6
  $region1: #{encoder_pallas.16} parent=0
    #allocation4 [shape = 'u8[512]{0}', space=vmem, size = 0x400, scoped, tag = 'input window, operand 2, single buffered']
    #allocation5 [shape = 's32[1]{0}', space=sflag, size = 0x4, scoped, tag = 'scoped memory for encoder_pallas.16']
    #allocation6 [shape = 'u8[512]{0}', space=vmem, size = 0x400, scoped, tag = 'input window, operand 4, single buffered']
    #allocation7 [shape = 's32[1]{0}', space=sflag, size = 0x4, scoped, tag = 'scoped memory for encoder_pallas.16']
    %10 = vsyncpa [#allocation5], 0
    %11 = vsyncpa [#allocation7], 0
    // Predicated region
    $region2: #{encoder_pallas.16} parent=1 // pred_check
      _
    $region3: #{encoder_pallas.16} parent=1 // pred_check_branch
      %13 = sbr.rel (0) target = $region5
    $region4: #{encoder_pallas.16} parent=1 // pred_region
      _
    $region5: #{encoder_pallas.16} parent=1 // pred_fallthru
      _
    // Predicated region
    $region6: #{encoder_pallas.16} parent=1 // pred_check
      _
    $region7: #{encoder_pallas.16} parent=1 // pred_check_branch
      %15 = sbr.rel (0) target = $region9
    $region8: #{encoder_pallas.16} parent=1 // pred_region
      _
    $region9: #{encoder_pallas.16} parent=1 // pred_fallthru
      _
    // Predicated region
    $region10: #{encoder_pallas.16} parent=1 // pred_check
      _
    $region11: #{encoder_pallas.16} parent=1 // pred_check_branch
      %17 = sbr.rel (0) target = $region13
    $region12: #{encoder_pallas.16} parent=1 // pred_region
      %19 = vsyncadd [#allocation5], 0
      %s21 = sshll.u32 %s2, 4
      %s22 = int_to_ptr.hbm [resolvable:$true] %s21
      %s23 = sshll.u32 [#allocation4], 4
      %s24 = int_to_ptr.vmem [resolvable:$true] %s23
      %26 = dma.hbm_to_vmem [thread:$0]  %s22, 16, %s24, [#allocation5]
    $region13: #{encoder_pallas.16} parent=1 // pred_fallthru
      _
    // Predicated region
    $region14: #{encoder_pallas.16} parent=1 // pred_check
      _
    $region15: #{encoder_pallas.16} parent=1 // pred_check_branch
      %28 = sbr.rel (0) target = $region17
    $region16: #{encoder_pallas.16} parent=1 // pred_region
      _
    $region17: #{encoder_pallas.16} parent=1 // pred_fallthru
      _
    // Predicated region
    $region18: #{encoder_pallas.16} parent=1 // pred_check
      _
    $region19: #{encoder_pallas.16} parent=1 // pred_check_branch
      %30 = sbr.rel (0) target = $region21
    $region20: #{encoder_pallas.16} parent=1 // pred_region
      %32 = vsyncadd [#allocation7], 0
      %s34 = sshll.u32 %s4, 4
      %s35 = int_to_ptr.hbm [resolvable:$true] %s34
      %s36 = sshll.u32 [#allocation6], 4
      %s37 = int_to_ptr.vmem [resolvable:$true] %s36
      %39 = dma.hbm_to_vmem [thread:$0]  %s35, 16, %s37, [#allocation7]
    $region21: #{encoder_pallas.16} parent=1 // pred_fallthru
      _
    // Predicated region
    $region22: #{encoder_pallas.16} parent=1 // pred_check
      _
    $region23: #{encoder_pallas.16} parent=1 // pred_check_branch
      %41 = sbr.rel (0) target = $region25
    $region24: #{encoder_pallas.16} parent=1 // pred_region
      %43 = dma.done [#allocation5], 16
    $region25: #{encoder_pallas.16} parent=1 // pred_fallthru
      _
    // Predicated region
    $region26: #{encoder_pallas.16} parent=1 // pred_check
      _
    $region27: #{encoder_pallas.16} parent=1 // pred_check_branch
      %45 = sbr.rel (0) target = $region29
    $region28: #{encoder_pallas.16} parent=1 // pred_region
      %47 = dma.done [#allocation7], 16
    $region29: #{encoder_pallas.16} parent=1 // pred_fallthru
      _
    %vm49 = vcmask 125952
    %50 = vst.msk [vmem:[#allocation2] sm:$0xf] %vm49, 0
    %vm51 = vcmask 122880
    %vm52 = vsmask.f32 256
    %vm53 = vmand %vm51, %vm52
    %v54 = vld [vmem:[#allocation2 + $0x4] sm:$0x1]
    %v55 = vsel %vm53, 0, %v54
    %56 = vst [vmem:[#allocation2 + $0x4] sm:$0x1] %v55
    %vm57 = vcmask 125954
    %vm58 = vsmask.f32 7946
    %vm59 = vmand %vm57, %vm58
    %v60 = vld [vmem:[#allocation2 + $0x4] sm:$0xc]
    %v61 = vsel %vm59, 0, %v60
    %62 = vst [vmem:[#allocation2 + $0x4] sm:$0xc] %v61
    %vm63 = vcmask 124928
    %64 = vst.msk [vmem:[#allocation2 + $0x8] sm:$0x7] %vm63, 0
    %v65 = vld [vmem:[%s0] sm:$0x3]
    %v66 = vunpack.c.l.bf16 %v65
    %v67 = vmax.f32 %v66, 0.0
    %v68 = vpack.c.bf16 %v67, %v67
    %v70 = vshrl.u32 %v68, 16
    %v72 = vrot.slane %v70, 7
    %v73 = vshll.u32 %v68, 16
    %v75 = vor.u32 %v72, %v73
    %vm77 = vcmask 124928
    %vm78 = vsmask.f32 2306
    %vm79 = vmand %vm77, %vm78
    %v80 = vld [vmem:[#allocation2 + $0x4] sm:$0x7]
    %v81 = vsel %vm79, %v75, %v80
    %82 = vst [vmem:[#allocation2 + $0x4] sm:$0x7] %v81
    %vm83 = vcmask 125955
    %84 = vst.msk [vmem:[#allocation2 + $0x8] sm:$0x8] %vm83, 0
    %vm85 = vcmask 125952
    %vm86 = vsmask.f32 3328
    %vm87 = vmand %vm85, %vm86
    %v88 = vld [vmem:[#allocation2 + $0xc] sm:$0xf]
    %v89 = vsel %vm87, 0, %v88
    %90 = vst [vmem:[#allocation2 + $0xc] sm:$0xf] %v89
    %vm91 = vcmask 125953
    %vm92 = vsmask.f32 7942
    %vm93 = vmand %vm91, %vm92
    %v94 = vld [vmem:[#allocation2 + $0x10] sm:$0xe]
    %v95 = vsel %vm93, 0, %v94
    %96 = vst [vmem:[#allocation2 + $0x10] sm:$0xe] %v95
    %vm97 = vcmask 123904
    %98 = vst.msk [vmem:[#allocation2 + $0x14] sm:$0x3] %vm97, 0
    %s99 = scalar_lea.vmem %s0, 2
    %v100 = vld [vmem:[%s99] sm:$0x3]
    %v101 = vunpack.c.l.bf16 %v100
    %v102 = vmax.f32 %v101, 0.0
    %v103 = vpack.c.bf16 %v102, %v102
    %v105 = vshll.u32 %v103, 16
    %v107 = vrot.slane %v105, 5
    %v108 = vshrl.u32 %v103, 16
    %v110 = vrot.slane %v108, 4
    %v111 = vor.u32 %v110, %v107
    %v112 = vrot.slane %v111, 4
    %vm115 = vcmask 125955
    %vm116 = vsmask.f32 7950
    %vm117 = vmand %vm115, %vm116
    %v118 = vld [vmem:[#allocation2 + $0xc] sm:$0x8]
    %v119 = vsel %vm117, %v107, %v118
    %120 = vst [vmem:[#allocation2 + $0xc] sm:$0x8] %v119
    %vm121 = vcmask 123904
    %vm122 = vsmask.f32 1280
    %vm123 = vmand %vm121, %vm122
    %v124 = vld [vmem:[#allocation2 + $0x10] sm:$0x3]
    %v125 = vsel %vm123, %v112, %v124
    %126 = vst [vmem:[#allocation2 + $0x10] sm:$0x3] %v125
    %v127 = vld [vmem:[#allocation2] sm:$0xf]
    %v128 = vld [vmem:[#allocation2 + $0x4] sm:$0xf]
    %v129 = vld [vmem:[#allocation2 + $0x8] sm:$0xf]
    %v130 = vld [vmem:[#allocation2 + $0xc] sm:$0x1]
    %v131 = vld [vmem:[%s1] sm:$0xf]
    %v132 = vld [vmem:[%s1 + $0x4] sm:$0xf]
    %v133 = vld [vmem:[#allocation2 + $0xc] sm:$0xf]
    %v134 = vld [vmem:[#allocation2 + $0x10] sm:$0x3]
    %s135 = scalar_lea.vmem %s1, 8
    %v136 = vld [vmem:[%s135] sm:$0xf]
    %v137 = vld [vmem:[%s135 + $0x4] sm:$0xf]
    %v142 = vunpack.c.l.b16 %v128
    %v143 = vunpack.c.l.b16 %v129
    %v144 = vunpack.c.l.b16 %v133
    %v145 = vunpack.c.l.b16 %v134
    %v146 = vpack.c.b16 %v143, %v142
    %v147 = vpack.c.b16 %v145, %v144
    %vm148 = vsmask.f32 7424
    %v150 = vshrl.u32 %v146, 16
    %v152 = vshll.u32 %v146, 16
    %v154 = vrot.slane %v152, 1
    %v155 = vor.u32 %v150, %v154
    %v157 = vshll.u32 %v147, 16
    %v159 = vrot.slane %v157, 1
    %v160 = vsel %vm148, %v155, %v159
    %v161 = vshrl.u32 %v147, 16
    %v163 = vor.u32 %v161, %v159
    %v166 = vunpack.c.l.b16 %v136
    %v167 = vunpack.c.l.b16 %v137
    %v168 = vpack.c.b16 %v167, %v166
    %vm170 = vcmask 130048
    %v172 = vsel %vm170, %v160, 0
    %v175 = vsel %vm170, %v163, 0
    %177 = vmatpush.bf16.msra.mxu0 0
    %178 = vmatpush.bf16.msra.mxu0 0
    %179 = vmatpush.bf16.msra.mxu0 0
    %180 = vmatpush.bf16.msra.mxu0 0
    %181 = vmatpush.bf16.msra.mxu0 0
    %182 = vmatpush.bf16.msra.mxu0 0
    %183 = vmatpush.bf16.msra.mxu0 0
    %184 = vmatpush.bf16.msra.mxu0 %v168
    %185 = vmatmul.bf16.gmra.mxu0 %v172
    %v186 = vpop.f32.mrf.mxu0
    %v187 = vadd.f32 0.0, %v186
    %v188 = vpop.f32.mrf.mxu0
    %189 = vmatmul.bf16.gmra.mxu0 %v175
    %v190 = vpop.f32.mrf.mxu0
    %v191 = vadd.f32 0.0, %v190
    %v192 = vpop.f32.mrf.mxu0
    %v193 = vadd.f32 0.0, %v192
    %194 = vdwg.mxu0
    %v197 = vunpack.c.l.b16 %v127
    %v198 = vunpack.c.l.b16 %v130
    %v199 = vpack.c.b16 %v142, %v197
    %v200 = vpack.c.b16 %v198, %v143
    %v203 = vunpack.c.l.b16 %v131
    %v204 = vunpack.c.l.b16 %v132
    %v205 = vpack.c.b16 %v204, %v203
    %v208 = vsel %vm170, %v199, 0
    %v211 = vsel %vm170, %v200, 0
    %213 = vmatpush.bf16.msra.mxu0 0
    %214 = vmatpush.bf16.msra.mxu0 0
    %215 = vmatpush.bf16.msra.mxu0 0
    %216 = vmatpush.bf16.msra.mxu0 0
    %217 = vmatpush.bf16.msra.mxu0 0
    %218 = vmatpush.bf16.msra.mxu0 0
    %219 = vmatpush.bf16.msra.mxu0 0
    %220 = vmatpush.bf16.msra.mxu0 %v205
    %221 = vmatmul.bf16.gmra.mxu0 %v208
    %v222 = vpop.f32.mrf.mxu0
    %v223 = vadd.f32 %v187, %v222
    %v224 = vpop.f32.mrf.mxu0
    %225 = vmatmul.bf16.gmra.mxu0 %v211
    %v226 = vpop.f32.mrf.mxu0
    %v227 = vadd.f32 %v191, %v226
    %v228 = vpop.f32.mrf.mxu0
    %v229 = vadd.f32 %v193, %v228
    %230 = vdwg.mxu0
    %v231 = vld [vmem:[#allocation2 + $0x8] sm:$0xe]
    %v232 = vld [vmem:[#allocation2 + $0xc] sm:$0xf]
    %v233 = vld [vmem:[#allocation2 + $0x10] sm:$0xf]
    %v234 = vld [vmem:[#allocation2 + $0x14] sm:$0x3]
    %s235 = scalar_lea.vmem %s1, 16
    %v236 = vld [vmem:[%s235] sm:$0xf]
    %v237 = vld [vmem:[%s235 + $0x4] sm:$0xf]
    %v242 = vunpack.c.l.b16 %v231
    %v243 = vunpack.c.l.b16 %v232
    %v244 = vunpack.c.l.b16 %v233
    %v245 = vunpack.c.l.b16 %v234
    %v246 = vpack.c.b16 %v243, %v242
    %v247 = vpack.c.b16 %v245, %v244
    %vm248 = vcmask 1046528
    %v249 = vrot.slane %v246, 1
    %v250 = vrot.slane %v247, 1
    %v251 = vsel %vm248, %v249, %v250
    %v254 = vunpack.c.l.b16 %v236
    %v255 = vunpack.c.l.b16 %v237
    %v256 = vpack.c.b16 %v255, %v254
    %v259 = vsel %vm170, %v251, 0
    %v262 = vsel %vm170, %v250, 0
    %264 = vmatpush.bf16.msra.mxu0 0
    %265 = vmatpush.bf16.msra.mxu0 0
    %266 = vmatpush.bf16.msra.mxu0 0
    %267 = vmatpush.bf16.msra.mxu0 0
    %268 = vmatpush.bf16.msra.mxu0 0
    %269 = vmatpush.bf16.msra.mxu0 0
    %270 = vmatpush.bf16.msra.mxu0 0
    %271 = vmatpush.bf16.msra.mxu0 %v256
    %272 = vmatmul.bf16.gmra.mxu0 %v259
    %v273 = vpop.f32.mrf.mxu0
    %v274 = vadd.f32 0.0, %v273
    %v275 = vpop.f32.mrf.mxu0
    %276 = vmatmul.bf16.gmra.mxu0 %v262
    %v277 = vpop.f32.mrf.mxu0
    %v278 = vadd.f32 0.0, %v277
    %v279 = vpop.f32.mrf.mxu0
    %v280 = vadd.f32 0.0, %v279
    %281 = vdwg.mxu0
    %v282 = vadd.f32 %v223, %v274
    %v283 = vadd.f32 %v227, %v278
    %v284 = vadd.f32 %v229, %v280
    %v285 = vld [vmem:[#allocation4] sm:$0x1]
    %v287 = vperm.slane %v285, 0
    %v289 = vadd.f32 %v282, %v287
    %v290 = vadd.f32 %v283, %v287
    %v291 = vadd.f32 %v284, %v287
    %v292 = vmax.f32 %v289, 0.0
    %293 = vst.msk [vmem:[#allocation3] sm:$0xf] %vm49, %v292
    %v294 = vmax.f32 %v290, 0.0
    %v295 = vmax.f32 %v291, 0.0
    %vm296 = vcmask 130054
    %297 = vst.msk [vmem:[#allocation3 - $0x2] sm:$0xc0] %vm296, %v294
    %298 = vst.msk [vmem:[#allocation3 + $0x6] sm:$0x3] %vm97, %v295
    %v299 = vld [vmem:[#allocation3] sm:$0xff]
    %v300 = vld [vmem:[%s3] sm:$0xf]
    %v301 = vld [vmem:[%s3 + $0x4] sm:$0xf]
    %v302 = vld [vmem:[#allocation6] sm:$0x1]
    %v304 = vperm.slane %v302, 0
    %v308 = vunpack.c.l.b16 %v300
    %v309 = vunpack.c.l.b16 %v301
    %v310 = vpack.c.b16 %v309, %v308
    %v313 = vsel %vm170, %v299, 0
    %315 = vmatpush.bf16.msra.mxu0 0
    %316 = vmatpush.bf16.msra.mxu0 0
    %317 = vmatpush.bf16.msra.mxu0 0
    %318 = vmatpush.bf16.msra.mxu0 0
    %319 = vmatpush.bf16.msra.mxu0 0
    %320 = vmatpush.bf16.msra.mxu0 0
    %321 = vmatpush.bf16.msra.mxu0 0
    %322 = vmatpush.bf16.msra.mxu0 %v310
    %323 = vmatmul.f32.gmra.mxu0 %v313
    %v324 = vpop.f32.mrf.mxu0
    %v325 = vadd.f32 %v304, %v324
    %326 = vdwg.mxu0
    %v327 = vld [vmem:[%s0] sm:$0x3]
    %v328 = vunpack.c.l.bf16 %v327
    %v329 = vadd.f32 %v325, %v328
    %v330 = vpack.c.bf16 %v329, %v329
    %331 = vst.msk [vmem:[%s5] sm:$0x3] %vm97, %v330
    %v332 = vld [vmem:[%s99] sm:$0x3]
    %v333 = vunpack.c.l.bf16 %v332
    %s335 = scalar_lea.vmem [#allocation1], 1
    %336 = vst [vmem:[%s335] ss:$2 sm:$0xff] %v333
    %v337 = vld.sshfl [vmem:[#allocation1] sm:$0xff pattern:$0x75316420]
    %v339 = vadd.f32 %v325, %v337
    %v340 = vpack.c.bf16 %v339, %v339
    %342 = vst.sshfl [vmem:[#allocation1] sm:$0xff pattern:$0x75643120] %v340
    %s343 = scalar_lea.vmem [#allocation1], 1
    %v344 = vld [vmem:[%s343] ss:$2 sm:$0xff]
    %s346 = scalar_lea.vmem %s5, 2
    %347 = vst.msk [vmem:[%s346] sm:$0x3] %vm97, %v344
    // Predicated region
    $region30: #{encoder_pallas.16} parent=1 // pred_check
      _
    $region31: #{encoder_pallas.16} parent=1 // pred_check_branch
      %349 = sbr.rel (0) target = $region33
    $region32: #{encoder_pallas.16} parent=1 // pred_region
      _
    $region33: #{encoder_pallas.16} parent=1 // pred_fallthru
      _
    // Predicated region
    $region34: #{encoder_pallas.16} parent=1 // pred_check
      _
    $region35: #{encoder_pallas.16} parent=1 // pred_check_branch
      %351 = sbr.rel (0) target = $region37
    $region36: #{encoder_pallas.16} parent=1 // pred_region
      _
    $region37: #{encoder_pallas.16} parent=1 // pred_fallthru
      _
    %352 = vsyncpa [#allocation5], 1
    %353 = vsyncpa [#allocation7], 1

// kernel: encoder_pallas.18
$region0: #{encoder_pallas.18}
  #allocation0 [shape = 'u32[]', space=smem, size = 0x4, offset = 0x4, fixed_abs, tag = 'smem constant byte address 0x4 - core index']
  #allocation1 [shape = 'u32[72,128]{1,0:T(1,128)}', space=vmem, size = 0x9000, scoped, tag = 'internal scratch']
  #allocation2 [shape = 'bf16[12,16]{1,0:T(8,128)(2,1)}', space=vmem, size = 0x1000, scoped, tag = 'scratch operand']
  #allocation3 [shape = 'f32[8,16]{1,0:T(8,128)}', space=vmem, size = 0x1000, scoped, tag = 'scratch operand']
  %s0 = inlined_call_operand.vmem [shape: bf16[2,4,16], index: 0, kind: input, shape index: {}]
  %s1 = inlined_call_operand.vmem [shape: bf16[3,16,16], index: 1, kind: input, shape index: {}]
  %s2 = inlined_call_operand.vmem [shape: f32[1,16], index: 2, kind: input, shape index: {}]
  %s3 = inlined_call_operand.vmem [shape: bf16[16,16], index: 3, kind: input, shape index: {}]
  %s4 = inlined_call_operand.vmem [shape: f32[1,16], index: 4, kind: input, shape index: {}]
  %s5 = inlined_call_operand.vmem [shape: bf16[2,4,16], index: 5, kind: output, shape index: {}]
  %s6 = sld [smem:[#allocation0]]
  $region30: #{encoder_pallas.18} parent=0
    _
  %s8 = ssub.s32 1, %s6
  %s9 = scalar_select 0, %s8, %s6
  // Predicated region
  $region2: #{encoder_pallas.18} parent=0 // pred_check
    _
  $region3: #{encoder_pallas.18} parent=0 // pred_check_branch
    %11 = sbr.rel (0) target = $region5
  $region4: #{encoder_pallas.18} parent=0 // pred_region
    _
  $region5: #{encoder_pallas.18} parent=0 // pred_fallthru
    _
  // Predicated region
  $region6: #{encoder_pallas.18} parent=0 // pred_check
    _
  $region7: #{encoder_pallas.18} parent=0 // pred_check_branch
    %13 = sbr.rel (0) target = $region9
  $region8: #{encoder_pallas.18} parent=0 // pred_region
    _
  $region9: #{encoder_pallas.18} parent=0 // pred_fallthru
    _
  // Predicated region
  $region10: #{encoder_pallas.18} parent=0 // pred_check
    _
  $region11: #{encoder_pallas.18} parent=0 // pred_check_branch
    %15 = sbr.rel (0) target = $region13
  $region12: #{encoder_pallas.18} parent=0 // pred_region
    _
  $region13: #{encoder_pallas.18} parent=0 // pred_fallthru
    _
  // Predicated region
  $region14: #{encoder_pallas.18} parent=0 // pred_check
    _
  $region15: #{encoder_pallas.18} parent=0 // pred_check_branch
    %17 = sbr.rel (0) target = $region17
  $region16: #{encoder_pallas.18} parent=0 // pred_region
    _
  $region17: #{encoder_pallas.18} parent=0 // pred_fallthru
    _
  // Predicated region
  $region18: #{encoder_pallas.18} parent=0 // pred_check
    _
  $region19: #{encoder_pallas.18} parent=0 // pred_check_branch
    %19 = sbr.rel (0) target = $region21
  $region20: #{encoder_pallas.18} parent=0 // pred_region
    _
  $region21: #{encoder_pallas.18} parent=0 // pred_fallthru
    _
  %vm21 = vcmask 122880
  %vm22 = vsmask.f32 256
  %vm23 = vmand %vm21, %vm22
  %v24 = vld [vmem:[#allocation2] sm:$0x1]
  %v25 = vsel %vm23, 0, %v24
  %26 = vst [vmem:[#allocation2] sm:$0x1] %v25
  %vm27 = vcmask 124930
  %vm28 = vsmask.f32 7946
  %vm29 = vmand %vm27, %vm28
  %v30 = vld [vmem:[#allocation2] sm:$0x4]
  %v31 = vsel %vm29, 0, %v30
  %32 = vst [vmem:[#allocation2] sm:$0x4] %v31
  %v33 = vld [vmem:[%s0] sm:$0x3]
  %v34 = vunpack.c.l.bf16 %v33
  %v35 = vmax.f32 %v34, 0.0
  %v36 = vpack.c.bf16 %v35, %v35
  %v38 = vshrl.u32 %v36, 16
  %v40 = vrot.slane %v38, 7
  %v41 = vshll.u32 %v36, 16
  %v43 = vor.u32 %v40, %v41
  %vm45 = vcmask 124928
  %vm46 = vsmask.f32 2306
  %vm47 = vmand %vm45, %vm46
  %v48 = vld [vmem:[#allocation2] sm:$0x7]
  %v49 = vsel %vm47, %v43, %v48
  %50 = vst [vmem:[#allocation2] sm:$0x7] %v49
  %vm51 = vcmask 125955
  %vm52 = vsmask.f32 3328
  %vm53 = vmand %vm51, %vm52
  %v54 = vld [vmem:[#allocation2] sm:$0x8]
  %v55 = vsel %vm53, 0, %v54
  %56 = vst [vmem:[#allocation2] sm:$0x8] %v55
  %vm57 = vcmask 123905
  %vm58 = vsmask.f32 7942
  %vm59 = vmand %vm57, %vm58
  %v60 = vld [vmem:[#allocation2 + $0x4] sm:$0x2]
  %v61 = vsel %vm59, 0, %v60
  %62 = vst [vmem:[#allocation2 + $0x4] sm:$0x2] %v61
  %s63 = scalar_lea.vmem %s0, 2
  %v64 = vld [vmem:[%s63] sm:$0x3]
  %v65 = vunpack.c.l.bf16 %v64
  %v66 = vmax.f32 %v65, 0.0
  %v67 = vpack.c.bf16 %v66, %v66
  %v69 = vshll.u32 %v67, 16
  %v71 = vrot.slane %v69, 5
  %v72 = vshrl.u32 %v67, 16
  %v74 = vrot.slane %v72, 4
  %v75 = vor.u32 %v74, %v71
  %v76 = vrot.slane %v75, 4
  %vm79 = vsmask.f32 7950
  %vm80 = vmand %vm51, %vm79
  %v81 = vld [vmem:[#allocation2] sm:$0x8]
  %v82 = vsel %vm80, %v71, %v81
  %83 = vst [vmem:[#allocation2] sm:$0x8] %v82
  %vm84 = vcmask 123904
  %vm85 = vsmask.f32 1280
  %vm86 = vmand %vm84, %vm85
  %v87 = vld [vmem:[#allocation2 + $0x4] sm:$0x3]
  %v88 = vsel %vm86, %v76, %v87
  %89 = vst [vmem:[#allocation2 + $0x4] sm:$0x3] %v88
  %v90 = vld [vmem:[#allocation2] sm:$0xf]
  %v91 = vld [vmem:[#allocation2 + $0x4] sm:$0x1]
  %v92 = vld [vmem:[%s1] sm:$0xf]
  %v93 = vld [vmem:[%s1 + $0x4] sm:$0xf]
  %v94 = vld [vmem:[#allocation2 + $0x4] sm:$0x3]
  %s95 = scalar_lea.vmem %s1, 8
  %v96 = vld [vmem:[%s95] sm:$0xf]
  %v97 = vld [vmem:[%s95 + $0x4] sm:$0xf]
  %v100 = vunpack.c.l.b16 %v90
  %v101 = vunpack.c.l.b16 %v94
  %v102 = vpack.c.b16 %v101, %v100
  %v104 = vshrl.u32 %v102, 16
  %v106 = vshll.u32 %v102, 16
  %v108 = vrot.slane %v106, 1
  %v109 = vor.u32 %v104, %v108
  %v112 = vunpack.c.l.b16 %v96
  %v113 = vunpack.c.l.b16 %v97
  %v114 = vpack.c.b16 %v113, %v112
  %vm116 = vcmask 130048
  %v118 = vsel %vm116, %v109, 0
  %120 = vmatpush.bf16.msra.mxu0 0
  %121 = vmatpush.bf16.msra.mxu0 0
  %122 = vmatpush.bf16.msra.mxu0 0
  %123 = vmatpush.bf16.msra.mxu0 0
  %124 = vmatpush.bf16.msra.mxu0 0
  %125 = vmatpush.bf16.msra.mxu0 0
  %126 = vmatpush.bf16.msra.mxu0 0
  %127 = vmatpush.bf16.msra.mxu0 %v114
  %128 = vmatmul.bf16.gmra.mxu0 %v118
  %v129 = vpop.f32.mrf.mxu0
  %v130 = vadd.f32 0.0, %v129
  %v131 = vpop.f32.mrf.mxu0
  %v132 = vadd.f32 0.0, %v131
  %133 = vdwg.mxu0
  %v135 = vunpack.c.l.b16 %v91
  %v136 = vpack.c.b16 %v135, %v100
  %v139 = vunpack.c.l.b16 %v92
  %v140 = vunpack.c.l.b16 %v93
  %v141 = vpack.c.b16 %v140, %v139
  %v144 = vsel %vm116, %v136, 0
  %146 = vmatpush.bf16.msra.mxu0 0
  %147 = vmatpush.bf16.msra.mxu0 0
  %148 = vmatpush.bf16.msra.mxu0 0
  %149 = vmatpush.bf16.msra.mxu0 0
  %150 = vmatpush.bf16.msra.mxu0 0
  %151 = vmatpush.bf16.msra.mxu0 0
  %152 = vmatpush.bf16.msra.mxu0 0
  %153 = vmatpush.bf16.msra.mxu0 %v141
  %154 = vmatmul.bf16.gmra.mxu0 %v144
  %v155 = vpop.f32.mrf.mxu0
  %v156 = vadd.f32 %v130, %v155
  %v157 = vpop.f32.mrf.mxu0
  %v158 = vadd.f32 %v132, %v157
  %159 = vdwg.mxu0
  %v160 = vld [vmem:[#allocation2] sm:$0xe]
  %s161 = scalar_lea.vmem %s1, 16
  %v162 = vld [vmem:[%s161] sm:$0xf]
  %v163 = vld [vmem:[%s161 + $0x4] sm:$0xf]
  %v165 = vunpack.c.l.b16 %v160
  %v166 = vpack.c.b16 %v101, %v165
  %v167 = vrot.slane %v166, 1
  %v170 = vunpack.c.l.b16 %v162
  %v171 = vunpack.c.l.b16 %v163
  %v172 = vpack.c.b16 %v171, %v170
  %v175 = vsel %vm116, %v167, 0
  %177 = vmatpush.bf16.msra.mxu0 0
  %178 = vmatpush.bf16.msra.mxu0 0
  %179 = vmatpush.bf16.msra.mxu0 0
  %180 = vmatpush.bf16.msra.mxu0 0
  %181 = vmatpush.bf16.msra.mxu0 0
  %182 = vmatpush.bf16.msra.mxu0 0
  %183 = vmatpush.bf16.msra.mxu0 0
  %184 = vmatpush.bf16.msra.mxu0 %v172
  %185 = vmatmul.bf16.gmra.mxu0 %v175
  %v186 = vpop.f32.mrf.mxu0
  %v187 = vadd.f32 0.0, %v186
  %v188 = vpop.f32.mrf.mxu0
  %v189 = vadd.f32 0.0, %v188
  %190 = vdwg.mxu0
  %v191 = vadd.f32 %v156, %v187
  %v192 = vadd.f32 %v158, %v189
  %v193 = vld [vmem:[%s2] sm:$0x1]
  %v195 = vperm.slane %v193, 0
  %v197 = vadd.f32 %v191, %v195
  %v198 = vadd.f32 %v192, %v195
  %v199 = vmax.f32 %v197, 0.0
  %vm200 = vcmask 125952
  %201 = vst.msk [vmem:[#allocation3] sm:$0xf] %vm200, %v199
  %v202 = vmax.f32 %v198, 0.0
  %vm203 = vcmask 130054
  %204 = vst.msk [vmem:[#allocation3 - $0x2] sm:$0xc0] %vm203, %v199
  %vm205 = vcmask 123904
  %206 = vst.msk [vmem:[#allocation3 + $0x6] sm:$0x3] %vm205, %v202
  %v207 = vld [vmem:[#allocation3] sm:$0xff]
  %v208 = vld [vmem:[%s3] sm:$0xf]
  %v209 = vld [vmem:[%s3 + $0x4] sm:$0xf]
  %v210 = vld [vmem:[%s4] sm:$0x1]
  %v212 = vperm.slane %v210, 0
  %v216 = vunpack.c.l.b16 %v208
  %v217 = vunpack.c.l.b16 %v209
  %v218 = vpack.c.b16 %v217, %v216
  %v221 = vsel %vm116, %v207, 0
  %223 = vmatpush.bf16.msra.mxu0 0
  %224 = vmatpush.bf16.msra.mxu0 0
  %225 = vmatpush.bf16.msra.mxu0 0
  %226 = vmatpush.bf16.msra.mxu0 0
  %227 = vmatpush.bf16.msra.mxu0 0
  %228 = vmatpush.bf16.msra.mxu0 0
  %229 = vmatpush.bf16.msra.mxu0 0
  %230 = vmatpush.bf16.msra.mxu0 %v218
  %231 = vmatmul.f32.gmra.mxu0 %v221
  %v232 = vpop.f32.mrf.mxu0
  %v233 = vadd.f32 %v212, %v232
  %234 = vdwg.mxu0
  %v235 = vld [vmem:[%s0] sm:$0x3]
  %v236 = vunpack.c.l.bf16 %v235
  %v237 = vadd.f32 %v233, %v236
  %v238 = vpack.c.bf16 %v237, %v237
  %239 = vst.msk [vmem:[%s5] sm:$0x3] %vm205, %v238
  %v240 = vld [vmem:[%s63] sm:$0x3]
  %v241 = vunpack.c.l.bf16 %v240
  %s243 = scalar_lea.vmem [#allocation1], 1
  %244 = vst [vmem:[%s243] ss:$2 sm:$0xff] %v241
  %v245 = vld.sshfl [vmem:[#allocation1] sm:$0xff pattern:$0x75316420]
  %v247 = vadd.f32 %v233, %v245
  %v248 = vpack.c.bf16 %v247, %v247
  %250 = vst.sshfl [vmem:[#allocation1] sm:$0xff pattern:$0x75643120] %v248
  %s251 = scalar_lea.vmem [#allocation1], 1
  %v252 = vld [vmem:[%s251] ss:$2 sm:$0xff]
  %s254 = scalar_lea.vmem %s5, 2
  %255 = vst.msk [vmem:[%s254] sm:$0x3] %vm205, %v252
  // Predicated region
  $region22: #{encoder_pallas.18} parent=0 // pred_check
    _
  $region23: #{encoder_pallas.18} parent=0 // pred_check_branch
    %257 = sbr.rel (0) target = $region25
  $region24: #{encoder_pallas.18} parent=0 // pred_region
    _
  $region25: #{encoder_pallas.18} parent=0 // pred_fallthru
    _
  // Predicated region
  $region26: #{encoder_pallas.18} parent=0 // pred_check
    _
  $region27: #{encoder_pallas.18} parent=0 // pred_check_branch
    %259 = sbr.rel (0) target = $region29
  $region28: #{encoder_pallas.18} parent=0 // pred_region
    _
  $region29: #{encoder_pallas.18} parent=0 // pred_fallthru
    _

// kernel: encoder_pallas.19
$region0: #{encoder_pallas.19}
  #allocation0 [shape = 'u32[]', space=smem, size = 0x4, offset = 0x4, fixed_abs, tag = 'smem constant byte address 0x4 - core index']
  #allocation1 [shape = 'u32[72,128]{1,0:T(1,128)}', space=vmem, size = 0x9000, scoped, tag = 'internal scratch']
  #allocation2 [shape = 'bf16[12,16]{1,0:T(8,128)(2,1)}', space=vmem, size = 0x1000, scoped, tag = 'scratch operand']
  %s0 = inlined_call_operand.vmem [shape: bf16[2,4,16], index: 0, kind: input, shape index: {}]
  %s1 = inlined_call_operand.vmem [shape: bf16[3,16,16], index: 1, kind: input, shape index: {}]
  %s2 = inlined_call_operand.vmem [shape: f32[1,16], index: 2, kind: input, shape index: {}]
  %s3 = inlined_call_operand.hbm [shape: f32[2,4,16], index: 3, kind: output, shape index: {}]
  %s4 = sld [smem:[#allocation0]]
  $region22: #{encoder_pallas.19} parent=0
    _
  %s6 = ssub.s32 1, %s4
  %s7 = scalar_select 0, %s6, %s4
  $region1: #{encoder_pallas.19} parent=0
    #allocation3 [shape = 'u8[4096]{0}', space=vmem, size = 0x1000, scoped, tag = 'output window, operand 0, single buffered']
    #allocation4 [shape = 's32[1]{0}', space=sflag, size = 0x4, scoped, tag = 'scoped memory for encoder_pallas.19']
    %8 = vsyncpa [#allocation4], 0
    // Predicated region
    $region2: #{encoder_pallas.19} parent=1 // pred_check
      _
    $region3: #{encoder_pallas.19} parent=1 // pred_check_branch
      %10 = sbr.rel (0) target = $region5
    $region4: #{encoder_pallas.19} parent=1 // pred_region
      _
    $region5: #{encoder_pallas.19} parent=1 // pred_fallthru
      _
    // Predicated region
    $region6: #{encoder_pallas.19} parent=1 // pred_check
      _
    $region7: #{encoder_pallas.19} parent=1 // pred_check_branch
      %12 = sbr.rel (0) target = $region9
    $region8: #{encoder_pallas.19} parent=1 // pred_region
      _
    $region9: #{encoder_pallas.19} parent=1 // pred_fallthru
      _
    // Predicated region
    $region10: #{encoder_pallas.19} parent=1 // pred_check
      _
    $region11: #{encoder_pallas.19} parent=1 // pred_check_branch
      %14 = sbr.rel (0) target = $region13
    $region12: #{encoder_pallas.19} parent=1 // pred_region
      _
    $region13: #{encoder_pallas.19} parent=1 // pred_fallthru
      _
    %vm16 = vcmask 122880
    %vm17 = vsmask.f32 256
    %vm18 = vmand %vm16, %vm17
    %v19 = vld [vmem:[#allocation2] sm:$0x1]
    %v20 = vsel %vm18, 0, %v19
    %21 = vst [vmem:[#allocation2] sm:$0x1] %v20
    %vm22 = vcmask 124930
    %vm23 = vsmask.f32 7946
    %vm24 = vmand %vm22, %vm23
    %v25 = vld [vmem:[#allocation2] sm:$0x4]
    %v26 = vsel %vm24, 0, %v25
    %27 = vst [vmem:[#allocation2] sm:$0x4] %v26
    %v28 = vld [vmem:[%s0] sm:$0x3]
    %30 = vst [vmem:[#allocation1] ss:$2 sm:$0xff] %v28
    %v31 = vld.sshfl [vmem:[#allocation1] sm:$0xff pattern:$0x75643120]
    %v32 = vshrl.u32 %v31, 16
    %v34 = vrot.slane %v32, 7
    %v35 = vshll.u32 %v31, 16
    %v37 = vor.u32 %v34, %v35
    %vm39 = vcmask 124928
    %vm40 = vsmask.f32 2306
    %vm41 = vmand %vm39, %vm40
    %v42 = vld [vmem:[#allocation2] sm:$0x7]
    %v43 = vsel %vm41, %v37, %v42
    %44 = vst [vmem:[#allocation2] sm:$0x7] %v43
    %vm45 = vcmask 125955
    %vm46 = vsmask.f32 3328
    %vm47 = vmand %vm45, %vm46
    %v48 = vld [vmem:[#allocation2] sm:$0x8]
    %v49 = vsel %vm47, 0, %v48
    %50 = vst [vmem:[#allocation2] sm:$0x8] %v49
    %vm51 = vcmask 123905
    %vm52 = vsmask.f32 7942
    %vm53 = vmand %vm51, %vm52
    %v54 = vld [vmem:[#allocation2 + $0x4] sm:$0x2]
    %v55 = vsel %vm53, 0, %v54
    %56 = vst [vmem:[#allocation2 + $0x4] sm:$0x2] %v55
    %s57 = scalar_lea.vmem %s0, 2
    %v58 = vld [vmem:[%s57] sm:$0x3]
    %60 = vst [vmem:[#allocation1] ss:$2 sm:$0xff] %v58
    %v61 = vld.sshfl [vmem:[#allocation1] sm:$0xff pattern:$0x75643120]
    %v62 = vshll.u32 %v61, 16
    %v64 = vrot.slane %v62, 5
    %v65 = vshrl.u32 %v61, 16
    %v67 = vrot.slane %v65, 4
    %v68 = vor.u32 %v67, %v64
    %v69 = vrot.slane %v68, 4
    %vm72 = vsmask.f32 7950
    %vm73 = vmand %vm45, %vm72
    %v74 = vld [vmem:[#allocation2] sm:$0x8]
    %v75 = vsel %vm73, %v64, %v74
    %76 = vst [vmem:[#allocation2] sm:$0x8] %v75
    %vm77 = vcmask 123904
    %vm78 = vsmask.f32 1280
    %vm79 = vmand %vm77, %vm78
    %v80 = vld [vmem:[#allocation2 + $0x4] sm:$0x3]
    %v81 = vsel %vm79, %v69, %v80
    %82 = vst [vmem:[#allocation2 + $0x4] sm:$0x3] %v81
    %v83 = vld [vmem:[#allocation2] sm:$0xf]
    %v84 = vld [vmem:[#allocation2 + $0x4] sm:$0x1]
    %v85 = vld [vmem:[%s1] sm:$0xf]
    %v86 = vld [vmem:[%s1 + $0x4] sm:$0xf]
    %v87 = vld [vmem:[#allocation2 + $0x4] sm:$0x3]
    %s88 = scalar_lea.vmem %s1, 8
    %v89 = vld [vmem:[%s88] sm:$0xf]
    %v90 = vld [vmem:[%s88 + $0x4] sm:$0xf]
    %v93 = vunpack.c.l.b16 %v83
    %v94 = vunpack.c.l.b16 %v87
    %v95 = vpack.c.b16 %v94, %v93
    %v97 = vshrl.u32 %v95, 16
    %v99 = vshll.u32 %v95, 16
    %v101 = vrot.slane %v99, 1
    %v102 = vor.u32 %v97, %v101
    %v105 = vunpack.c.l.b16 %v89
    %v106 = vunpack.c.l.b16 %v90
    %v107 = vpack.c.b16 %v106, %v105
    %vm109 = vcmask 130048
    %v111 = vsel %vm109, %v102, 0
    %113 = vmatpush.bf16.msra.mxu0 0
    %114 = vmatpush.bf16.msra.mxu0 0
    %115 = vmatpush.bf16.msra.mxu0 0
    %116 = vmatpush.bf16.msra.mxu0 0
    %117 = vmatpush.bf16.msra.mxu0 0
    %118 = vmatpush.bf16.msra.mxu0 0
    %119 = vmatpush.bf16.msra.mxu0 0
    %120 = vmatpush.bf16.msra.mxu0 %v107
    %121 = vmatmul.bf16.gmra.mxu0 %v111
    %v122 = vpop.f32.mrf.mxu0
    %v123 = vadd.f32 0.0, %v122
    %v124 = vpop.f32.mrf.mxu0
    %v125 = vadd.f32 0.0, %v124
    %126 = vdwg.mxu0
    %v128 = vunpack.c.l.b16 %v84
    %v129 = vpack.c.b16 %v128, %v93
    %v132 = vunpack.c.l.b16 %v85
    %v133 = vunpack.c.l.b16 %v86
    %v134 = vpack.c.b16 %v133, %v132
    %v137 = vsel %vm109, %v129, 0
    %139 = vmatpush.bf16.msra.mxu0 0
    %140 = vmatpush.bf16.msra.mxu0 0
    %141 = vmatpush.bf16.msra.mxu0 0
    %142 = vmatpush.bf16.msra.mxu0 0
    %143 = vmatpush.bf16.msra.mxu0 0
    %144 = vmatpush.bf16.msra.mxu0 0
    %145 = vmatpush.bf16.msra.mxu0 0
    %146 = vmatpush.bf16.msra.mxu0 %v134
    %147 = vmatmul.bf16.gmra.mxu0 %v137
    %v148 = vpop.f32.mrf.mxu0
    %v149 = vadd.f32 %v123, %v148
    %v150 = vpop.f32.mrf.mxu0
    %v151 = vadd.f32 %v125, %v150
    %152 = vdwg.mxu0
    %v153 = vld [vmem:[#allocation2] sm:$0xe]
    %s154 = scalar_lea.vmem %s1, 16
    %v155 = vld [vmem:[%s154] sm:$0xf]
    %v156 = vld [vmem:[%s154 + $0x4] sm:$0xf]
    %v158 = vunpack.c.l.b16 %v153
    %v159 = vpack.c.b16 %v94, %v158
    %v160 = vrot.slane %v159, 1
    %v163 = vunpack.c.l.b16 %v155
    %v164 = vunpack.c.l.b16 %v156
    %v165 = vpack.c.b16 %v164, %v163
    %v168 = vsel %vm109, %v160, 0
    %170 = vmatpush.bf16.msra.mxu0 0
    %171 = vmatpush.bf16.msra.mxu0 0
    %172 = vmatpush.bf16.msra.mxu0 0
    %173 = vmatpush.bf16.msra.mxu0 0
    %174 = vmatpush.bf16.msra.mxu0 0
    %175 = vmatpush.bf16.msra.mxu0 0
    %176 = vmatpush.bf16.msra.mxu0 0
    %177 = vmatpush.bf16.msra.mxu0 %v165
    %178 = vmatmul.bf16.gmra.mxu0 %v168
    %v179 = vpop.f32.mrf.mxu0
    %v180 = vadd.f32 0.0, %v179
    %v181 = vpop.f32.mrf.mxu0
    %v182 = vadd.f32 0.0, %v181
    %183 = vdwg.mxu0
    %v184 = vadd.f32 %v149, %v180
    %v185 = vadd.f32 %v151, %v182
    %v186 = vld [vmem:[%s2] sm:$0x1]
    %v188 = vperm.slane %v186, 0
    %v190 = vadd.f32 %v184, %v188
    %v191 = vadd.f32 %v185, %v188
    %vm192 = vcmask 125952
    %193 = vst.msk [vmem:[#allocation3] sm:$0xf] %vm192, %v190
    %s194 = scalar_lea.vmem [#allocation3], 4
    %vm195 = vcmask 130054
    %196 = vst.msk [vmem:[%s194 - $0x6] sm:$0xc0] %vm195, %v190
    %vm197 = vcmask 123904
    %198 = vst.msk [vmem:[%s194 + $0x2] sm:$0x3] %vm197, %v191
    // Predicated region
    $region14: #{encoder_pallas.19} parent=1 // pred_check
      _
    $region15: #{encoder_pallas.19} parent=1 // pred_check_branch
      %200 = sbr.rel (0) target = $region17
    $region16: #{encoder_pallas.19} parent=1 // pred_region
      %202 = vsyncadd [#allocation4], 0
      %s203 = sshll.u32 [#allocation3], 4
      %s204 = int_to_ptr.vmem [resolvable:$true] %s203
      %s205 = sshll.u32 %s3, 4
      %s206 = int_to_ptr.hbm [resolvable:$true] %s205
      %211 = dma.vmem_to_hbm [thread:$0]  %s204, 128, %s206, [#allocation4], 64, 64, 4
    $region17: #{encoder_pallas.19} parent=1 // pred_fallthru
      _
    // Predicated region
    $region18: #{encoder_pallas.19} parent=1 // pred_check
      _
    $region19: #{encoder_pallas.19} parent=1 // pred_check_branch
      %213 = sbr.rel (0) target = $region21
    $region20: #{encoder_pallas.19} parent=1 // pred_region
      %215 = dma.done [#allocation4], 128
    $region21: #{encoder_pallas.19} parent=1 // pred_fallthru
      _
    %216 = vsyncpa [#allocation4], 1

</llo_original>
